<compile_context>
chip_gen: v7x
topology: tpu7x:2x2x1
jax: 0.10.0
libtpu: 0.0.40
codegen_flags: <defaults>
</compile_context>

<pallas_src>
import functools

import jax
import jax.numpy as jnp
from jax.experimental import pallas as pl
from jax.experimental.pallas import tpu as pltpu


# ---------------------------------------------------------------------------
# Pallas kernel: fused LWGatedConv2D for one (batch, row-tile) grid step.
# ---------------------------------------------------------------------------
def _lwgated_fused_kernel(x_ref, w_ref, b_ref, o_ref, *,
                          tr, Wo, Cin, Cout, stride, ksize, relu):
    """
    x_ref : (1, Hf, stride, Wf, stride*Cin)  padded input, stride phases folded
                                             into channels (bf16, full image).
    w_ref : (ksize*ksize, Cin, Cpad)         fused feature+mask weights (bf16).
                                             cols [0:Cout]=feature, [Cout]=mask,
                                             rest zero.
    b_ref : (1, Cpad)                        fused bias (f32), zero beyond Cout.
    o_ref : (1, tr, Wo, Cpad)                lane-dense output tile.
    """
    row0 = pl.multiple_of(pl.program_id(1) * tr, tr)   # first output row
    Cpad = w_ref.shape[-1]
    M = tr * Wo

    # Bias as the initial accumulator value (padding lanes of the bias are 0,
    # so padding lanes of acc stay exactly 0 -> no epilogue masking needed).
    acc = jnp.broadcast_to(b_ref[...], (M, Cpad)).astype(jnp.float32)

    tap = 0
    for di in range(ksize):             # static Python loops -> fully unrolled
        for dj in range(ksize):
            # Original input pixel for output (ho, wo) and tap (di, dj) is
            # (stride*ho + di, stride*wo + dj); in the folded layout this is a
            # contiguous static-width slice (no strided loads needed).
            patch = x_ref[0,
                          pl.ds(row0 + di // stride, tr),
                          di % stride,
                          pl.ds(dj // stride, Wo),
                          pl.ds((dj % stride) * Cin, Cin)]      # (tr, Wo, Cin)
            acc += jnp.dot(patch.reshape(M, Cin), w_ref[tap],
                           preferred_element_type=jnp.float32)
            tap += 1

    # Gate: sigmoid of the fused mask-logit column (EUP); epilogue stays f32.
    gate = jax.nn.sigmoid(acc[:, Cout:Cout + 1])        # (M, 1)
    out = acc * gate
    if relu:
        out = jnp.maximum(out, 0.0)

    # Padding lanes are already 0; the mask-logit column is dropped once in
    # the wrapper, so the store is a full-width unmasked lane-dense vst.
    o_ref[...] = out.reshape(1, tr, Wo, Cpad).astype(o_ref.dtype)


def _pick_row_tile(Ho, Wo, target_m=2048):
    """Largest divisor of Ho with tr*Wo <= target_m (at least 1)."""
    tr = 1
    for cand in range(1, Ho + 1):
        if Ho % cand == 0 and cand * Wo <= max(target_m, Wo):
            tr = cand
    return tr


# ---------------------------------------------------------------------------
# Wrapper: one LWGatedConv2D layer (feature conv * sigmoid(mask conv) [+ReLU])
# ---------------------------------------------------------------------------
def lwgated_conv2d(x_nhwc, wf, bf, wm, bm, *, stride, pad, relu,
                   compute_dtype=jnp.bfloat16, out_dtype=jnp.float32):
    """wf: (kh,kw,Cin,Cout); bf: (Cout,); wm: (kh,kw,Cin,1); bm: (1,)."""
    kh, kw, Cin, Cout = wf.shape
    assert kh == kw
    N, H, W, _ = x_nhwc.shape
    Ho = (H + 2 * pad - kh) // stride + 1
    Wo = (W + 2 * pad - kw) // stride + 1
    Cpad = pl.cdiv(Cout + 1, 128) * 128          # lane-dense fused output width

    # Fused weights/bias: feature cols [0:Cout], mask col [Cout], zero padding.
    w_fused = jnp.zeros((kh * kw, Cin, Cpad), compute_dtype)
    w_fused = w_fused.at[:, :, :Cout].set(
        wf.reshape(kh * kw, Cin, Cout).astype(compute_dtype))
    w_fused = w_fused.at[:, :, Cout].set(
        wm.reshape(kh * kw, Cin).astype(compute_dtype))
    b_fused = jnp.zeros((1, Cpad), jnp.float32)
    b_fused = b_fused.at[0, :Cout].set(bf.astype(jnp.float32))
    b_fused = b_fused.at[0, Cout].set(bm.reshape(()).astype(jnp.float32))

    # Cast first (no-op if the previous layer already emitted bf16), then pad
    # spatially once, then fold the stride phases into the channel dim.
    # The fold is a pure (bitwise) reshape of the row-major NHWC buffer.
    xb = x_nhwc.astype(compute_dtype)
    xp = jnp.pad(xb, ((0, 0), (pad, pad), (pad, pad), (0, 0)))
    Hp, Wp = H + 2 * pad, W + 2 * pad
    Hp_e = pl.cdiv(Hp, stride) * stride
    Wp_e = pl.cdiv(Wp, stride) * stride
    if (Hp_e, Wp_e) != (Hp, Wp):                 # even out for the phase fold
        xp = jnp.pad(xp, ((0, 0), (0, Hp_e - Hp), (0, Wp_e - Wp), (0, 0)))
    xf = xp.reshape(N, Hp_e // stride, stride, Wp_e // stride, stride * Cin)

    tr = _pick_row_tile(Ho, Wo)
    grid = (N, Ho // tr)

    out = pl.pallas_call(
        functools.partial(_lwgated_fused_kernel, tr=tr, Wo=Wo, Cin=Cin,
                          Cout=Cout, stride=stride, ksize=kh, relu=relu),
        out_shape=jax.ShapeDtypeStruct((N, Ho, Wo, Cpad), out_dtype),
        grid_spec=pltpu.PrefetchScalarGridSpec(
            num_scalar_prefetch=0,
            grid=grid,
            in_specs=[
                # Whole (padded, folded) image per batch element; block index
                # is constant across row tiles so it stays resident in VMEM.
                pl.BlockSpec((1, Hp_e // stride, stride, Wp_e // stride,
                              stride * Cin),
                             lambda n, r: (n, 0, 0, 0, 0)),
                pl.BlockSpec((kh * kw, Cin, Cpad), lambda n, r: (0, 0, 0)),
                pl.BlockSpec((1, Cpad), lambda n, r: (0, 0)),
            ],
            out_specs=pl.BlockSpec((1, tr, Wo, Cpad),
                                   lambda n, r: (n, r, 0, 0)),
        ),
        compiler_params=pltpu.CompilerParams(
            dimension_semantics=("parallel", "parallel"),
            vmem_limit_bytes=32 * 1024 * 1024),   # explicit, safe on v5e/v6e/v7x
    )(xf, w_fused, b_fused)

    return out[..., :Cout]                        # drop mask/padding lanes once


# ---------------------------------------------------------------------------
# DownLWGated module (downsample -> conv1+ReLU -> conv2+ReLU)
# ---------------------------------------------------------------------------
def init_down_lwgated_params(key, in_channels, out_channels):
    def conv_params(k, cin, cout):
        k1, k2 = jax.random.split(k)
        fan_in = float(cin * 9)
        w = jax.random.normal(k1, (3, 3, cin, cout), jnp.float32) / jnp.sqrt(fan_in)
        b = jax.random.normal(k2, (cout,), jnp.float32) * 0.01
        return w, b

    keys = jax.random.split(key, 6)
    return {
        "ds_f": conv_params(keys[0], in_channels, in_channels),
        "ds_m": conv_params(keys[1], in_channels, 1),
        "c1_f": conv_params(keys[2], in_channels, out_channels),
        "c1_m": conv_params(keys[3], in_channels, 1),
        "c2_f": conv_params(keys[4], out_channels, out_channels),
        "c2_m": conv_params(keys[5], out_channels, 1),
    }


def down_lwgated(x_nchw, params):
    # NCHW (PyTorch convention) -> NHWC for the kernel path.
    x = jnp.transpose(x_nchw, (0, 2, 3, 1))

    # Intermediate layers store bf16 (halves HBM write traffic; numerically
    # identical to the reference, which casts each layer input to bf16).
    wf, bf = params["ds_f"]; wm, bm = params["ds_m"]
    x = lwgated_conv2d(x, wf, bf, wm, bm, stride=2, pad=1, relu=False,
                       out_dtype=jnp.bfloat16)

    wf, bf = params["c1_f"]; wm, bm = params["c1_m"]
    x = lwgated_conv2d(x, wf, bf, wm, bm, stride=1, pad=1, relu=True,
                       out_dtype=jnp.bfloat16)

    wf, bf = params["c2_f"]; wm, bm = params["c2_m"]
    x = lwgated_conv2d(x, wf, bf, wm, bm, stride=1, pad=1, relu=True,
                       out_dtype=jnp.float32)

    return jnp.transpose(x, (0, 3, 1, 2))         # back to NCHW


# ---------------------------------------------------------------------------
# Pure-JAX reference (lax.conv, same bf16 operand precision) for checking
# ---------------------------------------------------------------------------
def _ref_lwgated(x_nhwc, wf, bf, wm, bm, *, stride, pad, relu):
    dn = ("NHWC", "HWIO", "NHWC")
    xb = x_nhwc.astype(jnp.bfloat16)
    feat = jax.lax.conv_general_dilated(
        xb, wf.astype(jnp.bfloat16), (stride, stride),
        [(pad, pad), (pad, pad)], dimension_numbers=dn,
        preferred_element_type=jnp.float32) + bf
    logit = jax.lax.conv_general_dilated(
        xb, wm.astype(jnp.bfloat16), (stride, stride),
        [(pad, pad), (pad, pad)], dimension_numbers=dn,
        preferred_element_type=jnp.float32) + bm
    out = feat * jax.nn.sigmoid(logit)
    if relu:
        out = jnp.maximum(out, 0.0)
    return out


def down_lwgated_ref(x_nchw, params):
    x = jnp.transpose(x_nchw, (0, 2, 3, 1))
    wf, bf = params["ds_f"]; wm, bm = params["ds_m"]
    x = _ref_lwgated(x, wf, bf, wm, bm, stride=2, pad=1, relu=False)
    wf, bf = params["c1_f"]; wm, bm = params["c1_m"]
    x = _ref_lwgated(x, wf, bf, wm, bm, stride=1, pad=1, relu=True)
    wf, bf = params["c2_f"]; wm, bm = params["c2_m"]
    x = _ref_lwgated(x, wf, bf, wm, bm, stride=1, pad=1, relu=True)
    return jnp.transpose(x, (0, 3, 1, 2))


if __name__ == "__main__":
    key = jax.random.PRNGKey(0)
    k_x, k_p = jax.random.split(key)

    in_channels, out_channels = 4, 8
    x = jax.random.normal(k_x, (2, in_channels, 16, 16), jnp.float32)  # NCHW
    params = init_down_lwgated_params(k_p, in_channels, out_channels)

    fwd = jax.jit(down_lwgated)
    out = jax.block_until_ready(fwd(x, params))
    ref = jax.block_until_ready(down_lwgated_ref(x, params))

    assert out.shape == (2, out_channels, 8, 8), out.shape
    # bf16 MXU operands (matched in the reference) -> modest tolerance.
    err = float(jnp.max(jnp.abs(out - ref)))
    assert jnp.allclose(out, ref, atol=2e-2, rtol=2e-2), err
    print("KERNEL_OK")
</pallas_src>

<mosaic_0001>
module attributes {stable_mosaic.version = 11 : i64} {
  func.func @_lwgated_fused_kernel(%arg0: i32, %arg1: i32, %arg2: memref<1x9x2x9x8xbf16, #tpu.memory_space<vmem>>, %arg3: memref<9x4x128xbf16, #tpu.memory_space<vmem>>, %arg4: memref<1x128xf32, #tpu.memory_space<vmem>>, %arg5: memref<1x8x8x128xbf16, #tpu.memory_space<vmem>>) attributes {dimension_semantics = [#tpu.dimension_semantics<parallel>, #tpu.dimension_semantics<parallel>], iteration_bounds = array<i64: 2, 1>, scalar_prefetch = 0 : i64, scratch_operands = 0 : i64, tpu.core_type = #tpu.core_type<tc>, window_params = [{transform_indices = @transform_0, window_bounds = array<i64: 1, 9, 2, 9, 8>}, {pipeline_mode = #tpu.pipeline_mode<synchronous>, transform_indices = @transform_1, window_bounds = array<i64: 9, 4, 128>}, {pipeline_mode = #tpu.pipeline_mode<synchronous>, transform_indices = @transform_2, window_bounds = array<i64: 1, 128>}, {transform_indices = @transform_3, window_bounds = array<i64: 1, 8, 8, 128>}]} {
    %c8_i32 = arith.constant 8 : i32
    %0 = arith.muli %arg1, %c8_i32 : i32
    %1 = tpu.assume_multiple %0, 8 : i32
    %c0 = arith.constant 0 : index
    %c0_0 = arith.constant 0 : index
    %2 = vector.load %arg4[%c0, %c0_0] : memref<1x128xf32, #tpu.memory_space<vmem>>, vector<1x128xf32>
    %3 = vector.shape_cast %2 : vector<1x128xf32> to vector<1x128xf32>
    %4 = vector.broadcast %3 : vector<1x128xf32> to vector<64x128xf32>
    %c0_i32 = arith.constant 0 : i32
    %5 = arith.addi %1, %c0_i32 : i32
    %c0_1 = arith.constant 0 : index
    %6 = arith.index_cast %5 : i32 to index
    %c0_2 = arith.constant 0 : index
    %c0_3 = arith.constant 0 : index
    %c0_4 = arith.constant 0 : index
    %7 = vector.load %arg2[%c0_1, %6, %c0_2, %c0_3, %c0_4] : memref<1x9x2x9x8xbf16, #tpu.memory_space<vmem>>, vector<1x8x1x8x4xbf16>
    %8 = vector.shape_cast %7 : vector<1x8x1x8x4xbf16> to vector<8x8x4xbf16>
    %9 = vector.shape_cast %8 : vector<8x8x4xbf16> to vector<64x4xbf16>
    %c0_5 = arith.constant 0 : index
    %c0_6 = arith.constant 0 : index
    %c0_7 = arith.constant 0 : index
    %10 = vector.load %arg3[%c0_5, %c0_6, %c0_7] : memref<9x4x128xbf16, #tpu.memory_space<vmem>>, vector<1x4x128xbf16>
    %11 = vector.shape_cast %10 : vector<1x4x128xbf16> to vector<4x128xbf16>
    %cst = arith.constant dense<0.000000e+00> : vector<64x128xf32>
    %12 = tpu.matmul %9, %11, %cst {dimension_numbers = #tpu.dot_dimension_numbers<[1], [0], [0], [1], [0, 0, 1, 1], [], []>} : vector<64x4xbf16>, vector<4x128xbf16>, vector<64x128xf32> -> vector<64x128xf32>
    %13 = arith.addf %4, %12 : vector<64x128xf32>
    %c0_i32_8 = arith.constant 0 : i32
    %14 = arith.addi %1, %c0_i32_8 : i32
    %c0_9 = arith.constant 0 : index
    %15 = arith.index_cast %14 : i32 to index
    %c0_10 = arith.constant 0 : index
    %c0_11 = arith.constant 0 : index
    %c4 = arith.constant 4 : index
    %16 = vector.load %arg2[%c0_9, %15, %c0_10, %c0_11, %c4] : memref<1x9x2x9x8xbf16, #tpu.memory_space<vmem>>, vector<1x8x1x8x4xbf16>
    %17 = vector.shape_cast %16 : vector<1x8x1x8x4xbf16> to vector<8x8x4xbf16>
    %18 = vector.shape_cast %17 : vector<8x8x4xbf16> to vector<64x4xbf16>
    %c1 = arith.constant 1 : index
    %c0_12 = arith.constant 0 : index
    %c0_13 = arith.constant 0 : index
    %19 = vector.load %arg3[%c1, %c0_12, %c0_13] : memref<9x4x128xbf16, #tpu.memory_space<vmem>>, vector<1x4x128xbf16>
    %20 = vector.shape_cast %19 : vector<1x4x128xbf16> to vector<4x128xbf16>
    %cst_14 = arith.constant dense<0.000000e+00> : vector<64x128xf32>
    %21 = tpu.matmul %18, %20, %cst_14 {dimension_numbers = #tpu.dot_dimension_numbers<[1], [0], [0], [1], [0, 0, 1, 1], [], []>} : vector<64x4xbf16>, vector<4x128xbf16>, vector<64x128xf32> -> vector<64x128xf32>
    %22 = arith.addf %13, %21 : vector<64x128xf32>
    %c0_i32_15 = arith.constant 0 : i32
    %23 = arith.addi %1, %c0_i32_15 : i32
    %c0_16 = arith.constant 0 : index
    %24 = arith.index_cast %23 : i32 to index
    %c0_17 = arith.constant 0 : index
    %c1_18 = arith.constant 1 : index
    %c0_19 = arith.constant 0 : index
    %25 = vector.load %arg2[%c0_16, %24, %c0_17, %c1_18, %c0_19] : memref<1x9x2x9x8xbf16, #tpu.memory_space<vmem>>, vector<1x8x1x8x4xbf16>
    %26 = vector.shape_cast %25 : vector<1x8x1x8x4xbf16> to vector<8x8x4xbf16>
    %27 = vector.shape_cast %26 : vector<8x8x4xbf16> to vector<64x4xbf16>
    %c2 = arith.constant 2 : index
    %c0_20 = arith.constant 0 : index
    %c0_21 = arith.constant 0 : index
    %28 = vector.load %arg3[%c2, %c0_20, %c0_21] : memref<9x4x128xbf16, #tpu.memory_space<vmem>>, vector<1x4x128xbf16>
    %29 = vector.shape_cast %28 : vector<1x4x128xbf16> to vector<4x128xbf16>
    %cst_22 = arith.constant dense<0.000000e+00> : vector<64x128xf32>
    %30 = tpu.matmul %27, %29, %cst_22 {dimension_numbers = #tpu.dot_dimension_numbers<[1], [0], [0], [1], [0, 0, 1, 1], [], []>} : vector<64x4xbf16>, vector<4x128xbf16>, vector<64x128xf32> -> vector<64x128xf32>
    %31 = arith.addf %22, %30 : vector<64x128xf32>
    %c0_i32_23 = arith.constant 0 : i32
    %32 = arith.addi %1, %c0_i32_23 : i32
    %c0_24 = arith.constant 0 : index
    %33 = arith.index_cast %32 : i32 to index
    %c1_25 = arith.constant 1 : index
    %c0_26 = arith.constant 0 : index
    %c0_27 = arith.constant 0 : index
    %34 = vector.load %arg2[%c0_24, %33, %c1_25, %c0_26, %c0_27] : memref<1x9x2x9x8xbf16, #tpu.memory_space<vmem>>, vector<1x8x1x8x4xbf16>
    %35 = vector.shape_cast %34 : vector<1x8x1x8x4xbf16> to vector<8x8x4xbf16>
    %36 = vector.shape_cast %35 : vector<8x8x4xbf16> to vector<64x4xbf16>
    %c3 = arith.constant 3 : index
    %c0_28 = arith.constant 0 : index
    %c0_29 = arith.constant 0 : index
    %37 = vector.load %arg3[%c3, %c0_28, %c0_29] : memref<9x4x128xbf16, #tpu.memory_space<vmem>>, vector<1x4x128xbf16>
    %38 = vector.shape_cast %37 : vector<1x4x128xbf16> to vector<4x128xbf16>
    %cst_30 = arith.constant dense<0.000000e+00> : vector<64x128xf32>
    %39 = tpu.matmul %36, %38, %cst_30 {dimension_numbers = #tpu.dot_dimension_numbers<[1], [0], [0], [1], [0, 0, 1, 1], [], []>} : vector<64x4xbf16>, vector<4x128xbf16>, vector<64x128xf32> -> vector<64x128xf32>
    %40 = arith.addf %31, %39 : vector<64x128xf32>
    %c0_i32_31 = arith.constant 0 : i32
    %41 = arith.addi %1, %c0_i32_31 : i32
    %c0_32 = arith.constant 0 : index
    %42 = arith.index_cast %41 : i32 to index
    %c1_33 = arith.constant 1 : index
    %c0_34 = arith.constant 0 : index
    %c4_35 = arith.constant 4 : index
    %43 = vector.load %arg2[%c0_32, %42, %c1_33, %c0_34, %c4_35] : memref<1x9x2x9x8xbf16, #tpu.memory_space<vmem>>, vector<1x8x1x8x4xbf16>
    %44 = vector.shape_cast %43 : vector<1x8x1x8x4xbf16> to vector<8x8x4xbf16>
    %45 = vector.shape_cast %44 : vector<8x8x4xbf16> to vector<64x4xbf16>
    %c4_36 = arith.constant 4 : index
    %c0_37 = arith.constant 0 : index
    %c0_38 = arith.constant 0 : index
    %46 = vector.load %arg3[%c4_36, %c0_37, %c0_38] : memref<9x4x128xbf16, #tpu.memory_space<vmem>>, vector<1x4x128xbf16>
    %47 = vector.shape_cast %46 : vector<1x4x128xbf16> to vector<4x128xbf16>
    %cst_39 = arith.constant dense<0.000000e+00> : vector<64x128xf32>
    %48 = tpu.matmul %45, %47, %cst_39 {dimension_numbers = #tpu.dot_dimension_numbers<[1], [0], [0], [1], [0, 0, 1, 1], [], []>} : vector<64x4xbf16>, vector<4x128xbf16>, vector<64x128xf32> -> vector<64x128xf32>
    %49 = arith.addf %40, %48 : vector<64x128xf32>
    %c0_i32_40 = arith.constant 0 : i32
    %50 = arith.addi %1, %c0_i32_40 : i32
    %c0_41 = arith.constant 0 : index
    %51 = arith.index_cast %50 : i32 to index
    %c1_42 = arith.constant 1 : index
    %c1_43 = arith.constant 1 : index
    %c0_44 = arith.constant 0 : index
    %52 = vector.load %arg2[%c0_41, %51, %c1_42, %c1_43, %c0_44] : memref<1x9x2x9x8xbf16, #tpu.memory_space<vmem>>, vector<1x8x1x8x4xbf16>
    %53 = vector.shape_cast %52 : vector<1x8x1x8x4xbf16> to vector<8x8x4xbf16>
    %54 = vector.shape_cast %53 : vector<8x8x4xbf16> to vector<64x4xbf16>
    %c5 = arith.constant 5 : index
    %c0_45 = arith.constant 0 : index
    %c0_46 = arith.constant 0 : index
    %55 = vector.load %arg3[%c5, %c0_45, %c0_46] : memref<9x4x128xbf16, #tpu.memory_space<vmem>>, vector<1x4x128xbf16>
    %56 = vector.shape_cast %55 : vector<1x4x128xbf16> to vector<4x128xbf16>
    %cst_47 = arith.constant dense<0.000000e+00> : vector<64x128xf32>
    %57 = tpu.matmul %54, %56, %cst_47 {dimension_numbers = #tpu.dot_dimension_numbers<[1], [0], [0], [1], [0, 0, 1, 1], [], []>} : vector<64x4xbf16>, vector<4x128xbf16>, vector<64x128xf32> -> vector<64x128xf32>
    %58 = arith.addf %49, %57 : vector<64x128xf32>
    %c1_i32 = arith.constant 1 : i32
    %59 = arith.addi %1, %c1_i32 : i32
    %c0_48 = arith.constant 0 : index
    %60 = arith.index_cast %59 : i32 to index
    %c0_49 = arith.constant 0 : index
    %c0_50 = arith.constant 0 : index
    %c0_51 = arith.constant 0 : index
    %61 = vector.load %arg2[%c0_48, %60, %c0_49, %c0_50, %c0_51] : memref<1x9x2x9x8xbf16, #tpu.memory_space<vmem>>, vector<1x8x1x8x4xbf16>
    %62 = vector.shape_cast %61 : vector<1x8x1x8x4xbf16> to vector<8x8x4xbf16>
    %63 = vector.shape_cast %62 : vector<8x8x4xbf16> to vector<64x4xbf16>
    %c6 = arith.constant 6 : index
    %c0_52 = arith.constant 0 : index
    %c0_53 = arith.constant 0 : index
    %64 = vector.load %arg3[%c6, %c0_52, %c0_53] : memref<9x4x128xbf16, #tpu.memory_space<vmem>>, vector<1x4x128xbf16>
    %65 = vector.shape_cast %64 : vector<1x4x128xbf16> to vector<4x128xbf16>
    %cst_54 = arith.constant dense<0.000000e+00> : vector<64x128xf32>
    %66 = tpu.matmul %63, %65, %cst_54 {dimension_numbers = #tpu.dot_dimension_numbers<[1], [0], [0], [1], [0, 0, 1, 1], [], []>} : vector<64x4xbf16>, vector<4x128xbf16>, vector<64x128xf32> -> vector<64x128xf32>
    %67 = arith.addf %58, %66 : vector<64x128xf32>
    %c1_i32_55 = arith.constant 1 : i32
    %68 = arith.addi %1, %c1_i32_55 : i32
    %c0_56 = arith.constant 0 : index
    %69 = arith.index_cast %68 : i32 to index
    %c0_57 = arith.constant 0 : index
    %c0_58 = arith.constant 0 : index
    %c4_59 = arith.constant 4 : index
    %70 = vector.load %arg2[%c0_56, %69, %c0_57, %c0_58, %c4_59] : memref<1x9x2x9x8xbf16, #tpu.memory_space<vmem>>, vector<1x8x1x8x4xbf16>
    %71 = vector.shape_cast %70 : vector<1x8x1x8x4xbf16> to vector<8x8x4xbf16>
    %72 = vector.shape_cast %71 : vector<8x8x4xbf16> to vector<64x4xbf16>
    %c7 = arith.constant 7 : index
    %c0_60 = arith.constant 0 : index
    %c0_61 = arith.constant 0 : index
    %73 = vector.load %arg3[%c7, %c0_60, %c0_61] : memref<9x4x128xbf16, #tpu.memory_space<vmem>>, vector<1x4x128xbf16>
    %74 = vector.shape_cast %73 : vector<1x4x128xbf16> to vector<4x128xbf16>
    %cst_62 = arith.constant dense<0.000000e+00> : vector<64x128xf32>
    %75 = tpu.matmul %72, %74, %cst_62 {dimension_numbers = #tpu.dot_dimension_numbers<[1], [0], [0], [1], [0, 0, 1, 1], [], []>} : vector<64x4xbf16>, vector<4x128xbf16>, vector<64x128xf32> -> vector<64x128xf32>
    %76 = arith.addf %67, %75 : vector<64x128xf32>
    %c1_i32_63 = arith.constant 1 : i32
    %77 = arith.addi %1, %c1_i32_63 : i32
    %c0_64 = arith.constant 0 : index
    %78 = arith.index_cast %77 : i32 to index
    %c0_65 = arith.constant 0 : index
    %c1_66 = arith.constant 1 : index
    %c0_67 = arith.constant 0 : index
    %79 = vector.load %arg2[%c0_64, %78, %c0_65, %c1_66, %c0_67] : memref<1x9x2x9x8xbf16, #tpu.memory_space<vmem>>, vector<1x8x1x8x4xbf16>
    %80 = vector.shape_cast %79 : vector<1x8x1x8x4xbf16> to vector<8x8x4xbf16>
    %81 = vector.shape_cast %80 : vector<8x8x4xbf16> to vector<64x4xbf16>
    %c8 = arith.constant 8 : index
    %c0_68 = arith.constant 0 : index
    %c0_69 = arith.constant 0 : index
    %82 = vector.load %arg3[%c8, %c0_68, %c0_69] : memref<9x4x128xbf16, #tpu.memory_space<vmem>>, vector<1x4x128xbf16>
    %83 = vector.shape_cast %82 : vector<1x4x128xbf16> to vector<4x128xbf16>
    %cst_70 = arith.constant dense<0.000000e+00> : vector<64x128xf32>
    %84 = tpu.matmul %81, %83, %cst_70 {dimension_numbers = #tpu.dot_dimension_numbers<[1], [0], [0], [1], [0, 0, 1, 1], [], []>} : vector<64x4xbf16>, vector<4x128xbf16>, vector<64x128xf32> -> vector<64x128xf32>
    %85 = arith.addf %76, %84 : vector<64x128xf32>
    %86 = vector.extract_strided_slice %85 {offsets = [0, 4], sizes = [64, 1], strides = [1, 1]} : vector<64x128xf32> to vector<64x1xf32>
    %87 = arith.negf %86 : vector<64x1xf32>
    %88 = math.exp %87 : vector<64x1xf32>
    %cst_71 = arith.constant 1.000000e+00 : f32
    %89 = vector.broadcast %cst_71 : f32 to vector<64x1xf32>
    %90 = arith.addf %89, %88 : vector<64x1xf32>
    %91 = arith.divf %89, %90 : vector<64x1xf32>
    %92 = vector.broadcast %91 : vector<64x1xf32> to vector<64x128xf32>
    %93 = arith.mulf %85, %92 : vector<64x128xf32>
    %94 = vector.shape_cast %93 : vector<64x128xf32> to vector<1x8x8x128xf32>
    %95 = arith.truncf %94 : vector<1x8x8x128xf32> to vector<1x8x8x128xbf16>
    %c0_72 = arith.constant 0 : index
    %c0_73 = arith.constant 0 : index
    %c0_74 = arith.constant 0 : index
    %c0_75 = arith.constant 0 : index
    %96 = vector.load %arg5[%c0_72, %c0_73, %c0_74, %c0_75] : memref<1x8x8x128xbf16, #tpu.memory_space<vmem>>, vector<1x8x8x128xbf16>
    tpu.vector_store %arg5[%c0_72, %c0_73, %c0_74, %c0_75], %95 {strides = array<i32>} : memref<1x8x8x128xbf16, #tpu.memory_space<vmem>>, vector<1x8x8x128xbf16>,
    return
  }
  func.func @transform_0(%arg0: i32, %arg1: i32) -> (i32, i32, i32, i32, i32) {
    %c0_i32 = arith.constant 0 : i32
    %c0_i32_0 = arith.constant 0 : i32
    %c0_i32_1 = arith.constant 0 : i32
    %c0_i32_2 = arith.constant 0 : i32
    %c0_i32_3 = arith.constant 0 : i32
    return %arg0, %c0_i32, %c0_i32_0, %c0_i32_1, %c0_i32_2 : i32, i32, i32, i32, i32
  }
  func.func @transform_1(%arg0: i32, %arg1: i32) -> (i32, i32, i32) {
    %c0_i32 = arith.constant 0 : i32
    %c0_i32_0 = arith.constant 0 : i32
    %c0_i32_1 = arith.constant 0 : i32
    %c0_i32_2 = arith.constant 0 : i32
    return %c0_i32, %c0_i32_0, %c0_i32_1 : i32, i32, i32
  }
  func.func @transform_2(%arg0: i32, %arg1: i32) -> (i32, i32) {
    %c0_i32 = arith.constant 0 : i32
    %c0_i32_0 = arith.constant 0 : i32
    %c0_i32_1 = arith.constant 0 : i32
    return %c0_i32, %c0_i32_0 : i32, i32
  }
  func.func @transform_3(%arg0: i32, %arg1: i32) -> (i32, i32, i32, i32) {
    %c0_i32 = arith.constant 0 : i32
    %c0_i32_0 = arith.constant 0 : i32
    %c0_i32_1 = arith.constant 0 : i32
    return %arg0, %arg1, %c0_i32, %c0_i32_0 : i32, i32, i32, i32
  }
}

module attributes {stable_mosaic.version = 11 : i64} {
  func.func @_lwgated_fused_kernel(%arg0: i32, %arg1: i32, %arg2: memref<1x10x1x10x4xbf16, #tpu.memory_space<vmem>>, %arg3: memref<9x4x128xbf16, #tpu.memory_space<vmem>>, %arg4: memref<1x128xf32, #tpu.memory_space<vmem>>, %arg5: memref<1x8x8x128xbf16, #tpu.memory_space<vmem>>) attributes {dimension_semantics = [#tpu.dimension_semantics<parallel>, #tpu.dimension_semantics<parallel>], iteration_bounds = array<i64: 2, 1>, scalar_prefetch = 0 : i64, scratch_operands = 0 : i64, tpu.core_type = #tpu.core_type<tc>, window_params = [{transform_indices = @transform_0, window_bounds = array<i64: 1, 10, 1, 10, 4>}, {pipeline_mode = #tpu.pipeline_mode<synchronous>, transform_indices = @transform_1, window_bounds = array<i64: 9, 4, 128>}, {pipeline_mode = #tpu.pipeline_mode<synchronous>, transform_indices = @transform_2, window_bounds = array<i64: 1, 128>}, {transform_indices = @transform_3, window_bounds = array<i64: 1, 8, 8, 128>}]} {
    %c8_i32 = arith.constant 8 : i32
    %0 = arith.muli %arg1, %c8_i32 : i32
    %1 = tpu.assume_multiple %0, 8 : i32
    %c0 = arith.constant 0 : index
    %c0_0 = arith.constant 0 : index
    %2 = vector.load %arg4[%c0, %c0_0] : memref<1x128xf32, #tpu.memory_space<vmem>>, vector<1x128xf32>
    %3 = vector.shape_cast %2 : vector<1x128xf32> to vector<1x128xf32>
    %4 = vector.broadcast %3 : vector<1x128xf32> to vector<64x128xf32>
    %c0_i32 = arith.constant 0 : i32
    %5 = arith.addi %1, %c0_i32 : i32
    %c0_1 = arith.constant 0 : index
    %6 = arith.index_cast %5 : i32 to index
    %c0_2 = arith.constant 0 : index
    %c0_3 = arith.constant 0 : index
    %c0_4 = arith.constant 0 : index
    %7 = vector.load %arg2[%c0_1, %6, %c0_2, %c0_3, %c0_4] : memref<1x10x1x10x4xbf16, #tpu.memory_space<vmem>>, vector<1x8x1x8x4xbf16>
    %8 = vector.shape_cast %7 : vector<1x8x1x8x4xbf16> to vector<8x8x4xbf16>
    %9 = vector.shape_cast %8 : vector<8x8x4xbf16> to vector<64x4xbf16>
    %c0_5 = arith.constant 0 : index
    %c0_6 = arith.constant 0 : index
    %c0_7 = arith.constant 0 : index
    %10 = vector.load %arg3[%c0_5, %c0_6, %c0_7] : memref<9x4x128xbf16, #tpu.memory_space<vmem>>, vector<1x4x128xbf16>
    %11 = vector.shape_cast %10 : vector<1x4x128xbf16> to vector<4x128xbf16>
    %cst = arith.constant dense<0.000000e+00> : vector<64x128xf32>
    %12 = tpu.matmul %9, %11, %cst {dimension_numbers = #tpu.dot_dimension_numbers<[1], [0], [0], [1], [0, 0, 1, 1], [], []>} : vector<64x4xbf16>, vector<4x128xbf16>, vector<64x128xf32> -> vector<64x128xf32>
    %13 = arith.addf %4, %12 : vector<64x128xf32>
    %c0_i32_8 = arith.constant 0 : i32
    %14 = arith.addi %1, %c0_i32_8 : i32
    %c0_9 = arith.constant 0 : index
    %15 = arith.index_cast %14 : i32 to index
    %c0_10 = arith.constant 0 : index
    %c1 = arith.constant 1 : index
    %c0_11 = arith.constant 0 : index
    %16 = vector.load %arg2[%c0_9, %15, %c0_10, %c1, %c0_11] : memref<1x10x1x10x4xbf16, #tpu.memory_space<vmem>>, vector<1x8x1x8x4xbf16>
    %17 = vector.shape_cast %16 : vector<1x8x1x8x4xbf16> to vector<8x8x4xbf16>
    %18 = vector.shape_cast %17 : vector<8x8x4xbf16> to vector<64x4xbf16>
    %c1_12 = arith.constant 1 : index
    %c0_13 = arith.constant 0 : index
    %c0_14 = arith.constant 0 : index
    %19 = vector.load %arg3[%c1_12, %c0_13, %c0_14] : memref<9x4x128xbf16, #tpu.memory_space<vmem>>, vector<1x4x128xbf16>
    %20 = vector.shape_cast %19 : vector<1x4x128xbf16> to vector<4x128xbf16>
    %cst_15 = arith.constant dense<0.000000e+00> : vector<64x128xf32>
    %21 = tpu.matmul %18, %20, %cst_15 {dimension_numbers = #tpu.dot_dimension_numbers<[1], [0], [0], [1], [0, 0, 1, 1], [], []>} : vector<64x4xbf16>, vector<4x128xbf16>, vector<64x128xf32> -> vector<64x128xf32>
    %22 = arith.addf %13, %21 : vector<64x128xf32>
    %c0_i32_16 = arith.constant 0 : i32
    %23 = arith.addi %1, %c0_i32_16 : i32
    %c0_17 = arith.constant 0 : index
    %24 = arith.index_cast %23 : i32 to index
    %c0_18 = arith.constant 0 : index
    %c2 = arith.constant 2 : index
    %c0_19 = arith.constant 0 : index
    %25 = vector.load %arg2[%c0_17, %24, %c0_18, %c2, %c0_19] : memref<1x10x1x10x4xbf16, #tpu.memory_space<vmem>>, vector<1x8x1x8x4xbf16>
    %26 = vector.shape_cast %25 : vector<1x8x1x8x4xbf16> to vector<8x8x4xbf16>
    %27 = vector.shape_cast %26 : vector<8x8x4xbf16> to vector<64x4xbf16>
    %c2_20 = arith.constant 2 : index
    %c0_21 = arith.constant 0 : index
    %c0_22 = arith.constant 0 : index
    %28 = vector.load %arg3[%c2_20, %c0_21, %c0_22] : memref<9x4x128xbf16, #tpu.memory_space<vmem>>, vector<1x4x128xbf16>
    %29 = vector.shape_cast %28 : vector<1x4x128xbf16> to vector<4x128xbf16>
    %cst_23 = arith.constant dense<0.000000e+00> : vector<64x128xf32>
    %30 = tpu.matmul %27, %29, %cst_23 {dimension_numbers = #tpu.dot_dimension_numbers<[1], [0], [0], [1], [0, 0, 1, 1], [], []>} : vector<64x4xbf16>, vector<4x128xbf16>, vector<64x128xf32> -> vector<64x128xf32>
    %31 = arith.addf %22, %30 : vector<64x128xf32>
    %c1_i32 = arith.constant 1 : i32
    %32 = arith.addi %1, %c1_i32 : i32
    %c0_24 = arith.constant 0 : index
    %33 = arith.index_cast %32 : i32 to index
    %c0_25 = arith.constant 0 : index
    %c0_26 = arith.constant 0 : index
    %c0_27 = arith.constant 0 : index
    %34 = vector.load %arg2[%c0_24, %33, %c0_25, %c0_26, %c0_27] : memref<1x10x1x10x4xbf16, #tpu.memory_space<vmem>>, vector<1x8x1x8x4xbf16>
    %35 = vector.shape_cast %34 : vector<1x8x1x8x4xbf16> to vector<8x8x4xbf16>
    %36 = vector.shape_cast %35 : vector<8x8x4xbf16> to vector<64x4xbf16>
    %c3 = arith.constant 3 : index
    %c0_28 = arith.constant 0 : index
    %c0_29 = arith.constant 0 : index
    %37 = vector.load %arg3[%c3, %c0_28, %c0_29] : memref<9x4x128xbf16, #tpu.memory_space<vmem>>, vector<1x4x128xbf16>
    %38 = vector.shape_cast %37 : vector<1x4x128xbf16> to vector<4x128xbf16>
    %cst_30 = arith.constant dense<0.000000e+00> : vector<64x128xf32>
    %39 = tpu.matmul %36, %38, %cst_30 {dimension_numbers = #tpu.dot_dimension_numbers<[1], [0], [0], [1], [0, 0, 1, 1], [], []>} : vector<64x4xbf16>, vector<4x128xbf16>, vector<64x128xf32> -> vector<64x128xf32>
    %40 = arith.addf %31, %39 : vector<64x128xf32>
    %c1_i32_31 = arith.constant 1 : i32
    %41 = arith.addi %1, %c1_i32_31 : i32
    %c0_32 = arith.constant 0 : index
    %42 = arith.index_cast %41 : i32 to index
    %c0_33 = arith.constant 0 : index
    %c1_34 = arith.constant 1 : index
    %c0_35 = arith.constant 0 : index
    %43 = vector.load %arg2[%c0_32, %42, %c0_33, %c1_34, %c0_35] : memref<1x10x1x10x4xbf16, #tpu.memory_space<vmem>>, vector<1x8x1x8x4xbf16>
    %44 = vector.shape_cast %43 : vector<1x8x1x8x4xbf16> to vector<8x8x4xbf16>
    %45 = vector.shape_cast %44 : vector<8x8x4xbf16> to vector<64x4xbf16>
    %c4 = arith.constant 4 : index
    %c0_36 = arith.constant 0 : index
    %c0_37 = arith.constant 0 : index
    %46 = vector.load %arg3[%c4, %c0_36, %c0_37] : memref<9x4x128xbf16, #tpu.memory_space<vmem>>, vector<1x4x128xbf16>
    %47 = vector.shape_cast %46 : vector<1x4x128xbf16> to vector<4x128xbf16>
    %cst_38 = arith.constant dense<0.000000e+00> : vector<64x128xf32>
    %48 = tpu.matmul %45, %47, %cst_38 {dimension_numbers = #tpu.dot_dimension_numbers<[1], [0], [0], [1], [0, 0, 1, 1], [], []>} : vector<64x4xbf16>, vector<4x128xbf16>, vector<64x128xf32> -> vector<64x128xf32>
    %49 = arith.addf %40, %48 : vector<64x128xf32>
    %c1_i32_39 = arith.constant 1 : i32
    %50 = arith.addi %1, %c1_i32_39 : i32
    %c0_40 = arith.constant 0 : index
    %51 = arith.index_cast %50 : i32 to index
    %c0_41 = arith.constant 0 : index
    %c2_42 = arith.constant 2 : index
    %c0_43 = arith.constant 0 : index
    %52 = vector.load %arg2[%c0_40, %51, %c0_41, %c2_42, %c0_43] : memref<1x10x1x10x4xbf16, #tpu.memory_space<vmem>>, vector<1x8x1x8x4xbf16>
    %53 = vector.shape_cast %52 : vector<1x8x1x8x4xbf16> to vector<8x8x4xbf16>
    %54 = vector.shape_cast %53 : vector<8x8x4xbf16> to vector<64x4xbf16>
    %c5 = arith.constant 5 : index
    %c0_44 = arith.constant 0 : index
    %c0_45 = arith.constant 0 : index
    %55 = vector.load %arg3[%c5, %c0_44, %c0_45] : memref<9x4x128xbf16, #tpu.memory_space<vmem>>, vector<1x4x128xbf16>
    %56 = vector.shape_cast %55 : vector<1x4x128xbf16> to vector<4x128xbf16>
    %cst_46 = arith.constant dense<0.000000e+00> : vector<64x128xf32>
    %57 = tpu.matmul %54, %56, %cst_46 {dimension_numbers = #tpu.dot_dimension_numbers<[1], [0], [0], [1], [0, 0, 1, 1], [], []>} : vector<64x4xbf16>, vector<4x128xbf16>, vector<64x128xf32> -> vector<64x128xf32>
    %58 = arith.addf %49, %57 : vector<64x128xf32>
    %c2_i32 = arith.constant 2 : i32
    %59 = arith.addi %1, %c2_i32 : i32
    %c0_47 = arith.constant 0 : index
    %60 = arith.index_cast %59 : i32 to index
    %c0_48 = arith.constant 0 : index
    %c0_49 = arith.constant 0 : index
    %c0_50 = arith.constant 0 : index
    %61 = vector.load %arg2[%c0_47, %60, %c0_48, %c0_49, %c0_50] : memref<1x10x1x10x4xbf16, #tpu.memory_space<vmem>>, vector<1x8x1x8x4xbf16>
    %62 = vector.shape_cast %61 : vector<1x8x1x8x4xbf16> to vector<8x8x4xbf16>
    %63 = vector.shape_cast %62 : vector<8x8x4xbf16> to vector<64x4xbf16>
    %c6 = arith.constant 6 : index
    %c0_51 = arith.constant 0 : index
    %c0_52 = arith.constant 0 : index
    %64 = vector.load %arg3[%c6, %c0_51, %c0_52] : memref<9x4x128xbf16, #tpu.memory_space<vmem>>, vector<1x4x128xbf16>
    %65 = vector.shape_cast %64 : vector<1x4x128xbf16> to vector<4x128xbf16>
    %cst_53 = arith.constant dense<0.000000e+00> : vector<64x128xf32>
    %66 = tpu.matmul %63, %65, %cst_53 {dimension_numbers = #tpu.dot_dimension_numbers<[1], [0], [0], [1], [0, 0, 1, 1], [], []>} : vector<64x4xbf16>, vector<4x128xbf16>, vector<64x128xf32> -> vector<64x128xf32>
    %67 = arith.addf %58, %66 : vector<64x128xf32>
    %c2_i32_54 = arith.constant 2 : i32
    %68 = arith.addi %1, %c2_i32_54 : i32
    %c0_55 = arith.constant 0 : index
    %69 = arith.index_cast %68 : i32 to index
    %c0_56 = arith.constant 0 : index
    %c1_57 = arith.constant 1 : index
    %c0_58 = arith.constant 0 : index
    %70 = vector.load %arg2[%c0_55, %69, %c0_56, %c1_57, %c0_58] : memref<1x10x1x10x4xbf16, #tpu.memory_space<vmem>>, vector<1x8x1x8x4xbf16>
    %71 = vector.shape_cast %70 : vector<1x8x1x8x4xbf16> to vector<8x8x4xbf16>
    %72 = vector.shape_cast %71 : vector<8x8x4xbf16> to vector<64x4xbf16>
    %c7 = arith.constant 7 : index
    %c0_59 = arith.constant 0 : index
    %c0_60 = arith.constant 0 : index
    %73 = vector.load %arg3[%c7, %c0_59, %c0_60] : memref<9x4x128xbf16, #tpu.memory_space<vmem>>, vector<1x4x128xbf16>
    %74 = vector.shape_cast %73 : vector<1x4x128xbf16> to vector<4x128xbf16>
    %cst_61 = arith.constant dense<0.000000e+00> : vector<64x128xf32>
    %75 = tpu.matmul %72, %74, %cst_61 {dimension_numbers = #tpu.dot_dimension_numbers<[1], [0], [0], [1], [0, 0, 1, 1], [], []>} : vector<64x4xbf16>, vector<4x128xbf16>, vector<64x128xf32> -> vector<64x128xf32>
    %76 = arith.addf %67, %75 : vector<64x128xf32>
    %c2_i32_62 = arith.constant 2 : i32
    %77 = arith.addi %1, %c2_i32_62 : i32
    %c0_63 = arith.constant 0 : index
    %78 = arith.index_cast %77 : i32 to index
    %c0_64 = arith.constant 0 : index
    %c2_65 = arith.constant 2 : index
    %c0_66 = arith.constant 0 : index
    %79 = vector.load %arg2[%c0_63, %78, %c0_64, %c2_65, %c0_66] : memref<1x10x1x10x4xbf16, #tpu.memory_space<vmem>>, vector<1x8x1x8x4xbf16>
    %80 = vector.shape_cast %79 : vector<1x8x1x8x4xbf16> to vector<8x8x4xbf16>
    %81 = vector.shape_cast %80 : vector<8x8x4xbf16> to vector<64x4xbf16>
    %c8 = arith.constant 8 : index
    %c0_67 = arith.constant 0 : index
    %c0_68 = arith.constant 0 : index
    %82 = vector.load %arg3[%c8, %c0_67, %c0_68] : memref<9x4x128xbf16, #tpu.memory_space<vmem>>, vector<1x4x128xbf16>
    %83 = vector.shape_cast %82 : vector<1x4x128xbf16> to vector<4x128xbf16>
    %cst_69 = arith.constant dense<0.000000e+00> : vector<64x128xf32>
    %84 = tpu.matmul %81, %83, %cst_69 {dimension_numbers = #tpu.dot_dimension_numbers<[1], [0], [0], [1], [0, 0, 1, 1], [], []>} : vector<64x4xbf16>, vector<4x128xbf16>, vector<64x128xf32> -> vector<64x128xf32>
    %85 = arith.addf %76, %84 : vector<64x128xf32>
    %86 = vector.extract_strided_slice %85 {offsets = [0, 8], sizes = [64, 1], strides = [1, 1]} : vector<64x128xf32> to vector<64x1xf32>
    %87 = arith.negf %86 : vector<64x1xf32>
    %88 = math.exp %87 : vector<64x1xf32>
    %cst_70 = arith.constant 1.000000e+00 : f32
    %89 = vector.broadcast %cst_70 : f32 to vector<64x1xf32>
    %90 = arith.addf %89, %88 : vector<64x1xf32>
    %91 = arith.divf %89, %90 : vector<64x1xf32>
    %92 = vector.broadcast %91 : vector<64x1xf32> to vector<64x128xf32>
    %93 = arith.mulf %85, %92 : vector<64x128xf32>
    %cst_71 = arith.constant 0.000000e+00 : f32
    %94 = vector.broadcast %cst_71 : f32 to vector<64x128xf32>
    %95 = arith.maximumf %93, %94 : vector<64x128xf32>
    %96 = vector.shape_cast %95 : vector<64x128xf32> to vector<1x8x8x128xf32>
    %97 = arith.truncf %96 : vector<1x8x8x128xf32> to vector<1x8x8x128xbf16>
    %c0_72 = arith.constant 0 : index
    %c0_73 = arith.constant 0 : index
    %c0_74 = arith.constant 0 : index
    %c0_75 = arith.constant 0 : index
    %98 = vector.load %arg5[%c0_72, %c0_73, %c0_74, %c0_75] : memref<1x8x8x128xbf16, #tpu.memory_space<vmem>>, vector<1x8x8x128xbf16>
    tpu.vector_store %arg5[%c0_72, %c0_73, %c0_74, %c0_75], %97 {strides = array<i32>} : memref<1x8x8x128xbf16, #tpu.memory_space<vmem>>, vector<1x8x8x128xbf16>,
    return
  }
  func.func @transform_0(%arg0: i32, %arg1: i32) -> (i32, i32, i32, i32, i32) {
    %c0_i32 = arith.constant 0 : i32
    %c0_i32_0 = arith.constant 0 : i32
    %c0_i32_1 = arith.constant 0 : i32
    %c0_i32_2 = arith.constant 0 : i32
    %c0_i32_3 = arith.constant 0 : i32
    return %arg0, %c0_i32, %c0_i32_0, %c0_i32_1, %c0_i32_2 : i32, i32, i32, i32, i32
  }
  func.func @transform_1(%arg0: i32, %arg1: i32) -> (i32, i32, i32) {
    %c0_i32 = arith.constant 0 : i32
    %c0_i32_0 = arith.constant 0 : i32
    %c0_i32_1 = arith.constant 0 : i32
    %c0_i32_2 = arith.constant 0 : i32
    return %c0_i32, %c0_i32_0, %c0_i32_1 : i32, i32, i32
  }
  func.func @transform_2(%arg0: i32, %arg1: i32) -> (i32, i32) {
    %c0_i32 = arith.constant 0 : i32
    %c0_i32_0 = arith.constant 0 : i32
    %c0_i32_1 = arith.constant 0 : i32
    return %c0_i32, %c0_i32_0 : i32, i32
  }
  func.func @transform_3(%arg0: i32, %arg1: i32) -> (i32, i32, i32, i32) {
    %c0_i32 = arith.constant 0 : i32
    %c0_i32_0 = arith.constant 0 : i32
    %c0_i32_1 = arith.constant 0 : i32
    return %arg0, %arg1, %c0_i32, %c0_i32_0 : i32, i32, i32, i32
  }
}

module attributes {stable_mosaic.version = 11 : i64} {
  func.func @_lwgated_fused_kernel(%arg0: i32, %arg1: i32, %arg2: memref<1x10x1x10x8xbf16, #tpu.memory_space<vmem>>, %arg3: memref<9x8x128xbf16, #tpu.memory_space<vmem>>, %arg4: memref<1x128xf32, #tpu.memory_space<vmem>>, %arg5: memref<1x8x8x128xf32, #tpu.memory_space<vmem>>) attributes {dimension_semantics = [#tpu.dimension_semantics<parallel>, #tpu.dimension_semantics<parallel>], iteration_bounds = array<i64: 2, 1>, scalar_prefetch = 0 : i64, scratch_operands = 0 : i64, tpu.core_type = #tpu.core_type<tc>, window_params = [{transform_indices = @transform_0, window_bounds = array<i64: 1, 10, 1, 10, 8>}, {pipeline_mode = #tpu.pipeline_mode<synchronous>, transform_indices = @transform_1, window_bounds = array<i64: 9, 8, 128>}, {pipeline_mode = #tpu.pipeline_mode<synchronous>, transform_indices = @transform_2, window_bounds = array<i64: 1, 128>}, {transform_indices = @transform_3, window_bounds = array<i64: 1, 8, 8, 128>}]} {
    %c8_i32 = arith.constant 8 : i32
    %0 = arith.muli %arg1, %c8_i32 : i32
    %1 = tpu.assume_multiple %0, 8 : i32
    %c0 = arith.constant 0 : index
    %c0_0 = arith.constant 0 : index
    %2 = vector.load %arg4[%c0, %c0_0] : memref<1x128xf32, #tpu.memory_space<vmem>>, vector<1x128xf32>
    %3 = vector.shape_cast %2 : vector<1x128xf32> to vector<1x128xf32>
    %4 = vector.broadcast %3 : vector<1x128xf32> to vector<64x128xf32>
    %c0_i32 = arith.constant 0 : i32
    %5 = arith.addi %1, %c0_i32 : i32
    %c0_1 = arith.constant 0 : index
    %6 = arith.index_cast %5 : i32 to index
    %c0_2 = arith.constant 0 : index
    %c0_3 = arith.constant 0 : index
    %c0_4 = arith.constant 0 : index
    %7 = vector.load %arg2[%c0_1, %6, %c0_2, %c0_3, %c0_4] : memref<1x10x1x10x8xbf16, #tpu.memory_space<vmem>>, vector<1x8x1x8x8xbf16>
    %8 = vector.shape_cast %7 : vector<1x8x1x8x8xbf16> to vector<8x8x8xbf16>
    %9 = vector.shape_cast %8 : vector<8x8x8xbf16> to vector<64x8xbf16>
    %c0_5 = arith.constant 0 : index
    %c0_6 = arith.constant 0 : index
    %c0_7 = arith.constant 0 : index
    %10 = vector.load %arg3[%c0_5, %c0_6, %c0_7] : memref<9x8x128xbf16, #tpu.memory_space<vmem>>, vector<1x8x128xbf16>
    %11 = vector.shape_cast %10 : vector<1x8x128xbf16> to vector<8x128xbf16>
    %cst = arith.constant dense<0.000000e+00> : vector<64x128xf32>
    %12 = tpu.matmul %9, %11, %cst {dimension_numbers = #tpu.dot_dimension_numbers<[1], [0], [0], [1], [0, 0, 1, 1], [], []>} : vector<64x8xbf16>, vector<8x128xbf16>, vector<64x128xf32> -> vector<64x128xf32>
    %13 = arith.addf %4, %12 : vector<64x128xf32>
    %c0_i32_8 = arith.constant 0 : i32
    %14 = arith.addi %1, %c0_i32_8 : i32
    %c0_9 = arith.constant 0 : index
    %15 = arith.index_cast %14 : i32 to index
    %c0_10 = arith.constant 0 : index
    %c1 = arith.constant 1 : index
    %c0_11 = arith.constant 0 : index
    %16 = vector.load %arg2[%c0_9, %15, %c0_10, %c1, %c0_11] : memref<1x10x1x10x8xbf16, #tpu.memory_space<vmem>>, vector<1x8x1x8x8xbf16>
    %17 = vector.shape_cast %16 : vector<1x8x1x8x8xbf16> to vector<8x8x8xbf16>
    %18 = vector.shape_cast %17 : vector<8x8x8xbf16> to vector<64x8xbf16>
    %c1_12 = arith.constant 1 : index
    %c0_13 = arith.constant 0 : index
    %c0_14 = arith.constant 0 : index
    %19 = vector.load %arg3[%c1_12, %c0_13, %c0_14] : memref<9x8x128xbf16, #tpu.memory_space<vmem>>, vector<1x8x128xbf16>
    %20 = vector.shape_cast %19 : vector<1x8x128xbf16> to vector<8x128xbf16>
    %cst_15 = arith.constant dense<0.000000e+00> : vector<64x128xf32>
    %21 = tpu.matmul %18, %20, %cst_15 {dimension_numbers = #tpu.dot_dimension_numbers<[1], [0], [0], [1], [0, 0, 1, 1], [], []>} : vector<64x8xbf16>, vector<8x128xbf16>, vector<64x128xf32> -> vector<64x128xf32>
    %22 = arith.addf %13, %21 : vector<64x128xf32>
    %c0_i32_16 = arith.constant 0 : i32
    %23 = arith.addi %1, %c0_i32_16 : i32
    %c0_17 = arith.constant 0 : index
    %24 = arith.index_cast %23 : i32 to index
    %c0_18 = arith.constant 0 : index
    %c2 = arith.constant 2 : index
    %c0_19 = arith.constant 0 : index
    %25 = vector.load %arg2[%c0_17, %24, %c0_18, %c2, %c0_19] : memref<1x10x1x10x8xbf16, #tpu.memory_space<vmem>>, vector<1x8x1x8x8xbf16>
    %26 = vector.shape_cast %25 : vector<1x8x1x8x8xbf16> to vector<8x8x8xbf16>
    %27 = vector.shape_cast %26 : vector<8x8x8xbf16> to vector<64x8xbf16>
    %c2_20 = arith.constant 2 : index
    %c0_21 = arith.constant 0 : index
    %c0_22 = arith.constant 0 : index
    %28 = vector.load %arg3[%c2_20, %c0_21, %c0_22] : memref<9x8x128xbf16, #tpu.memory_space<vmem>>, vector<1x8x128xbf16>
    %29 = vector.shape_cast %28 : vector<1x8x128xbf16> to vector<8x128xbf16>
    %cst_23 = arith.constant dense<0.000000e+00> : vector<64x128xf32>
    %30 = tpu.matmul %27, %29, %cst_23 {dimension_numbers = #tpu.dot_dimension_numbers<[1], [0], [0], [1], [0, 0, 1, 1], [], []>} : vector<64x8xbf16>, vector<8x128xbf16>, vector<64x128xf32> -> vector<64x128xf32>
    %31 = arith.addf %22, %30 : vector<64x128xf32>
    %c1_i32 = arith.constant 1 : i32
    %32 = arith.addi %1, %c1_i32 : i32
    %c0_24 = arith.constant 0 : index
    %33 = arith.index_cast %32 : i32 to index
    %c0_25 = arith.constant 0 : index
    %c0_26 = arith.constant 0 : index
    %c0_27 = arith.constant 0 : index
    %34 = vector.load %arg2[%c0_24, %33, %c0_25, %c0_26, %c0_27] : memref<1x10x1x10x8xbf16, #tpu.memory_space<vmem>>, vector<1x8x1x8x8xbf16>
    %35 = vector.shape_cast %34 : vector<1x8x1x8x8xbf16> to vector<8x8x8xbf16>
    %36 = vector.shape_cast %35 : vector<8x8x8xbf16> to vector<64x8xbf16>
    %c3 = arith.constant 3 : index
    %c0_28 = arith.constant 0 : index
    %c0_29 = arith.constant 0 : index
    %37 = vector.load %arg3[%c3, %c0_28, %c0_29] : memref<9x8x128xbf16, #tpu.memory_space<vmem>>, vector<1x8x128xbf16>
    %38 = vector.shape_cast %37 : vector<1x8x128xbf16> to vector<8x128xbf16>
    %cst_30 = arith.constant dense<0.000000e+00> : vector<64x128xf32>
    %39 = tpu.matmul %36, %38, %cst_30 {dimension_numbers = #tpu.dot_dimension_numbers<[1], [0], [0], [1], [0, 0, 1, 1], [], []>} : vector<64x8xbf16>, vector<8x128xbf16>, vector<64x128xf32> -> vector<64x128xf32>
    %40 = arith.addf %31, %39 : vector<64x128xf32>
    %c1_i32_31 = arith.constant 1 : i32
    %41 = arith.addi %1, %c1_i32_31 : i32
    %c0_32 = arith.constant 0 : index
    %42 = arith.index_cast %41 : i32 to index
    %c0_33 = arith.constant 0 : index
    %c1_34 = arith.constant 1 : index
    %c0_35 = arith.constant 0 : index
    %43 = vector.load %arg2[%c0_32, %42, %c0_33, %c1_34, %c0_35] : memref<1x10x1x10x8xbf16, #tpu.memory_space<vmem>>, vector<1x8x1x8x8xbf16>
    %44 = vector.shape_cast %43 : vector<1x8x1x8x8xbf16> to vector<8x8x8xbf16>
    %45 = vector.shape_cast %44 : vector<8x8x8xbf16> to vector<64x8xbf16>
    %c4 = arith.constant 4 : index
    %c0_36 = arith.constant 0 : index
    %c0_37 = arith.constant 0 : index
    %46 = vector.load %arg3[%c4, %c0_36, %c0_37] : memref<9x8x128xbf16, #tpu.memory_space<vmem>>, vector<1x8x128xbf16>
    %47 = vector.shape_cast %46 : vector<1x8x128xbf16> to vector<8x128xbf16>
    %cst_38 = arith.constant dense<0.000000e+00> : vector<64x128xf32>
    %48 = tpu.matmul %45, %47, %cst_38 {dimension_numbers = #tpu.dot_dimension_numbers<[1], [0], [0], [1], [0, 0, 1, 1], [], []>} : vector<64x8xbf16>, vector<8x128xbf16>, vector<64x128xf32> -> vector<64x128xf32>
    %49 = arith.addf %40, %48 : vector<64x128xf32>
    %c1_i32_39 = arith.constant 1 : i32
    %50 = arith.addi %1, %c1_i32_39 : i32
    %c0_40 = arith.constant 0 : index
    %51 = arith.index_cast %50 : i32 to index
    %c0_41 = arith.constant 0 : index
    %c2_42 = arith.constant 2 : index
    %c0_43 = arith.constant 0 : index
    %52 = vector.load %arg2[%c0_40, %51, %c0_41, %c2_42, %c0_43] : memref<1x10x1x10x8xbf16, #tpu.memory_space<vmem>>, vector<1x8x1x8x8xbf16>
    %53 = vector.shape_cast %52 : vector<1x8x1x8x8xbf16> to vector<8x8x8xbf16>
    %54 = vector.shape_cast %53 : vector<8x8x8xbf16> to vector<64x8xbf16>
    %c5 = arith.constant 5 : index
    %c0_44 = arith.constant 0 : index
    %c0_45 = arith.constant 0 : index
    %55 = vector.load %arg3[%c5, %c0_44, %c0_45] : memref<9x8x128xbf16, #tpu.memory_space<vmem>>, vector<1x8x128xbf16>
    %56 = vector.shape_cast %55 : vector<1x8x128xbf16> to vector<8x128xbf16>
    %cst_46 = arith.constant dense<0.000000e+00> : vector<64x128xf32>
    %57 = tpu.matmul %54, %56, %cst_46 {dimension_numbers = #tpu.dot_dimension_numbers<[1], [0], [0], [1], [0, 0, 1, 1], [], []>} : vector<64x8xbf16>, vector<8x128xbf16>, vector<64x128xf32> -> vector<64x128xf32>
    %58 = arith.addf %49, %57 : vector<64x128xf32>
    %c2_i32 = arith.constant 2 : i32
    %59 = arith.addi %1, %c2_i32 : i32
    %c0_47 = arith.constant 0 : index
    %60 = arith.index_cast %59 : i32 to index
    %c0_48 = arith.constant 0 : index
    %c0_49 = arith.constant 0 : index
    %c0_50 = arith.constant 0 : index
    %61 = vector.load %arg2[%c0_47, %60, %c0_48, %c0_49, %c0_50] : memref<1x10x1x10x8xbf16, #tpu.memory_space<vmem>>, vector<1x8x1x8x8xbf16>
    %62 = vector.shape_cast %61 : vector<1x8x1x8x8xbf16> to vector<8x8x8xbf16>
    %63 = vector.shape_cast %62 : vector<8x8x8xbf16> to vector<64x8xbf16>
    %c6 = arith.constant 6 : index
    %c0_51 = arith.constant 0 : index
    %c0_52 = arith.constant 0 : index
    %64 = vector.load %arg3[%c6, %c0_51, %c0_52] : memref<9x8x128xbf16, #tpu.memory_space<vmem>>, vector<1x8x128xbf16>
    %65 = vector.shape_cast %64 : vector<1x8x128xbf16> to vector<8x128xbf16>
    %cst_53 = arith.constant dense<0.000000e+00> : vector<64x128xf32>
    %66 = tpu.matmul %63, %65, %cst_53 {dimension_numbers = #tpu.dot_dimension_numbers<[1], [0], [0], [1], [0, 0, 1, 1], [], []>} : vector<64x8xbf16>, vector<8x128xbf16>, vector<64x128xf32> -> vector<64x128xf32>
    %67 = arith.addf %58, %66 : vector<64x128xf32>
    %c2_i32_54 = arith.constant 2 : i32
    %68 = arith.addi %1, %c2_i32_54 : i32
    %c0_55 = arith.constant 0 : index
    %69 = arith.index_cast %68 : i32 to index
    %c0_56 = arith.constant 0 : index
    %c1_57 = arith.constant 1 : index
    %c0_58 = arith.constant 0 : index
    %70 = vector.load %arg2[%c0_55, %69, %c0_56, %c1_57, %c0_58] : memref<1x10x1x10x8xbf16, #tpu.memory_space<vmem>>, vector<1x8x1x8x8xbf16>
    %71 = vector.shape_cast %70 : vector<1x8x1x8x8xbf16> to vector<8x8x8xbf16>
    %72 = vector.shape_cast %71 : vector<8x8x8xbf16> to vector<64x8xbf16>
    %c7 = arith.constant 7 : index
    %c0_59 = arith.constant 0 : index
    %c0_60 = arith.constant 0 : index
    %73 = vector.load %arg3[%c7, %c0_59, %c0_60] : memref<9x8x128xbf16, #tpu.memory_space<vmem>>, vector<1x8x128xbf16>
    %74 = vector.shape_cast %73 : vector<1x8x128xbf16> to vector<8x128xbf16>
    %cst_61 = arith.constant dense<0.000000e+00> : vector<64x128xf32>
    %75 = tpu.matmul %72, %74, %cst_61 {dimension_numbers = #tpu.dot_dimension_numbers<[1], [0], [0], [1], [0, 0, 1, 1], [], []>} : vector<64x8xbf16>, vector<8x128xbf16>, vector<64x128xf32> -> vector<64x128xf32>
    %76 = arith.addf %67, %75 : vector<64x128xf32>
    %c2_i32_62 = arith.constant 2 : i32
    %77 = arith.addi %1, %c2_i32_62 : i32
    %c0_63 = arith.constant 0 : index
    %78 = arith.index_cast %77 : i32 to index
    %c0_64 = arith.constant 0 : index
    %c2_65 = arith.constant 2 : index
    %c0_66 = arith.constant 0 : index
    %79 = vector.load %arg2[%c0_63, %78, %c0_64, %c2_65, %c0_66] : memref<1x10x1x10x8xbf16, #tpu.memory_space<vmem>>, vector<1x8x1x8x8xbf16>
    %80 = vector.shape_cast %79 : vector<1x8x1x8x8xbf16> to vector<8x8x8xbf16>
    %81 = vector.shape_cast %80 : vector<8x8x8xbf16> to vector<64x8xbf16>
    %c8 = arith.constant 8 : index
    %c0_67 = arith.constant 0 : index
    %c0_68 = arith.constant 0 : index
    %82 = vector.load %arg3[%c8, %c0_67, %c0_68] : memref<9x8x128xbf16, #tpu.memory_space<vmem>>, vector<1x8x128xbf16>
    %83 = vector.shape_cast %82 : vector<1x8x128xbf16> to vector<8x128xbf16>
    %cst_69 = arith.constant dense<0.000000e+00> : vector<64x128xf32>
    %84 = tpu.matmul %81, %83, %cst_69 {dimension_numbers = #tpu.dot_dimension_numbers<[1], [0], [0], [1], [0, 0, 1, 1], [], []>} : vector<64x8xbf16>, vector<8x128xbf16>, vector<64x128xf32> -> vector<64x128xf32>
    %85 = arith.addf %76, %84 : vector<64x128xf32>
    %86 = vector.extract_strided_slice %85 {offsets = [0, 8], sizes = [64, 1], strides = [1, 1]} : vector<64x128xf32> to vector<64x1xf32>
    %87 = arith.negf %86 : vector<64x1xf32>
    %88 = math.exp %87 : vector<64x1xf32>
    %cst_70 = arith.constant 1.000000e+00 : f32
    %89 = vector.broadcast %cst_70 : f32 to vector<64x1xf32>
    %90 = arith.addf %89, %88 : vector<64x1xf32>
    %91 = arith.divf %89, %90 : vector<64x1xf32>
    %92 = vector.broadcast %91 : vector<64x1xf32> to vector<64x128xf32>
    %93 = arith.mulf %85, %92 : vector<64x128xf32>
    %cst_71 = arith.constant 0.000000e+00 : f32
    %94 = vector.broadcast %cst_71 : f32 to vector<64x128xf32>
    %95 = arith.maximumf %93, %94 : vector<64x128xf32>
    %96 = vector.shape_cast %95 : vector<64x128xf32> to vector<1x8x8x128xf32>
    %c0_72 = arith.constant 0 : index
    %c0_73 = arith.constant 0 : index
    %c0_74 = arith.constant 0 : index
    %c0_75 = arith.constant 0 : index
    %97 = vector.load %arg5[%c0_72, %c0_73, %c0_74, %c0_75] : memref<1x8x8x128xf32, #tpu.memory_space<vmem>>, vector<1x8x8x128xf32>
    tpu.vector_store %arg5[%c0_72, %c0_73, %c0_74, %c0_75], %96 {strides = array<i32>} : memref<1x8x8x128xf32, #tpu.memory_space<vmem>>, vector<1x8x8x128xf32>,
    return
  }
  func.func @transform_0(%arg0: i32, %arg1: i32) -> (i32, i32, i32, i32, i32) {
    %c0_i32 = arith.constant 0 : i32
    %c0_i32_0 = arith.constant 0 : i32
    %c0_i32_1 = arith.constant 0 : i32
    %c0_i32_2 = arith.constant 0 : i32
    %c0_i32_3 = arith.constant 0 : i32
    return %arg0, %c0_i32, %c0_i32_0, %c0_i32_1, %c0_i32_2 : i32, i32, i32, i32, i32
  }
  func.func @transform_1(%arg0: i32, %arg1: i32) -> (i32, i32, i32) {
    %c0_i32 = arith.constant 0 : i32
    %c0_i32_0 = arith.constant 0 : i32
    %c0_i32_1 = arith.constant 0 : i32
    %c0_i32_2 = arith.constant 0 : i32
    return %c0_i32, %c0_i32_0, %c0_i32_1 : i32, i32, i32
  }
  func.func @transform_2(%arg0: i32, %arg1: i32) -> (i32, i32) {
    %c0_i32 = arith.constant 0 : i32
    %c0_i32_0 = arith.constant 0 : i32
    %c0_i32_1 = arith.constant 0 : i32
    return %c0_i32, %c0_i32_0 : i32, i32
  }
  func.func @transform_3(%arg0: i32, %arg1: i32) -> (i32, i32, i32, i32) {
    %c0_i32 = arith.constant 0 : i32
    %c0_i32_0 = arith.constant 0 : i32
    %c0_i32_1 = arith.constant 0 : i32
    return %arg0, %arg1, %c0_i32, %c0_i32_0 : i32, i32, i32, i32
  }
}

</mosaic_0001>

<llo_original>
// kernel: down_lwgated.4
$region0: #{down_lwgated.4}
  #allocation0 [shape = 'u32[]', space=smem, size = 0x4, offset = 0x4, fixed_abs, tag = 'smem constant byte address 0x4 - core index']
  #allocation1 [shape = 'u32[144,128]{1,0:T(1,128)}', space=vmem, size = 0x12000, scoped, tag = 'internal scratch']
  %s0 = inlined_call_operand.vmem [shape: bf16[2,10,1,10,4], index: 0, kind: input, shape index: {}]
  %s1 = inlined_call_operand.vmem [shape: bf16[9,4,128], index: 1, kind: input, shape index: {}]
  %s2 = inlined_call_operand.vmem [shape: f32[1,128], index: 2, kind: input, shape index: {}]
  %s3 = inlined_call_operand.vmem [shape: bf16[2,8,8,128], index: 3, kind: output, shape index: {}]
  %s4 = sld [smem:[#allocation0]]
  $region45: #{down_lwgated.4} parent=0
    _
  %s6 = ssub.s32 1, %s4
  %s7 = scalar_select 0, %s6, %s4
  loop: start=0, step=1, limit=4
  $region2: #{down_lwgated.4} parent=0 // loop_pre_header
    _
  $region3: #{down_lwgated.4} parent=0 // loop_header
    %s9 = sphi 0, %s13
    %p10 = scmp.ge.s32.totalorder %s9, 4
    %s16 = sphi 0, %s28
    %s17 = sphi 0, %s24
    %s18 = sphi 0, %s16
    %s19 = sphi 0, %s17
    %s20 = sphi 0, %s18
    %s21 = sphi 0, %s19
    %s31 = sphi 0, %s33
    %s34 = sphi 0, %s31
    %s35 = sphi 0, %s34
    %s51 = sphi 0, %s35
    %s55 = sphi 0, %s55
    %s57 = sphi 0, %s55
    %s58 = sphi 0, %s57
    %s72 = sphi 0, %s58
    %s76 = sphi 0, %s76
    %s78 = sphi 0, %s76
    %s79 = sphi 0, %s78
    %s93 = sphi 0, %s79
    %s101 = sphi 0, %s103
    %s104 = sphi 0, %s101
    %s105 = sphi 0, %s104
    %s121 = sphi 0, %s105
  $region4: #{down_lwgated.4} parent=0 // loop_header_branch
    %12 = sbr.rel (%p10) target = $region8
  $region5: #{down_lwgated.4} parent=0 // loop_body
    %s14 = ssub.s32 %s9, 1
    %s15 = ssub.s32 %s9, 2
    %s22 = sadd.s32 1, %s17
    %p23 = scmp.ge.s32.totalorder %s22, 1
    %s24 = scalar_select %p23, 0, %s22
    %s25 = sadd.s32 1, %s16
    %s26 = scalar_select %p23, %s25, %s16
    %p27 = scmp.ge.s32.totalorder %s26, 2
    %s28 = scalar_select %p27, 0, %s26
    %s29 = ssub.s32 %s16, %s28
    %p30 = scmp.eq.s32.totalorder %s29, 0
    %s32 = sadd.s32 %s31, 1
    %s33 = scalar_select %p30, %s31, %s32
    %p36 = pneg %p30
    %p37 = scmp.eq.s32.totalorder %s9, 1
    %p38 = por %p36, %p37
    %p39 = scmp.ne.s32.totalorder %s31, %s34
    %p40 = scmp.eq.s32.totalorder %s9, 0
    %p41 = por %p39, %p40
    %p42 = scmp.ne.s32.totalorder %s31, %s34
    %p43 = scmp.eq.s32.totalorder %s14, 1
    %p44 = por %p42, %p43
    %p45 = scmp.ne.s32.totalorder %s34, %s35
    %p46 = scmp.eq.s32.totalorder %s14, 0
    %p47 = por %p45, %p46
    %p48 = scmp.ne.s32.totalorder %s34, %s35
    %p49 = scmp.eq.s32.totalorder %s15, 1
    %p50 = por %p48, %p49
    %p52 = scmp.ne.s32.totalorder %s35, %s51
    %p53 = scmp.eq.s32.totalorder %s15, 0
    %p54 = por %p52, %p53
    %s56 = sadd.s32 %s55, 1
    %p59 = scmp.eq.s32.totalorder %s9, 1
    %p60 = scmp.ne.s32.totalorder %s55, %s57
    %p61 = scmp.eq.s32.totalorder %s9, 0
    %p62 = por %p60, %p61
    %p63 = scmp.ne.s32.totalorder %s55, %s57
    %p64 = scmp.eq.s32.totalorder %s14, 1
    %p65 = por %p63, %p64
    %p66 = scmp.ne.s32.totalorder %s57, %s58
    %p67 = scmp.eq.s32.totalorder %s14, 0
    %p68 = por %p66, %p67
    %p69 = scmp.ne.s32.totalorder %s57, %s58
    %p70 = scmp.eq.s32.totalorder %s15, 1
    %p71 = por %p69, %p70
    %p73 = scmp.ne.s32.totalorder %s58, %s72
    %p74 = scmp.eq.s32.totalorder %s15, 0
    %p75 = por %p73, %p74
    %s77 = sadd.s32 %s76, 1
    %p80 = scmp.eq.s32.totalorder %s9, 1
    %p81 = scmp.ne.s32.totalorder %s76, %s78
    %p82 = scmp.eq.s32.totalorder %s9, 0
    %p83 = por %p81, %p82
    %p84 = scmp.ne.s32.totalorder %s76, %s78
    %p85 = scmp.eq.s32.totalorder %s14, 1
    %p86 = por %p84, %p85
    %p87 = scmp.ne.s32.totalorder %s78, %s79
    %p88 = scmp.eq.s32.totalorder %s14, 0
    %p89 = por %p87, %p88
    %p90 = scmp.ne.s32.totalorder %s78, %s79
    %p91 = scmp.eq.s32.totalorder %s15, 1
    %p92 = por %p90, %p91
    %p94 = scmp.ne.s32.totalorder %s79, %s93
    %p95 = scmp.eq.s32.totalorder %s15, 0
    %p96 = por %p94, %p95
    %s97 = ssub.s32 %s16, %s28
    %s98 = ssub.s32 %s17, %s24
    %s99 = sor.u32 %s97, %s98
    %p100 = scmp.eq.s32.totalorder %s99, 0
    %s102 = sadd.s32 %s101, 1
    %s103 = scalar_select %p100, %s101, %s102
    %p106 = pneg %p100
    %p107 = scmp.eq.s32.totalorder %s9, 1
    %p108 = por %p106, %p107
    %p109 = scmp.ne.s32.totalorder %s101, %s104
    %p110 = scmp.eq.s32.totalorder %s9, 0
    %p111 = por %p109, %p110
    %p112 = scmp.ne.s32.totalorder %s101, %s104
    %p113 = scmp.eq.s32.totalorder %s14, 1
    %p114 = por %p112, %p113
    %p115 = scmp.ne.s32.totalorder %s104, %s105
    %p116 = scmp.eq.s32.totalorder %s14, 0
    %p117 = por %p115, %p116
    %p118 = scmp.ne.s32.totalorder %s104, %s105
    %p119 = scmp.eq.s32.totalorder %s15, 1
    %p120 = por %p118, %p119
    %p122 = scmp.ne.s32.totalorder %s105, %s121
    %p123 = scmp.eq.s32.totalorder %s15, 0
    %p124 = por %p122, %p123
    %p125 = scmp.le.s32.totalorder 1, %s9
    %p126 = scmp.lt.s32.totalorder %s9, 3
    %p127 = pnand %p125, %p126
    %p128 = pneg %p127
    // Predicated region
    $region9: #{down_lwgated.4} parent=5 // pred_check
      _
    $region10: #{down_lwgated.4} parent=5 // pred_check_branch
      %130 = sbr.rel (%p127) target = $region12
    $region11: #{down_lwgated.4} parent=5 // pred_region
      %s131 = ssub.s32 %s9, 1
      // Predicated region
      $region13: #{down_lwgated.4} parent=11 // pred_check
        %p132 = pneg %p68
      $region14: #{down_lwgated.4} parent=11 // pred_check_branch
        %134 = sbr.rel (%p132) target = $region16
      $region15: #{down_lwgated.4} parent=11 // pred_region
        _
      $region16: #{down_lwgated.4} parent=11 // pred_fallthru
        _
      // Predicated region
      $region17: #{down_lwgated.4} parent=11 // pred_check
        %p135 = pneg %p89
      $region18: #{down_lwgated.4} parent=11 // pred_check_branch
        %137 = sbr.rel (%p135) target = $region20
      $region19: #{down_lwgated.4} parent=11 // pred_region
        _
      $region20: #{down_lwgated.4} parent=11 // pred_fallthru
        _
    $region12: #{down_lwgated.4} parent=5 // pred_fallthru
      _
    %p138 = scmp.lt.s32.totalorder %s9, 2
    // Predicated region
    $region21: #{down_lwgated.4} parent=5 // pred_check
      %p139 = pneg %p138
    $region22: #{down_lwgated.4} parent=5 // pred_check_branch
      %141 = sbr.rel (%p139) target = $region24
    $region23: #{down_lwgated.4} parent=5 // pred_region
      // Predicated region
      $region25: #{down_lwgated.4} parent=23 // pred_check
        %p142 = pneg %p41
      $region26: #{down_lwgated.4} parent=23 // pred_check_branch
        %144 = sbr.rel (%p142) target = $region28
      $region27: #{down_lwgated.4} parent=23 // pred_region
        %p145 = scmp.lt.s32.totalorder %s16, 1
        %s146 = scalar_select %p145, %s16, 1
        %s147 = smul.addr %s146, 20
        %s148 = smul.addr %s147, 4
        %s149 = scalar_lea.vmem %s0, %s148
      $region28: #{down_lwgated.4} parent=23 // pred_fallthru
        _
    $region24: #{down_lwgated.4} parent=5 // pred_fallthru
      _
    %p150 = scmp.le.s32.totalorder 1, %s9
    %p151 = scmp.lt.s32.totalorder %s9, 3
    %p152 = pnand %p150, %p151
    %p153 = pneg %p152
    // Predicated region
    $region29: #{down_lwgated.4} parent=5 // pred_check
      _
    $region30: #{down_lwgated.4} parent=5 // pred_check_branch
      %155 = sbr.rel (%p152) target = $region32
    $region31: #{down_lwgated.4} parent=5 // pred_region
      %s156 = ssub.s32 %s9, 1
      %p157 = scmp.lt.s32.totalorder %s18, 1
      %s158 = scalar_select %p157, %s18, 1
      %s159 = smul.addr %s158, 20
      %s160 = smul.addr %s159, 4
      %s161 = scalar_lea.vmem %s0, %s160
      %p162 = pneg %p47
      %p163 = pneg %p44
      %p164 = pneg %p68
      %p165 = pneg %p65
      %p166 = pneg %p89
      %p167 = pneg %p86
      %p168 = pneg %p117
      %p169 = pneg %p114
      %s170 = smul.u32 8, %s19
      %p171 = scmp.lt.s32.totalorder %s18, 1
      %s172 = scalar_select %p171, %s18, 1
      %p173 = scmp.lt.s32.totalorder %s170, 7
      %s174 = scalar_select %p173, %s170, 7
      %s175 = smul.addr %s172, 8
      %s176 = sadd.s32 %s174, %s175
      %s177 = smul.addr %s176, 4
      %s178 = scalar_lea.vmem %s3, %s177
      %p179 = scmp.lt.s32.totalorder %s18, 1
      %s180 = scalar_select %p179, %s18, 1
      %s181 = smul.addr %s180, 20
      %s182 = smul.addr %s181, 4
      %s183 = scalar_lea.vmem %s0, %s182
      %s184 = smul.u32 8, %s19
      %p185 = scmp.lt.s32.totalorder %s18, 1
      %s186 = scalar_select %p185, %s18, 1
      %p187 = scmp.lt.s32.totalorder %s184, 7
      %s188 = scalar_select %p187, %s184, 7
      %s189 = smul.addr %s186, 8
      %s190 = sadd.s32 %s188, %s189
      %s191 = smul.addr %s190, 4
      %s192 = scalar_lea.vmem %s3, %s191
      %s193 = smul.u32 8, %s19
      %s195 = smul.u32 %s19, 8
      %v196 = vld [vmem:[%s2] sm:$0x1]
      %v198 = vlaneseq
      %v199 = vshrl.u32 %v198, 7
      %v200 = vsub.s32 0, %v199
      %v201 = vrot.slane %v196, %v200
      %s203 = smul.u32 %s195, 2
      %s204 = smul.addr %s203, 4
      %s205 = scalar_lea.vmem %s183, %s204
      %v206 = vld [vmem:[%s205] sm:$0xf]
      %v207 = vld [vmem:[%s205 + $0x8] sm:$0xf]
      %v208 = vld [vmem:[%s205 + $0x10] sm:$0xf]
      %v209 = vld [vmem:[%s205 + $0x18] sm:$0xf]
      %v210 = vld [vmem:[%s205 + $0x20] sm:$0xf]
      %v211 = vld [vmem:[%s205 + $0x28] sm:$0xf]
      %v212 = vld [vmem:[%s205 + $0x30] sm:$0xf]
      %v213 = vld [vmem:[%s205 + $0x38] sm:$0xf]
      %v214 = vld [vmem:[%s1] sm:$0x3]
      %v223 = vunpack.c.l.b16 %v206
      %v224 = vunpack.c.l.b16 %v207
      %v225 = vunpack.c.l.b16 %v208
      %v226 = vunpack.c.l.b16 %v209
      %v227 = vunpack.c.l.b16 %v210
      %v228 = vunpack.c.l.b16 %v211
      %v229 = vunpack.c.l.b16 %v212
      %v230 = vunpack.c.l.b16 %v213
      %v231 = vpack.c.b16 %v224, %v223
      %v232 = vpack.c.b16 %v226, %v225
      %v233 = vpack.c.b16 %v228, %v227
      %v234 = vpack.c.b16 %v230, %v229
      %vm235 = vcmask 31744
      %v237 = vsel %vm235, %v231, 0
      %v240 = vsel %vm235, %v232, 0
      %v243 = vsel %vm235, %v233, 0
      %v246 = vsel %vm235, %v234, 0
      %vm248 = vcmask 1041408
      %v250 = vsel %vm248, %v214, 0
      %252 = vmatprep.subr.bf16.mxu0 0
      %253 = vmatpush1.bf16.msra.mxu0 %v250
      %254 = vmatprep.subr.bf16.mxu0 0
      %255 = vmatpush1.bf16.msra.mxu0 0
      %256 = vmatprep.subr.bf16.mxu0 0
      %257 = vmatpush1.bf16.msra.mxu0 0
      %258 = vmatprep.subr.bf16.mxu0 0
      %259 = vmatpush1.bf16.msra.mxu0 0
      %260 = vmatprep.subr.bf16.mxu0 0
      %261 = vmatpush1.bf16.msra.mxu0 0
      %262 = vmatprep.subr.bf16.mxu0 0
      %263 = vmatpush1.bf16.msra.mxu0 0
      %264 = vmatprep.subr.bf16.mxu0 0
      %265 = vmatpush1.bf16.msra.mxu0 0
      %266 = vmatprep.subr.bf16.mxu0 0
      %267 = vmatpush1.bf16.msra.mxu0 0
      %268 = vmatprep.subr.bf16.mxu0 0
      %269 = vmatpush1.bf16.msra.mxu0 0
      %270 = vmatprep.subr.bf16.mxu0 0
      %271 = vmatpush1.bf16.msra.mxu0 0
      %272 = vmatprep.subr.bf16.mxu0 0
      %273 = vmatpush1.bf16.msra.mxu0 0
      %274 = vmatprep.subr.bf16.mxu0 0
      %275 = vmatpush1.bf16.msra.mxu0 0
      %276 = vmatprep.subr.bf16.mxu0 0
      %277 = vmatpush1.bf16.msra.mxu0 0
      %278 = vmatprep.subr.bf16.mxu0 0
      %279 = vmatpush1.bf16.msra.mxu0 0
      %280 = vmatprep.subr.bf16.mxu0 0
      %281 = vmatpush1.bf16.msra.mxu0 0
      %282 = vmatprep.subr.bf16.mxu0 0
      %283 = vmatpush1.bf16.msra.mxu0 0
      %284 = vmatprep.mubr.bf16.mxu0 0
      %285 = vmatmul.mubr.bf16.gmra.mrb[0].mxu0 %v237
      %v286 = vpop.f32.mrb[0].mxu0
      %v287 = vadd.f32 0.0, %v286
      %v288 = vpop.f32.mrb[0].mxu0
      %v289 = vpop.f32.mrb[0].mxu0
      %v290 = vadd.f32 0.0, %v289
      %v291 = vpop.f32.mrb[0].mxu0
      %292 = vmatprep.mubr.bf16.mxu0 0
      %293 = vmatmul.mubr.bf16.gmra.mrb[0].mxu0 %v240
      %v294 = vpop.f32.mrb[0].mxu0
      %v295 = vadd.f32 0.0, %v294
      %v296 = vpop.f32.mrb[0].mxu0
      %v297 = vpop.f32.mrb[0].mxu0
      %v298 = vadd.f32 0.0, %v297
      %v299 = vpop.f32.mrb[0].mxu0
      %300 = vmatprep.mubr.bf16.mxu0 0
      %301 = vmatmul.mubr.bf16.gmra.mrb[0].mxu0 %v243
      %v302 = vpop.f32.mrb[0].mxu0
      %v303 = vadd.f32 0.0, %v302
      %v304 = vpop.f32.mrb[0].mxu0
      %v305 = vpop.f32.mrb[0].mxu0
      %v306 = vadd.f32 0.0, %v305
      %v307 = vpop.f32.mrb[0].mxu0
      %308 = vmatprep.mubr.bf16.mxu0 0
      %309 = vmatmul.mubr.bf16.gmra.mrb[0].mxu0 %v246
      %v310 = vpop.f32.mrb[0].mxu0
      %v311 = vadd.f32 0.0, %v310
      %v312 = vpop.f32.mrb[0].mxu0
      %v313 = vpop.f32.mrb[0].mxu0
      %v314 = vadd.f32 0.0, %v313
      %v315 = vpop.f32.mrb[0].mxu0
      %316 = vdwg.mxu0
      %v317 = vadd.f32 %v201, %v287
      %v318 = vadd.f32 %v201, %v290
      %v319 = vadd.f32 %v201, %v295
      %v320 = vadd.f32 %v201, %v298
      %v321 = vadd.f32 %v201, %v303
      %v322 = vadd.f32 %v201, %v306
      %v323 = vadd.f32 %v201, %v311
      %v324 = vadd.f32 %v201, %v314
      %v325 = vld [vmem:[%s205] sm:$0xf]
      %v326 = vld [vmem:[%s205 + $0x4] sm:$0x1]
      %v327 = vld [vmem:[%s205 + $0x8] sm:$0xf]
      %v328 = vld [vmem:[%s205 + $0xc] sm:$0x1]
      %v329 = vld [vmem:[%s205 + $0x10] sm:$0xf]
      %v330 = vld [vmem:[%s205 + $0x14] sm:$0x1]
      %v331 = vld [vmem:[%s205 + $0x18] sm:$0xf]
      %v332 = vld [vmem:[%s205 + $0x1c] sm:$0x1]
      %v333 = vld [vmem:[%s205 + $0x20] sm:$0xf]
      %v334 = vld [vmem:[%s205 + $0x24] sm:$0x1]
      %v335 = vld [vmem:[%s205 + $0x28] sm:$0xf]
      %v336 = vld [vmem:[%s205 + $0x2c] sm:$0x1]
      %v337 = vld [vmem:[%s205 + $0x30] sm:$0xf]
      %v338 = vld [vmem:[%s205 + $0x34] sm:$0x1]
      %v339 = vld [vmem:[%s205 + $0x38] sm:$0xf]
      %v340 = vld [vmem:[%s205 + $0x3c] sm:$0x1]
      %vm341 = vsmask.f32 3328
      %vm342 = vsmask.f32 7440
      %vm343 = vmor %vm341, %vm342
      %v345 = vshrl.u32 %v325, 16
      %v347 = vrot.slane %v345, 4
      %v348 = vshll.u32 %v325, 16
      %v350 = vrot.slane %v348, 5
      %v351 = vor.u32 %v347, %v350
      %v352 = vrot.slane %v351, 4
      %v354 = vshll.u32 %v326, 16
      %v356 = vrot.slane %v354, 5
      %v357 = vsel %vm343, %v352, %v356
      %v359 = vshrl.u32 %v327, 16
      %v361 = vrot.slane %v359, 4
      %v362 = vshll.u32 %v327, 16
      %v364 = vrot.slane %v362, 5
      %v365 = vor.u32 %v361, %v364
      %v366 = vrot.slane %v365, 4
      %v368 = vshll.u32 %v328, 16
      %v370 = vrot.slane %v368, 5
      %v371 = vsel %vm343, %v366, %v370
      %v373 = vshrl.u32 %v329, 16
      %v375 = vrot.slane %v373, 4
      %v376 = vshll.u32 %v329, 16
      %v378 = vrot.slane %v376, 5
      %v379 = vor.u32 %v375, %v378
      %v380 = vrot.slane %v379, 4
      %v382 = vshll.u32 %v330, 16
      %v384 = vrot.slane %v382, 5
      %v385 = vsel %vm343, %v380, %v384
      %v387 = vshrl.u32 %v331, 16
      %v389 = vrot.slane %v387, 4
      %v390 = vshll.u32 %v331, 16
      %v392 = vrot.slane %v390, 5
      %v393 = vor.u32 %v389, %v392
      %v394 = vrot.slane %v393, 4
      %v396 = vshll.u32 %v332, 16
      %v398 = vrot.slane %v396, 5
      %v399 = vsel %vm343, %v394, %v398
      %v401 = vshrl.u32 %v333, 16
      %v403 = vrot.slane %v401, 4
      %v404 = vshll.u32 %v333, 16
      %v406 = vrot.slane %v404, 5
      %v407 = vor.u32 %v403, %v406
      %v408 = vrot.slane %v407, 4
      %v410 = vshll.u32 %v334, 16
      %v412 = vrot.slane %v410, 5
      %v413 = vsel %vm343, %v408, %v412
      %v415 = vshrl.u32 %v335, 16
      %v417 = vrot.slane %v415, 4
      %v418 = vshll.u32 %v335, 16
      %v420 = vrot.slane %v418, 5
      %v421 = vor.u32 %v417, %v420
      %v422 = vrot.slane %v421, 4
      %v424 = vshll.u32 %v336, 16
      %v426 = vrot.slane %v424, 5
      %v427 = vsel %vm343, %v422, %v426
      %v429 = vshrl.u32 %v337, 16
      %v431 = vrot.slane %v429, 4
      %v432 = vshll.u32 %v337, 16
      %v434 = vrot.slane %v432, 5
      %v435 = vor.u32 %v431, %v434
      %v436 = vrot.slane %v435, 4
      %v438 = vshll.u32 %v338, 16
      %v440 = vrot.slane %v438, 5
      %v441 = vsel %vm343, %v436, %v440
      %v443 = vshrl.u32 %v339, 16
      %v445 = vrot.slane %v443, 4
      %v446 = vshll.u32 %v339, 16
      %v448 = vrot.slane %v446, 5
      %v449 = vor.u32 %v445, %v448
      %v450 = vrot.slane %v449, 4
      %v452 = vshll.u32 %v340, 16
      %v454 = vrot.slane %v452, 5
      %v455 = vsel %vm343, %v450, %v454
      %s456 = scalar_lea.vmem %s1, 2
      %v457 = vld [vmem:[%s456] sm:$0x3]
      %v458 = vunpack.c.l.b16 %v357
      %v459 = vunpack.c.l.b16 %v371
      %v460 = vunpack.c.l.b16 %v385
      %v461 = vunpack.c.l.b16 %v399
      %v462 = vunpack.c.l.b16 %v413
      %v463 = vunpack.c.l.b16 %v427
      %v464 = vunpack.c.l.b16 %v441
      %v465 = vunpack.c.l.b16 %v455
      %v466 = vpack.c.b16 %v459, %v458
      %v467 = vpack.c.b16 %v461, %v460
      %v468 = vpack.c.b16 %v463, %v462
      %v469 = vpack.c.b16 %v465, %v464
      %v471 = vsel %vm235, %v466, 0
      %v474 = vsel %vm235, %v467, 0
      %v477 = vsel %vm235, %v468, 0
      %v480 = vsel %vm235, %v469, 0
      %v483 = vsel %vm248, %v457, 0
      %485 = vmatprep.subr.bf16.mxu0 0
      %486 = vmatpush1.bf16.msra.mxu0 %v483
      %487 = vmatprep.subr.bf16.mxu0 0
      %488 = vmatpush1.bf16.msra.mxu0 0
      %489 = vmatprep.subr.bf16.mxu0 0
      %490 = vmatpush1.bf16.msra.mxu0 0
      %491 = vmatprep.subr.bf16.mxu0 0
      %492 = vmatpush1.bf16.msra.mxu0 0
      %493 = vmatprep.subr.bf16.mxu0 0
      %494 = vmatpush1.bf16.msra.mxu0 0
      %495 = vmatprep.subr.bf16.mxu0 0
      %496 = vmatpush1.bf16.msra.mxu0 0
      %497 = vmatprep.subr.bf16.mxu0 0
      %498 = vmatpush1.bf16.msra.mxu0 0
      %499 = vmatprep.subr.bf16.mxu0 0
      %500 = vmatpush1.bf16.msra.mxu0 0
      %501 = vmatprep.subr.bf16.mxu0 0
      %502 = vmatpush1.bf16.msra.mxu0 0
      %503 = vmatprep.subr.bf16.mxu0 0
      %504 = vmatpush1.bf16.msra.mxu0 0
      %505 = vmatprep.subr.bf16.mxu0 0
      %506 = vmatpush1.bf16.msra.mxu0 0
      %507 = vmatprep.subr.bf16.mxu0 0
      %508 = vmatpush1.bf16.msra.mxu0 0
      %509 = vmatprep.subr.bf16.mxu0 0
      %510 = vmatpush1.bf16.msra.mxu0 0
      %511 = vmatprep.subr.bf16.mxu0 0
      %512 = vmatpush1.bf16.msra.mxu0 0
      %513 = vmatprep.subr.bf16.mxu0 0
      %514 = vmatpush1.bf16.msra.mxu0 0
      %515 = vmatprep.subr.bf16.mxu0 0
      %516 = vmatpush1.bf16.msra.mxu0 0
      %517 = vmatprep.mubr.bf16.mxu0 0
      %518 = vmatmul.mubr.bf16.gmra.mrb[0].mxu0 %v471
      %v519 = vpop.f32.mrb[0].mxu0
      %v520 = vadd.f32 0.0, %v519
      %v521 = vpop.f32.mrb[0].mxu0
      %v522 = vpop.f32.mrb[0].mxu0
      %v523 = vadd.f32 0.0, %v522
      %v524 = vpop.f32.mrb[0].mxu0
      %525 = vmatprep.mubr.bf16.mxu0 0
      %526 = vmatmul.mubr.bf16.gmra.mrb[0].mxu0 %v474
      %v527 = vpop.f32.mrb[0].mxu0
      %v528 = vadd.f32 0.0, %v527
      %v529 = vpop.f32.mrb[0].mxu0
      %v530 = vpop.f32.mrb[0].mxu0
      %v531 = vadd.f32 0.0, %v530
      %v532 = vpop.f32.mrb[0].mxu0
      %533 = vmatprep.mubr.bf16.mxu0 0
      %534 = vmatmul.mubr.bf16.gmra.mrb[0].mxu0 %v477
      %v535 = vpop.f32.mrb[0].mxu0
      %v536 = vadd.f32 0.0, %v535
      %v537 = vpop.f32.mrb[0].mxu0
      %v538 = vpop.f32.mrb[0].mxu0
      %v539 = vadd.f32 0.0, %v538
      %v540 = vpop.f32.mrb[0].mxu0
      %541 = vmatprep.mubr.bf16.mxu0 0
      %542 = vmatmul.mubr.bf16.gmra.mrb[0].mxu0 %v480
      %v543 = vpop.f32.mrb[0].mxu0
      %v544 = vadd.f32 0.0, %v543
      %v545 = vpop.f32.mrb[0].mxu0
      %v546 = vpop.f32.mrb[0].mxu0
      %v547 = vadd.f32 0.0, %v546
      %v548 = vpop.f32.mrb[0].mxu0
      %549 = vdwg.mxu0
      %v550 = vadd.f32 %v317, %v520
      %v551 = vadd.f32 %v318, %v523
      %v552 = vadd.f32 %v319, %v528
      %v553 = vadd.f32 %v320, %v531
      %v554 = vadd.f32 %v321, %v536
      %v555 = vadd.f32 %v322, %v539
      %v556 = vadd.f32 %v323, %v544
      %v557 = vadd.f32 %v324, %v547
      %v558 = vld [vmem:[%s205] sm:$0xe]
      %v559 = vld [vmem:[%s205 + $0x8] sm:$0xe]
      %v560 = vld [vmem:[%s205 + $0x10] sm:$0xe]
      %v561 = vld [vmem:[%s205 + $0x18] sm:$0xe]
      %v562 = vld [vmem:[%s205 + $0x20] sm:$0xe]
      %v563 = vld [vmem:[%s205 + $0x28] sm:$0xe]
      %v564 = vld [vmem:[%s205 + $0x30] sm:$0xe]
      %v565 = vld [vmem:[%s205 + $0x38] sm:$0xe]
      %vm582 = vcmask 1042432
      %vm583 = vcmask 1046532
      %vm584 = vmor %vm582, %vm583
      %v585 = vrot.slane %v558, 5
      %v586 = vrot.slane %v585, 4
      %v587 = vrot.slane %v326, 5
      %v588 = vsel %vm584, %v586, %v587
      %v589 = vrot.slane %v559, 5
      %v590 = vrot.slane %v589, 4
      %v591 = vrot.slane %v328, 5
      %v592 = vsel %vm584, %v590, %v591
      %v593 = vrot.slane %v560, 5
      %v594 = vrot.slane %v593, 4
      %v595 = vrot.slane %v330, 5
      %v596 = vsel %vm584, %v594, %v595
      %v597 = vrot.slane %v561, 5
      %v598 = vrot.slane %v597, 4
      %v599 = vrot.slane %v332, 5
      %v600 = vsel %vm584, %v598, %v599
      %v601 = vrot.slane %v562, 5
      %v602 = vrot.slane %v601, 4
      %v603 = vrot.slane %v334, 5
      %v604 = vsel %vm584, %v602, %v603
      %v605 = vrot.slane %v563, 5
      %v606 = vrot.slane %v605, 4
      %v607 = vrot.slane %v336, 5
      %v608 = vsel %vm584, %v606, %v607
      %v609 = vrot.slane %v564, 5
      %v610 = vrot.slane %v609, 4
      %v611 = vrot.slane %v338, 5
      %v612 = vsel %vm584, %v610, %v611
      %v613 = vrot.slane %v565, 5
      %v614 = vrot.slane %v613, 4
      %v615 = vrot.slane %v340, 5
      %v616 = vsel %vm584, %v614, %v615
      %s617 = scalar_lea.vmem %s1, 4
      %v618 = vld [vmem:[%s617] sm:$0x3]
      %v619 = vunpack.c.l.b16 %v588
      %v620 = vunpack.c.l.b16 %v592
      %v621 = vunpack.c.l.b16 %v596
      %v622 = vunpack.c.l.b16 %v600
      %v623 = vunpack.c.l.b16 %v604
      %v624 = vunpack.c.l.b16 %v608
      %v625 = vunpack.c.l.b16 %v612
      %v626 = vunpack.c.l.b16 %v616
      %v627 = vpack.c.b16 %v620, %v619
      %v628 = vpack.c.b16 %v622, %v621
      %v629 = vpack.c.b16 %v624, %v623
      %v630 = vpack.c.b16 %v626, %v625
      %v632 = vsel %vm235, %v627, 0
      %v635 = vsel %vm235, %v628, 0
      %v638 = vsel %vm235, %v629, 0
      %v641 = vsel %vm235, %v630, 0
      %v644 = vsel %vm248, %v618, 0
      %646 = vmatprep.subr.bf16.mxu0 0
      %647 = vmatpush1.bf16.msra.mxu0 %v644
      %648 = vmatprep.subr.bf16.mxu0 0
      %649 = vmatpush1.bf16.msra.mxu0 0
      %650 = vmatprep.subr.bf16.mxu0 0
      %651 = vmatpush1.bf16.msra.mxu0 0
      %652 = vmatprep.subr.bf16.mxu0 0
      %653 = vmatpush1.bf16.msra.mxu0 0
      %654 = vmatprep.subr.bf16.mxu0 0
      %655 = vmatpush1.bf16.msra.mxu0 0
      %656 = vmatprep.subr.bf16.mxu0 0
      %657 = vmatpush1.bf16.msra.mxu0 0
      %658 = vmatprep.subr.bf16.mxu0 0
      %659 = vmatpush1.bf16.msra.mxu0 0
      %660 = vmatprep.subr.bf16.mxu0 0
      %661 = vmatpush1.bf16.msra.mxu0 0
      %662 = vmatprep.subr.bf16.mxu0 0
      %663 = vmatpush1.bf16.msra.mxu0 0
      %664 = vmatprep.subr.bf16.mxu0 0
      %665 = vmatpush1.bf16.msra.mxu0 0
      %666 = vmatprep.subr.bf16.mxu0 0
      %667 = vmatpush1.bf16.msra.mxu0 0
      %668 = vmatprep.subr.bf16.mxu0 0
      %669 = vmatpush1.bf16.msra.mxu0 0
      %670 = vmatprep.subr.bf16.mxu0 0
      %671 = vmatpush1.bf16.msra.mxu0 0
      %672 = vmatprep.subr.bf16.mxu0 0
      %673 = vmatpush1.bf16.msra.mxu0 0
      %674 = vmatprep.subr.bf16.mxu0 0
      %675 = vmatpush1.bf16.msra.mxu0 0
      %676 = vmatprep.subr.bf16.mxu0 0
      %677 = vmatpush1.bf16.msra.mxu0 0
      %678 = vmatprep.mubr.bf16.mxu0 0
      %679 = vmatmul.mubr.bf16.gmra.mrb[0].mxu0 %v632
      %v680 = vpop.f32.mrb[0].mxu0
      %v681 = vadd.f32 0.0, %v680
      %v682 = vpop.f32.mrb[0].mxu0
      %v683 = vpop.f32.mrb[0].mxu0
      %v684 = vadd.f32 0.0, %v683
      %v685 = vpop.f32.mrb[0].mxu0
      %686 = vmatprep.mubr.bf16.mxu0 0
      %687 = vmatmul.mubr.bf16.gmra.mrb[0].mxu0 %v635
      %v688 = vpop.f32.mrb[0].mxu0
      %v689 = vadd.f32 0.0, %v688
      %v690 = vpop.f32.mrb[0].mxu0
      %v691 = vpop.f32.mrb[0].mxu0
      %v692 = vadd.f32 0.0, %v691
      %v693 = vpop.f32.mrb[0].mxu0
      %694 = vmatprep.mubr.bf16.mxu0 0
      %695 = vmatmul.mubr.bf16.gmra.mrb[0].mxu0 %v638
      %v696 = vpop.f32.mrb[0].mxu0
      %v697 = vadd.f32 0.0, %v696
      %v698 = vpop.f32.mrb[0].mxu0
      %v699 = vpop.f32.mrb[0].mxu0
      %v700 = vadd.f32 0.0, %v699
      %v701 = vpop.f32.mrb[0].mxu0
      %702 = vmatprep.mubr.bf16.mxu0 0
      %703 = vmatmul.mubr.bf16.gmra.mrb[0].mxu0 %v641
      %v704 = vpop.f32.mrb[0].mxu0
      %v705 = vadd.f32 0.0, %v704
      %v706 = vpop.f32.mrb[0].mxu0
      %v707 = vpop.f32.mrb[0].mxu0
      %v708 = vadd.f32 0.0, %v707
      %v709 = vpop.f32.mrb[0].mxu0
      %710 = vdwg.mxu0
      %v711 = vadd.f32 %v550, %v681
      %v712 = vadd.f32 %v551, %v684
      %v713 = vadd.f32 %v552, %v689
      %v714 = vadd.f32 %v553, %v692
      %v715 = vadd.f32 %v554, %v697
      %v716 = vadd.f32 %v555, %v700
      %v717 = vadd.f32 %v556, %v705
      %v718 = vadd.f32 %v557, %v708
      %s719 = sadd.s32 %s195, 1
      %s720 = smul.u32 %s719, 2
      %s721 = smul.addr %s720, 4
      %s722 = scalar_lea.vmem %s183, %s721
      %v723 = vld [vmem:[%s722] sm:$0xf]
      %v724 = vld [vmem:[%s722 + $0x8] sm:$0xf]
      %v725 = vld [vmem:[%s722 + $0x10] sm:$0xf]
      %v726 = vld [vmem:[%s722 + $0x18] sm:$0xf]
      %v727 = vld [vmem:[%s722 + $0x20] sm:$0xf]
      %v728 = vld [vmem:[%s722 + $0x28] sm:$0xf]
      %v729 = vld [vmem:[%s722 + $0x30] sm:$0xf]
      %v730 = vld [vmem:[%s722 + $0x38] sm:$0xf]
      %s731 = scalar_lea.vmem %s1, 6
      %v732 = vld [vmem:[%s731] sm:$0x3]
      %v741 = vunpack.c.l.b16 %v723
      %v742 = vunpack.c.l.b16 %v724
      %v743 = vunpack.c.l.b16 %v725
      %v744 = vunpack.c.l.b16 %v726
      %v745 = vunpack.c.l.b16 %v727
      %v746 = vunpack.c.l.b16 %v728
      %v747 = vunpack.c.l.b16 %v729
      %v748 = vunpack.c.l.b16 %v730
      %v749 = vpack.c.b16 %v742, %v741
      %v750 = vpack.c.b16 %v744, %v743
      %v751 = vpack.c.b16 %v746, %v745
      %v752 = vpack.c.b16 %v748, %v747
      %v754 = vsel %vm235, %v749, 0
      %v757 = vsel %vm235, %v750, 0
      %v760 = vsel %vm235, %v751, 0
      %v763 = vsel %vm235, %v752, 0
      %v766 = vsel %vm248, %v732, 0
      %768 = vmatprep.subr.bf16.mxu0 0
      %769 = vmatpush1.bf16.msra.mxu0 %v766
      %770 = vmatprep.subr.bf16.mxu0 0
      %771 = vmatpush1.bf16.msra.mxu0 0
      %772 = vmatprep.subr.bf16.mxu0 0
      %773 = vmatpush1.bf16.msra.mxu0 0
      %774 = vmatprep.subr.bf16.mxu0 0
      %775 = vmatpush1.bf16.msra.mxu0 0
      %776 = vmatprep.subr.bf16.mxu0 0
      %777 = vmatpush1.bf16.msra.mxu0 0
      %778 = vmatprep.subr.bf16.mxu0 0
      %779 = vmatpush1.bf16.msra.mxu0 0
      %780 = vmatprep.subr.bf16.mxu0 0
      %781 = vmatpush1.bf16.msra.mxu0 0
      %782 = vmatprep.subr.bf16.mxu0 0
      %783 = vmatpush1.bf16.msra.mxu0 0
      %784 = vmatprep.subr.bf16.mxu0 0
      %785 = vmatpush1.bf16.msra.mxu0 0
      %786 = vmatprep.subr.bf16.mxu0 0
      %787 = vmatpush1.bf16.msra.mxu0 0
      %788 = vmatprep.subr.bf16.mxu0 0
      %789 = vmatpush1.bf16.msra.mxu0 0
      %790 = vmatprep.subr.bf16.mxu0 0
      %791 = vmatpush1.bf16.msra.mxu0 0
      %792 = vmatprep.subr.bf16.mxu0 0
      %793 = vmatpush1.bf16.msra.mxu0 0
      %794 = vmatprep.subr.bf16.mxu0 0
      %795 = vmatpush1.bf16.msra.mxu0 0
      %796 = vmatprep.subr.bf16.mxu0 0
      %797 = vmatpush1.bf16.msra.mxu0 0
      %798 = vmatprep.subr.bf16.mxu0 0
      %799 = vmatpush1.bf16.msra.mxu0 0
      %800 = vmatprep.mubr.bf16.mxu0 0
      %801 = vmatmul.mubr.bf16.gmra.mrb[0].mxu0 %v754
      %v802 = vpop.f32.mrb[0].mxu0
      %v803 = vadd.f32 0.0, %v802
      %v804 = vpop.f32.mrb[0].mxu0
      %v805 = vpop.f32.mrb[0].mxu0
      %v806 = vadd.f32 0.0, %v805
      %v807 = vpop.f32.mrb[0].mxu0
      %808 = vmatprep.mubr.bf16.mxu0 0
      %809 = vmatmul.mubr.bf16.gmra.mrb[0].mxu0 %v757
      %v810 = vpop.f32.mrb[0].mxu0
      %v811 = vadd.f32 0.0, %v810
      %v812 = vpop.f32.mrb[0].mxu0
      %v813 = vpop.f32.mrb[0].mxu0
      %v814 = vadd.f32 0.0, %v813
      %v815 = vpop.f32.mrb[0].mxu0
      %816 = vmatprep.mubr.bf16.mxu0 0
      %817 = vmatmul.mubr.bf16.gmra.mrb[0].mxu0 %v760
      %v818 = vpop.f32.mrb[0].mxu0
      %v819 = vadd.f32 0.0, %v818
      %v820 = vpop.f32.mrb[0].mxu0
      %v821 = vpop.f32.mrb[0].mxu0
      %v822 = vadd.f32 0.0, %v821
      %v823 = vpop.f32.mrb[0].mxu0
      %824 = vmatprep.mubr.bf16.mxu0 0
      %825 = vmatmul.mubr.bf16.gmra.mrb[0].mxu0 %v763
      %v826 = vpop.f32.mrb[0].mxu0
      %v827 = vadd.f32 0.0, %v826
      %v828 = vpop.f32.mrb[0].mxu0
      %v829 = vpop.f32.mrb[0].mxu0
      %v830 = vadd.f32 0.0, %v829
      %v831 = vpop.f32.mrb[0].mxu0
      %832 = vdwg.mxu0
      %v833 = vadd.f32 %v711, %v803
      %v834 = vadd.f32 %v712, %v806
      %v835 = vadd.f32 %v713, %v811
      %v836 = vadd.f32 %v714, %v814
      %v837 = vadd.f32 %v715, %v819
      %v838 = vadd.f32 %v716, %v822
      %v839 = vadd.f32 %v717, %v827
      %v840 = vadd.f32 %v718, %v830
      %v841 = vld [vmem:[%s722] sm:$0xf]
      %v842 = vld [vmem:[%s722 + $0x4] sm:$0x1]
      %v843 = vld [vmem:[%s722 + $0x8] sm:$0xf]
      %v844 = vld [vmem:[%s722 + $0xc] sm:$0x1]
      %v845 = vld [vmem:[%s722 + $0x10] sm:$0xf]
      %v846 = vld [vmem:[%s722 + $0x14] sm:$0x1]
      %v847 = vld [vmem:[%s722 + $0x18] sm:$0xf]
      %v848 = vld [vmem:[%s722 + $0x1c] sm:$0x1]
      %v849 = vld [vmem:[%s722 + $0x20] sm:$0xf]
      %v850 = vld [vmem:[%s722 + $0x24] sm:$0x1]
      %v851 = vld [vmem:[%s722 + $0x28] sm:$0xf]
      %v852 = vld [vmem:[%s722 + $0x2c] sm:$0x1]
      %v853 = vld [vmem:[%s722 + $0x30] sm:$0xf]
      %v854 = vld [vmem:[%s722 + $0x34] sm:$0x1]
      %v855 = vld [vmem:[%s722 + $0x38] sm:$0xf]
      %v856 = vld [vmem:[%s722 + $0x3c] sm:$0x1]
      %v858 = vshrl.u32 %v841, 16
      %v860 = vrot.slane %v858, 4
      %v861 = vshll.u32 %v841, 16
      %v863 = vrot.slane %v861, 5
      %v864 = vor.u32 %v860, %v863
      %v865 = vrot.slane %v864, 4
      %v867 = vshll.u32 %v842, 16
      %v869 = vrot.slane %v867, 5
      %v870 = vsel %vm343, %v865, %v869
      %v872 = vshrl.u32 %v843, 16
      %v874 = vrot.slane %v872, 4
      %v875 = vshll.u32 %v843, 16
      %v877 = vrot.slane %v875, 5
      %v878 = vor.u32 %v874, %v877
      %v879 = vrot.slane %v878, 4
      %v881 = vshll.u32 %v844, 16
      %v883 = vrot.slane %v881, 5
      %v884 = vsel %vm343, %v879, %v883
      %v886 = vshrl.u32 %v845, 16
      %v888 = vrot.slane %v886, 4
      %v889 = vshll.u32 %v845, 16
      %v891 = vrot.slane %v889, 5
      %v892 = vor.u32 %v888, %v891
      %v893 = vrot.slane %v892, 4
      %v895 = vshll.u32 %v846, 16
      %v897 = vrot.slane %v895, 5
      %v898 = vsel %vm343, %v893, %v897
      %v900 = vshrl.u32 %v847, 16
      %v902 = vrot.slane %v900, 4
      %v903 = vshll.u32 %v847, 16
      %v905 = vrot.slane %v903, 5
      %v906 = vor.u32 %v902, %v905
      %v907 = vrot.slane %v906, 4
      %v909 = vshll.u32 %v848, 16
      %v911 = vrot.slane %v909, 5
      %v912 = vsel %vm343, %v907, %v911
      %v914 = vshrl.u32 %v849, 16
      %v916 = vrot.slane %v914, 4
      %v917 = vshll.u32 %v849, 16
      %v919 = vrot.slane %v917, 5
      %v920 = vor.u32 %v916, %v919
      %v921 = vrot.slane %v920, 4
      %v923 = vshll.u32 %v850, 16
      %v925 = vrot.slane %v923, 5
      %v926 = vsel %vm343, %v921, %v925
      %v928 = vshrl.u32 %v851, 16
      %v930 = vrot.slane %v928, 4
      %v931 = vshll.u32 %v851, 16
      %v933 = vrot.slane %v931, 5
      %v934 = vor.u32 %v930, %v933
      %v935 = vrot.slane %v934, 4
      %v937 = vshll.u32 %v852, 16
      %v939 = vrot.slane %v937, 5
      %v940 = vsel %vm343, %v935, %v939
      %v942 = vshrl.u32 %v853, 16
      %v944 = vrot.slane %v942, 4
      %v945 = vshll.u32 %v853, 16
      %v947 = vrot.slane %v945, 5
      %v948 = vor.u32 %v944, %v947
      %v949 = vrot.slane %v948, 4
      %v951 = vshll.u32 %v854, 16
      %v953 = vrot.slane %v951, 5
      %v954 = vsel %vm343, %v949, %v953
      %v956 = vshrl.u32 %v855, 16
      %v958 = vrot.slane %v956, 4
      %v959 = vshll.u32 %v855, 16
      %v961 = vrot.slane %v959, 5
      %v962 = vor.u32 %v958, %v961
      %v963 = vrot.slane %v962, 4
      %v965 = vshll.u32 %v856, 16
      %v967 = vrot.slane %v965, 5
      %v968 = vsel %vm343, %v963, %v967
      %s969 = scalar_lea.vmem %s1, 8
      %v970 = vld [vmem:[%s969] sm:$0x3]
      %v971 = vunpack.c.l.b16 %v870
      %v972 = vunpack.c.l.b16 %v884
      %v973 = vunpack.c.l.b16 %v898
      %v974 = vunpack.c.l.b16 %v912
      %v975 = vunpack.c.l.b16 %v926
      %v976 = vunpack.c.l.b16 %v940
      %v977 = vunpack.c.l.b16 %v954
      %v978 = vunpack.c.l.b16 %v968
      %v979 = vpack.c.b16 %v972, %v971
      %v980 = vpack.c.b16 %v974, %v973
      %v981 = vpack.c.b16 %v976, %v975
      %v982 = vpack.c.b16 %v978, %v977
      %v984 = vsel %vm235, %v979, 0
      %v987 = vsel %vm235, %v980, 0
      %v990 = vsel %vm235, %v981, 0
      %v993 = vsel %vm235, %v982, 0
      %v996 = vsel %vm248, %v970, 0
      %998 = vmatprep.subr.bf16.mxu0 0
      %999 = vmatpush1.bf16.msra.mxu0 %v996
      %1000 = vmatprep.subr.bf16.mxu0 0
      %1001 = vmatpush1.bf16.msra.mxu0 0
      %1002 = vmatprep.subr.bf16.mxu0 0
      %1003 = vmatpush1.bf16.msra.mxu0 0
      %1004 = vmatprep.subr.bf16.mxu0 0
      %1005 = vmatpush1.bf16.msra.mxu0 0
      %1006 = vmatprep.subr.bf16.mxu0 0
      %1007 = vmatpush1.bf16.msra.mxu0 0
      %1008 = vmatprep.subr.bf16.mxu0 0
      %1009 = vmatpush1.bf16.msra.mxu0 0
      %1010 = vmatprep.subr.bf16.mxu0 0
      %1011 = vmatpush1.bf16.msra.mxu0 0
      %1012 = vmatprep.subr.bf16.mxu0 0
      %1013 = vmatpush1.bf16.msra.mxu0 0
      %1014 = vmatprep.subr.bf16.mxu0 0
      %1015 = vmatpush1.bf16.msra.mxu0 0
      %1016 = vmatprep.subr.bf16.mxu0 0
      %1017 = vmatpush1.bf16.msra.mxu0 0
      %1018 = vmatprep.subr.bf16.mxu0 0
      %1019 = vmatpush1.bf16.msra.mxu0 0
      %1020 = vmatprep.subr.bf16.mxu0 0
      %1021 = vmatpush1.bf16.msra.mxu0 0
      %1022 = vmatprep.subr.bf16.mxu0 0
      %1023 = vmatpush1.bf16.msra.mxu0 0
      %1024 = vmatprep.subr.bf16.mxu0 0
      %1025 = vmatpush1.bf16.msra.mxu0 0
      %1026 = vmatprep.subr.bf16.mxu0 0
      %1027 = vmatpush1.bf16.msra.mxu0 0
      %1028 = vmatprep.subr.bf16.mxu0 0
      %1029 = vmatpush1.bf16.msra.mxu0 0
      %1030 = vmatprep.mubr.bf16.mxu0 0
      %1031 = vmatmul.mubr.bf16.gmra.mrb[0].mxu0 %v984
      %v1032 = vpop.f32.mrb[0].mxu0
      %v1033 = vadd.f32 0.0, %v1032
      %v1034 = vpop.f32.mrb[0].mxu0
      %v1035 = vpop.f32.mrb[0].mxu0
      %v1036 = vadd.f32 0.0, %v1035
      %v1037 = vpop.f32.mrb[0].mxu0
      %1038 = vmatprep.mubr.bf16.mxu0 0
      %1039 = vmatmul.mubr.bf16.gmra.mrb[0].mxu0 %v987
      %v1040 = vpop.f32.mrb[0].mxu0
      %v1041 = vadd.f32 0.0, %v1040
      %v1042 = vpop.f32.mrb[0].mxu0
      %v1043 = vpop.f32.mrb[0].mxu0
      %v1044 = vadd.f32 0.0, %v1043
      %v1045 = vpop.f32.mrb[0].mxu0
      %1046 = vmatprep.mubr.bf16.mxu0 0
      %1047 = vmatmul.mubr.bf16.gmra.mrb[0].mxu0 %v990
      %v1048 = vpop.f32.mrb[0].mxu0
      %v1049 = vadd.f32 0.0, %v1048
      %v1050 = vpop.f32.mrb[0].mxu0
      %v1051 = vpop.f32.mrb[0].mxu0
      %v1052 = vadd.f32 0.0, %v1051
      %v1053 = vpop.f32.mrb[0].mxu0
      %1054 = vmatprep.mubr.bf16.mxu0 0
      %1055 = vmatmul.mubr.bf16.gmra.mrb[0].mxu0 %v993
      %v1056 = vpop.f32.mrb[0].mxu0
      %v1057 = vadd.f32 0.0, %v1056
      %v1058 = vpop.f32.mrb[0].mxu0
      %v1059 = vpop.f32.mrb[0].mxu0
      %v1060 = vadd.f32 0.0, %v1059
      %v1061 = vpop.f32.mrb[0].mxu0
      %1062 = vdwg.mxu0
      %v1063 = vadd.f32 %v833, %v1033
      %v1064 = vadd.f32 %v834, %v1036
      %v1065 = vadd.f32 %v835, %v1041
      %v1066 = vadd.f32 %v836, %v1044
      %v1067 = vadd.f32 %v837, %v1049
      %v1068 = vadd.f32 %v838, %v1052
      %v1069 = vadd.f32 %v839, %v1057
      %v1070 = vadd.f32 %v840, %v1060
      %v1071 = vld [vmem:[%s722] sm:$0xe]
      %v1072 = vld [vmem:[%s722 + $0x8] sm:$0xe]
      %v1073 = vld [vmem:[%s722 + $0x10] sm:$0xe]
      %v1074 = vld [vmem:[%s722 + $0x18] sm:$0xe]
      %v1075 = vld [vmem:[%s722 + $0x20] sm:$0xe]
      %v1076 = vld [vmem:[%s722 + $0x28] sm:$0xe]
      %v1077 = vld [vmem:[%s722 + $0x30] sm:$0xe]
      %v1078 = vld [vmem:[%s722 + $0x38] sm:$0xe]
      %v1095 = vrot.slane %v1071, 5
      %v1096 = vrot.slane %v1095, 4
      %v1097 = vrot.slane %v842, 5
      %v1098 = vsel %vm584, %v1096, %v1097
      %v1099 = vrot.slane %v1072, 5
      %v1100 = vrot.slane %v1099, 4
      %v1101 = vrot.slane %v844, 5
      %v1102 = vsel %vm584, %v1100, %v1101
      %v1103 = vrot.slane %v1073, 5
      %v1104 = vrot.slane %v1103, 4
      %v1105 = vrot.slane %v846, 5
      %v1106 = vsel %vm584, %v1104, %v1105
      %v1107 = vrot.slane %v1074, 5
      %v1108 = vrot.slane %v1107, 4
      %v1109 = vrot.slane %v848, 5
      %v1110 = vsel %vm584, %v1108, %v1109
      %v1111 = vrot.slane %v1075, 5
      %v1112 = vrot.slane %v1111, 4
      %v1113 = vrot.slane %v850, 5
      %v1114 = vsel %vm584, %v1112, %v1113
      %v1115 = vrot.slane %v1076, 5
      %v1116 = vrot.slane %v1115, 4
      %v1117 = vrot.slane %v852, 5
      %v1118 = vsel %vm584, %v1116, %v1117
      %v1119 = vrot.slane %v1077, 5
      %v1120 = vrot.slane %v1119, 4
      %v1121 = vrot.slane %v854, 5
      %v1122 = vsel %vm584, %v1120, %v1121
      %v1123 = vrot.slane %v1078, 5
      %v1124 = vrot.slane %v1123, 4
      %v1125 = vrot.slane %v856, 5
      %v1126 = vsel %vm584, %v1124, %v1125
      %s1127 = scalar_lea.vmem %s1, 10
      %v1128 = vld [vmem:[%s1127] sm:$0x3]
      %v1129 = vunpack.c.l.b16 %v1098
      %v1130 = vunpack.c.l.b16 %v1102
      %v1131 = vunpack.c.l.b16 %v1106
      %v1132 = vunpack.c.l.b16 %v1110
      %v1133 = vunpack.c.l.b16 %v1114
      %v1134 = vunpack.c.l.b16 %v1118
      %v1135 = vunpack.c.l.b16 %v1122
      %v1136 = vunpack.c.l.b16 %v1126
      %v1137 = vpack.c.b16 %v1130, %v1129
      %v1138 = vpack.c.b16 %v1132, %v1131
      %v1139 = vpack.c.b16 %v1134, %v1133
      %v1140 = vpack.c.b16 %v1136, %v1135
      %v1142 = vsel %vm235, %v1137, 0
      %v1145 = vsel %vm235, %v1138, 0
      %v1148 = vsel %vm235, %v1139, 0
      %v1151 = vsel %vm235, %v1140, 0
      %v1154 = vsel %vm248, %v1128, 0
      %1156 = vmatprep.subr.bf16.mxu0 0
      %1157 = vmatpush1.bf16.msra.mxu0 %v1154
      %1158 = vmatprep.subr.bf16.mxu0 0
      %1159 = vmatpush1.bf16.msra.mxu0 0
      %1160 = vmatprep.subr.bf16.mxu0 0
      %1161 = vmatpush1.bf16.msra.mxu0 0
      %1162 = vmatprep.subr.bf16.mxu0 0
      %1163 = vmatpush1.bf16.msra.mxu0 0
      %1164 = vmatprep.subr.bf16.mxu0 0
      %1165 = vmatpush1.bf16.msra.mxu0 0
      %1166 = vmatprep.subr.bf16.mxu0 0
      %1167 = vmatpush1.bf16.msra.mxu0 0
      %1168 = vmatprep.subr.bf16.mxu0 0
      %1169 = vmatpush1.bf16.msra.mxu0 0
      %1170 = vmatprep.subr.bf16.mxu0 0
      %1171 = vmatpush1.bf16.msra.mxu0 0
      %1172 = vmatprep.subr.bf16.mxu0 0
      %1173 = vmatpush1.bf16.msra.mxu0 0
      %1174 = vmatprep.subr.bf16.mxu0 0
      %1175 = vmatpush1.bf16.msra.mxu0 0
      %1176 = vmatprep.subr.bf16.mxu0 0
      %1177 = vmatpush1.bf16.msra.mxu0 0
      %1178 = vmatprep.subr.bf16.mxu0 0
      %1179 = vmatpush1.bf16.msra.mxu0 0
      %1180 = vmatprep.subr.bf16.mxu0 0
      %1181 = vmatpush1.bf16.msra.mxu0 0
      %1182 = vmatprep.subr.bf16.mxu0 0
      %1183 = vmatpush1.bf16.msra.mxu0 0
      %1184 = vmatprep.subr.bf16.mxu0 0
      %1185 = vmatpush1.bf16.msra.mxu0 0
      %1186 = vmatprep.subr.bf16.mxu0 0
      %1187 = vmatpush1.bf16.msra.mxu0 0
      %1188 = vmatprep.mubr.bf16.mxu0 0
      %1189 = vmatmul.mubr.bf16.gmra.mrb[0].mxu0 %v1142
      %v1190 = vpop.f32.mrb[0].mxu0
      %v1191 = vadd.f32 0.0, %v1190
      %v1192 = vpop.f32.mrb[0].mxu0
      %v1193 = vpop.f32.mrb[0].mxu0
      %v1194 = vadd.f32 0.0, %v1193
      %v1195 = vpop.f32.mrb[0].mxu0
      %1196 = vmatprep.mubr.bf16.mxu0 0
      %1197 = vmatmul.mubr.bf16.gmra.mrb[0].mxu0 %v1145
      %v1198 = vpop.f32.mrb[0].mxu0
      %v1199 = vadd.f32 0.0, %v1198
      %v1200 = vpop.f32.mrb[0].mxu0
      %v1201 = vpop.f32.mrb[0].mxu0
      %v1202 = vadd.f32 0.0, %v1201
      %v1203 = vpop.f32.mrb[0].mxu0
      %1204 = vmatprep.mubr.bf16.mxu0 0
      %1205 = vmatmul.mubr.bf16.gmra.mrb[0].mxu0 %v1148
      %v1206 = vpop.f32.mrb[0].mxu0
      %v1207 = vadd.f32 0.0, %v1206
      %v1208 = vpop.f32.mrb[0].mxu0
      %v1209 = vpop.f32.mrb[0].mxu0
      %v1210 = vadd.f32 0.0, %v1209
      %v1211 = vpop.f32.mrb[0].mxu0
      %1212 = vmatprep.mubr.bf16.mxu0 0
      %1213 = vmatmul.mubr.bf16.gmra.mrb[0].mxu0 %v1151
      %v1214 = vpop.f32.mrb[0].mxu0
      %v1215 = vadd.f32 0.0, %v1214
      %v1216 = vpop.f32.mrb[0].mxu0
      %v1217 = vpop.f32.mrb[0].mxu0
      %v1218 = vadd.f32 0.0, %v1217
      %v1219 = vpop.f32.mrb[0].mxu0
      %1220 = vdwg.mxu0
      %v1221 = vadd.f32 %v1063, %v1191
      %v1222 = vadd.f32 %v1064, %v1194
      %v1223 = vadd.f32 %v1065, %v1199
      %v1224 = vadd.f32 %v1066, %v1202
      %v1225 = vadd.f32 %v1067, %v1207
      %v1226 = vadd.f32 %v1068, %v1210
      %v1227 = vadd.f32 %v1069, %v1215
      %v1228 = vadd.f32 %v1070, %v1218
      %s1229 = sadd.s32 %s195, 2
      %s1230 = smul.u32 %s1229, 2
      %s1231 = smul.addr %s1230, 4
      %s1232 = scalar_lea.vmem %s183, %s1231
      %v1233 = vld [vmem:[%s1232] sm:$0xf]
      %v1234 = vld [vmem:[%s1232 + $0x8] sm:$0xf]
      %v1235 = vld [vmem:[%s1232 + $0x10] sm:$0xf]
      %v1236 = vld [vmem:[%s1232 + $0x18] sm:$0xf]
      %v1237 = vld [vmem:[%s1232 + $0x20] sm:$0xf]
      %v1238 = vld [vmem:[%s1232 + $0x28] sm:$0xf]
      %v1239 = vld [vmem:[%s1232 + $0x30] sm:$0xf]
      %v1240 = vld [vmem:[%s1232 + $0x38] sm:$0xf]
      %s1241 = scalar_lea.vmem %s1, 12
      %v1242 = vld [vmem:[%s1241] sm:$0x3]
      %v1251 = vunpack.c.l.b16 %v1233
      %v1252 = vunpack.c.l.b16 %v1234
      %v1253 = vunpack.c.l.b16 %v1235
      %v1254 = vunpack.c.l.b16 %v1236
      %v1255 = vunpack.c.l.b16 %v1237
      %v1256 = vunpack.c.l.b16 %v1238
      %v1257 = vunpack.c.l.b16 %v1239
      %v1258 = vunpack.c.l.b16 %v1240
      %v1259 = vpack.c.b16 %v1252, %v1251
      %v1260 = vpack.c.b16 %v1254, %v1253
      %v1261 = vpack.c.b16 %v1256, %v1255
      %v1262 = vpack.c.b16 %v1258, %v1257
      %v1264 = vsel %vm235, %v1259, 0
      %v1267 = vsel %vm235, %v1260, 0
      %v1270 = vsel %vm235, %v1261, 0
      %v1273 = vsel %vm235, %v1262, 0
      %v1276 = vsel %vm248, %v1242, 0
      %1278 = vmatprep.subr.bf16.mxu0 0
      %1279 = vmatpush1.bf16.msra.mxu0 %v1276
      %1280 = vmatprep.subr.bf16.mxu0 0
      %1281 = vmatpush1.bf16.msra.mxu0 0
      %1282 = vmatprep.subr.bf16.mxu0 0
      %1283 = vmatpush1.bf16.msra.mxu0 0
      %1284 = vmatprep.subr.bf16.mxu0 0
      %1285 = vmatpush1.bf16.msra.mxu0 0
      %1286 = vmatprep.subr.bf16.mxu0 0
      %1287 = vmatpush1.bf16.msra.mxu0 0
      %1288 = vmatprep.subr.bf16.mxu0 0
      %1289 = vmatpush1.bf16.msra.mxu0 0
      %1290 = vmatprep.subr.bf16.mxu0 0
      %1291 = vmatpush1.bf16.msra.mxu0 0
      %1292 = vmatprep.subr.bf16.mxu0 0
      %1293 = vmatpush1.bf16.msra.mxu0 0
      %1294 = vmatprep.subr.bf16.mxu0 0
      %1295 = vmatpush1.bf16.msra.mxu0 0
      %1296 = vmatprep.subr.bf16.mxu0 0
      %1297 = vmatpush1.bf16.msra.mxu0 0
      %1298 = vmatprep.subr.bf16.mxu0 0
      %1299 = vmatpush1.bf16.msra.mxu0 0
      %1300 = vmatprep.subr.bf16.mxu0 0
      %1301 = vmatpush1.bf16.msra.mxu0 0
      %1302 = vmatprep.subr.bf16.mxu0 0
      %1303 = vmatpush1.bf16.msra.mxu0 0
      %1304 = vmatprep.subr.bf16.mxu0 0
      %1305 = vmatpush1.bf16.msra.mxu0 0
      %1306 = vmatprep.subr.bf16.mxu0 0
      %1307 = vmatpush1.bf16.msra.mxu0 0
      %1308 = vmatprep.subr.bf16.mxu0 0
      %1309 = vmatpush1.bf16.msra.mxu0 0
      %1310 = vmatprep.mubr.bf16.mxu0 0
      %1311 = vmatmul.mubr.bf16.gmra.mrb[0].mxu0 %v1264
      %v1312 = vpop.f32.mrb[0].mxu0
      %v1313 = vadd.f32 0.0, %v1312
      %v1314 = vpop.f32.mrb[0].mxu0
      %v1315 = vpop.f32.mrb[0].mxu0
      %v1316 = vadd.f32 0.0, %v1315
      %v1317 = vpop.f32.mrb[0].mxu0
      %1318 = vmatprep.mubr.bf16.mxu0 0
      %1319 = vmatmul.mubr.bf16.gmra.mrb[0].mxu0 %v1267
      %v1320 = vpop.f32.mrb[0].mxu0
      %v1321 = vadd.f32 0.0, %v1320
      %v1322 = vpop.f32.mrb[0].mxu0
      %v1323 = vpop.f32.mrb[0].mxu0
      %v1324 = vadd.f32 0.0, %v1323
      %v1325 = vpop.f32.mrb[0].mxu0
      %1326 = vmatprep.mubr.bf16.mxu0 0
      %1327 = vmatmul.mubr.bf16.gmra.mrb[0].mxu0 %v1270
      %v1328 = vpop.f32.mrb[0].mxu0
      %v1329 = vadd.f32 0.0, %v1328
      %v1330 = vpop.f32.mrb[0].mxu0
      %v1331 = vpop.f32.mrb[0].mxu0
      %v1332 = vadd.f32 0.0, %v1331
      %v1333 = vpop.f32.mrb[0].mxu0
      %1334 = vmatprep.mubr.bf16.mxu0 0
      %1335 = vmatmul.mubr.bf16.gmra.mrb[0].mxu0 %v1273
      %v1336 = vpop.f32.mrb[0].mxu0
      %v1337 = vadd.f32 0.0, %v1336
      %v1338 = vpop.f32.mrb[0].mxu0
      %v1339 = vpop.f32.mrb[0].mxu0
      %v1340 = vadd.f32 0.0, %v1339
      %v1341 = vpop.f32.mrb[0].mxu0
      %1342 = vdwg.mxu0
      %v1343 = vadd.f32 %v1221, %v1313
      %v1344 = vadd.f32 %v1222, %v1316
      %v1345 = vadd.f32 %v1223, %v1321
      %v1346 = vadd.f32 %v1224, %v1324
      %v1347 = vadd.f32 %v1225, %v1329
      %v1348 = vadd.f32 %v1226, %v1332
      %v1349 = vadd.f32 %v1227, %v1337
      %v1350 = vadd.f32 %v1228, %v1340
      %v1351 = vld [vmem:[%s1232] sm:$0xf]
      %v1352 = vld [vmem:[%s1232 + $0x4] sm:$0x1]
      %v1353 = vld [vmem:[%s1232 + $0x8] sm:$0xf]
      %v1354 = vld [vmem:[%s1232 + $0xc] sm:$0x1]
      %v1355 = vld [vmem:[%s1232 + $0x10] sm:$0xf]
      %v1356 = vld [vmem:[%s1232 + $0x14] sm:$0x1]
      %v1357 = vld [vmem:[%s1232 + $0x18] sm:$0xf]
      %v1358 = vld [vmem:[%s1232 + $0x1c] sm:$0x1]
      %v1359 = vld [vmem:[%s1232 + $0x20] sm:$0xf]
      %v1360 = vld [vmem:[%s1232 + $0x24] sm:$0x1]
      %v1361 = vld [vmem:[%s1232 + $0x28] sm:$0xf]
      %v1362 = vld [vmem:[%s1232 + $0x2c] sm:$0x1]
      %v1363 = vld [vmem:[%s1232 + $0x30] sm:$0xf]
      %v1364 = vld [vmem:[%s1232 + $0x34] sm:$0x1]
      %v1365 = vld [vmem:[%s1232 + $0x38] sm:$0xf]
      %v1366 = vld [vmem:[%s1232 + $0x3c] sm:$0x1]
      %v1368 = vshrl.u32 %v1351, 16
      %v1370 = vrot.slane %v1368, 4
      %v1371 = vshll.u32 %v1351, 16
      %v1373 = vrot.slane %v1371, 5
      %v1374 = vor.u32 %v1370, %v1373
      %v1375 = vrot.slane %v1374, 4
      %v1377 = vshll.u32 %v1352, 16
      %v1379 = vrot.slane %v1377, 5
      %v1380 = vsel %vm343, %v1375, %v1379
      %v1382 = vshrl.u32 %v1353, 16
      %v1384 = vrot.slane %v1382, 4
      %v1385 = vshll.u32 %v1353, 16
      %v1387 = vrot.slane %v1385, 5
      %v1388 = vor.u32 %v1384, %v1387
      %v1389 = vrot.slane %v1388, 4
      %v1391 = vshll.u32 %v1354, 16
      %v1393 = vrot.slane %v1391, 5
      %v1394 = vsel %vm343, %v1389, %v1393
      %v1396 = vshrl.u32 %v1355, 16
      %v1398 = vrot.slane %v1396, 4
      %v1399 = vshll.u32 %v1355, 16
      %v1401 = vrot.slane %v1399, 5
      %v1402 = vor.u32 %v1398, %v1401
      %v1403 = vrot.slane %v1402, 4
      %v1405 = vshll.u32 %v1356, 16
      %v1407 = vrot.slane %v1405, 5
      %v1408 = vsel %vm343, %v1403, %v1407
      %v1410 = vshrl.u32 %v1357, 16
      %v1412 = vrot.slane %v1410, 4
      %v1413 = vshll.u32 %v1357, 16
      %v1415 = vrot.slane %v1413, 5
      %v1416 = vor.u32 %v1412, %v1415
      %v1417 = vrot.slane %v1416, 4
      %v1419 = vshll.u32 %v1358, 16
      %v1421 = vrot.slane %v1419, 5
      %v1422 = vsel %vm343, %v1417, %v1421
      %v1424 = vshrl.u32 %v1359, 16
      %v1426 = vrot.slane %v1424, 4
      %v1427 = vshll.u32 %v1359, 16
      %v1429 = vrot.slane %v1427, 5
      %v1430 = vor.u32 %v1426, %v1429
      %v1431 = vrot.slane %v1430, 4
      %v1433 = vshll.u32 %v1360, 16
      %v1435 = vrot.slane %v1433, 5
      %v1436 = vsel %vm343, %v1431, %v1435
      %v1438 = vshrl.u32 %v1361, 16
      %v1440 = vrot.slane %v1438, 4
      %v1441 = vshll.u32 %v1361, 16
      %v1443 = vrot.slane %v1441, 5
      %v1444 = vor.u32 %v1440, %v1443
      %v1445 = vrot.slane %v1444, 4
      %v1447 = vshll.u32 %v1362, 16
      %v1449 = vrot.slane %v1447, 5
      %v1450 = vsel %vm343, %v1445, %v1449
      %v1452 = vshrl.u32 %v1363, 16
      %v1454 = vrot.slane %v1452, 4
      %v1455 = vshll.u32 %v1363, 16
      %v1457 = vrot.slane %v1455, 5
      %v1458 = vor.u32 %v1454, %v1457
      %v1459 = vrot.slane %v1458, 4
      %v1461 = vshll.u32 %v1364, 16
      %v1463 = vrot.slane %v1461, 5
      %v1464 = vsel %vm343, %v1459, %v1463
      %v1466 = vshrl.u32 %v1365, 16
      %v1468 = vrot.slane %v1466, 4
      %v1469 = vshll.u32 %v1365, 16
      %v1471 = vrot.slane %v1469, 5
      %v1472 = vor.u32 %v1468, %v1471
      %v1473 = vrot.slane %v1472, 4
      %v1475 = vshll.u32 %v1366, 16
      %v1477 = vrot.slane %v1475, 5
      %v1478 = vsel %vm343, %v1473, %v1477
      %s1479 = scalar_lea.vmem %s1, 14
      %v1480 = vld [vmem:[%s1479] sm:$0x3]
      %v1481 = vunpack.c.l.b16 %v1380
      %v1482 = vunpack.c.l.b16 %v1394
      %v1483 = vunpack.c.l.b16 %v1408
      %v1484 = vunpack.c.l.b16 %v1422
      %v1485 = vunpack.c.l.b16 %v1436
      %v1486 = vunpack.c.l.b16 %v1450
      %v1487 = vunpack.c.l.b16 %v1464
      %v1488 = vunpack.c.l.b16 %v1478
      %v1489 = vpack.c.b16 %v1482, %v1481
      %v1490 = vpack.c.b16 %v1484, %v1483
      %v1491 = vpack.c.b16 %v1486, %v1485
      %v1492 = vpack.c.b16 %v1488, %v1487
      %v1494 = vsel %vm235, %v1489, 0
      %v1497 = vsel %vm235, %v1490, 0
      %v1500 = vsel %vm235, %v1491, 0
      %v1503 = vsel %vm235, %v1492, 0
      %v1506 = vsel %vm248, %v1480, 0
      %1508 = vmatprep.subr.bf16.mxu0 0
      %1509 = vmatpush1.bf16.msra.mxu0 %v1506
      %1510 = vmatprep.subr.bf16.mxu0 0
      %1511 = vmatpush1.bf16.msra.mxu0 0
      %1512 = vmatprep.subr.bf16.mxu0 0
      %1513 = vmatpush1.bf16.msra.mxu0 0
      %1514 = vmatprep.subr.bf16.mxu0 0
      %1515 = vmatpush1.bf16.msra.mxu0 0
      %1516 = vmatprep.subr.bf16.mxu0 0
      %1517 = vmatpush1.bf16.msra.mxu0 0
      %1518 = vmatprep.subr.bf16.mxu0 0
      %1519 = vmatpush1.bf16.msra.mxu0 0
      %1520 = vmatprep.subr.bf16.mxu0 0
      %1521 = vmatpush1.bf16.msra.mxu0 0
      %1522 = vmatprep.subr.bf16.mxu0 0
      %1523 = vmatpush1.bf16.msra.mxu0 0
      %1524 = vmatprep.subr.bf16.mxu0 0
      %1525 = vmatpush1.bf16.msra.mxu0 0
      %1526 = vmatprep.subr.bf16.mxu0 0
      %1527 = vmatpush1.bf16.msra.mxu0 0
      %1528 = vmatprep.subr.bf16.mxu0 0
      %1529 = vmatpush1.bf16.msra.mxu0 0
      %1530 = vmatprep.subr.bf16.mxu0 0
      %1531 = vmatpush1.bf16.msra.mxu0 0
      %1532 = vmatprep.subr.bf16.mxu0 0
      %1533 = vmatpush1.bf16.msra.mxu0 0
      %1534 = vmatprep.subr.bf16.mxu0 0
      %1535 = vmatpush1.bf16.msra.mxu0 0
      %1536 = vmatprep.subr.bf16.mxu0 0
      %1537 = vmatpush1.bf16.msra.mxu0 0
      %1538 = vmatprep.subr.bf16.mxu0 0
      %1539 = vmatpush1.bf16.msra.mxu0 0
      %1540 = vmatprep.mubr.bf16.mxu0 0
      %1541 = vmatmul.mubr.bf16.gmra.mrb[0].mxu0 %v1494
      %v1542 = vpop.f32.mrb[0].mxu0
      %v1543 = vadd.f32 0.0, %v1542
      %v1544 = vpop.f32.mrb[0].mxu0
      %v1545 = vpop.f32.mrb[0].mxu0
      %v1546 = vadd.f32 0.0, %v1545
      %v1547 = vpop.f32.mrb[0].mxu0
      %1548 = vmatprep.mubr.bf16.mxu0 0
      %1549 = vmatmul.mubr.bf16.gmra.mrb[0].mxu0 %v1497
      %v1550 = vpop.f32.mrb[0].mxu0
      %v1551 = vadd.f32 0.0, %v1550
      %v1552 = vpop.f32.mrb[0].mxu0
      %v1553 = vpop.f32.mrb[0].mxu0
      %v1554 = vadd.f32 0.0, %v1553
      %v1555 = vpop.f32.mrb[0].mxu0
      %1556 = vmatprep.mubr.bf16.mxu0 0
      %1557 = vmatmul.mubr.bf16.gmra.mrb[0].mxu0 %v1500
      %v1558 = vpop.f32.mrb[0].mxu0
      %v1559 = vadd.f32 0.0, %v1558
      %v1560 = vpop.f32.mrb[0].mxu0
      %v1561 = vpop.f32.mrb[0].mxu0
      %v1562 = vadd.f32 0.0, %v1561
      %v1563 = vpop.f32.mrb[0].mxu0
      %1564 = vmatprep.mubr.bf16.mxu0 0
      %1565 = vmatmul.mubr.bf16.gmra.mrb[0].mxu0 %v1503
      %v1566 = vpop.f32.mrb[0].mxu0
      %v1567 = vadd.f32 0.0, %v1566
      %v1568 = vpop.f32.mrb[0].mxu0
      %v1569 = vpop.f32.mrb[0].mxu0
      %v1570 = vadd.f32 0.0, %v1569
      %v1571 = vpop.f32.mrb[0].mxu0
      %1572 = vdwg.mxu0
      %v1573 = vadd.f32 %v1343, %v1543
      %v1574 = vadd.f32 %v1344, %v1546
      %v1575 = vadd.f32 %v1345, %v1551
      %v1576 = vadd.f32 %v1346, %v1554
      %v1577 = vadd.f32 %v1347, %v1559
      %v1578 = vadd.f32 %v1348, %v1562
      %v1579 = vadd.f32 %v1349, %v1567
      %v1580 = vadd.f32 %v1350, %v1570
      %v1581 = vld [vmem:[%s1232] sm:$0xe]
      %v1582 = vld [vmem:[%s1232 + $0x8] sm:$0xe]
      %v1583 = vld [vmem:[%s1232 + $0x10] sm:$0xe]
      %v1584 = vld [vmem:[%s1232 + $0x18] sm:$0xe]
      %v1585 = vld [vmem:[%s1232 + $0x20] sm:$0xe]
      %v1586 = vld [vmem:[%s1232 + $0x28] sm:$0xe]
      %v1587 = vld [vmem:[%s1232 + $0x30] sm:$0xe]
      %v1588 = vld [vmem:[%s1232 + $0x38] sm:$0xe]
      %v1605 = vrot.slane %v1581, 5
      %v1606 = vrot.slane %v1605, 4
      %v1607 = vrot.slane %v1352, 5
      %v1608 = vsel %vm584, %v1606, %v1607
      %v1609 = vrot.slane %v1582, 5
      %v1610 = vrot.slane %v1609, 4
      %v1611 = vrot.slane %v1354, 5
      %v1612 = vsel %vm584, %v1610, %v1611
      %v1613 = vrot.slane %v1583, 5
      %v1614 = vrot.slane %v1613, 4
      %v1615 = vrot.slane %v1356, 5
      %v1616 = vsel %vm584, %v1614, %v1615
      %v1617 = vrot.slane %v1584, 5
      %v1618 = vrot.slane %v1617, 4
      %v1619 = vrot.slane %v1358, 5
      %v1620 = vsel %vm584, %v1618, %v1619
      %v1621 = vrot.slane %v1585, 5
      %v1622 = vrot.slane %v1621, 4
      %v1623 = vrot.slane %v1360, 5
      %v1624 = vsel %vm584, %v1622, %v1623
      %v1625 = vrot.slane %v1586, 5
      %v1626 = vrot.slane %v1625, 4
      %v1627 = vrot.slane %v1362, 5
      %v1628 = vsel %vm584, %v1626, %v1627
      %v1629 = vrot.slane %v1587, 5
      %v1630 = vrot.slane %v1629, 4
      %v1631 = vrot.slane %v1364, 5
      %v1632 = vsel %vm584, %v1630, %v1631
      %v1633 = vrot.slane %v1588, 5
      %v1634 = vrot.slane %v1633, 4
      %v1635 = vrot.slane %v1366, 5
      %v1636 = vsel %vm584, %v1634, %v1635
      %s1637 = scalar_lea.vmem %s1, 16
      %v1638 = vld [vmem:[%s1637] sm:$0x3]
      %v1639 = vunpack.c.l.b16 %v1608
      %v1640 = vunpack.c.l.b16 %v1612
      %v1641 = vunpack.c.l.b16 %v1616
      %v1642 = vunpack.c.l.b16 %v1620
      %v1643 = vunpack.c.l.b16 %v1624
      %v1644 = vunpack.c.l.b16 %v1628
      %v1645 = vunpack.c.l.b16 %v1632
      %v1646 = vunpack.c.l.b16 %v1636
      %v1647 = vpack.c.b16 %v1640, %v1639
      %v1648 = vpack.c.b16 %v1642, %v1641
      %v1649 = vpack.c.b16 %v1644, %v1643
      %v1650 = vpack.c.b16 %v1646, %v1645
      %v1652 = vsel %vm235, %v1647, 0
      %v1655 = vsel %vm235, %v1648, 0
      %v1658 = vsel %vm235, %v1649, 0
      %v1661 = vsel %vm235, %v1650, 0
      %v1664 = vsel %vm248, %v1638, 0
      %1666 = vmatprep.subr.bf16.mxu0 0
      %1667 = vmatpush1.bf16.msra.mxu0 %v1664
      %1668 = vmatprep.subr.bf16.mxu0 0
      %1669 = vmatpush1.bf16.msra.mxu0 0
      %1670 = vmatprep.subr.bf16.mxu0 0
      %1671 = vmatpush1.bf16.msra.mxu0 0
      %1672 = vmatprep.subr.bf16.mxu0 0
      %1673 = vmatpush1.bf16.msra.mxu0 0
      %1674 = vmatprep.subr.bf16.mxu0 0
      %1675 = vmatpush1.bf16.msra.mxu0 0
      %1676 = vmatprep.subr.bf16.mxu0 0
      %1677 = vmatpush1.bf16.msra.mxu0 0
      %1678 = vmatprep.subr.bf16.mxu0 0
      %1679 = vmatpush1.bf16.msra.mxu0 0
      %1680 = vmatprep.subr.bf16.mxu0 0
      %1681 = vmatpush1.bf16.msra.mxu0 0
      %1682 = vmatprep.subr.bf16.mxu0 0
      %1683 = vmatpush1.bf16.msra.mxu0 0
      %1684 = vmatprep.subr.bf16.mxu0 0
      %1685 = vmatpush1.bf16.msra.mxu0 0
      %1686 = vmatprep.subr.bf16.mxu0 0
      %1687 = vmatpush1.bf16.msra.mxu0 0
      %1688 = vmatprep.subr.bf16.mxu0 0
      %1689 = vmatpush1.bf16.msra.mxu0 0
      %1690 = vmatprep.subr.bf16.mxu0 0
      %1691 = vmatpush1.bf16.msra.mxu0 0
      %1692 = vmatprep.subr.bf16.mxu0 0
      %1693 = vmatpush1.bf16.msra.mxu0 0
      %1694 = vmatprep.subr.bf16.mxu0 0
      %1695 = vmatpush1.bf16.msra.mxu0 0
      %1696 = vmatprep.subr.bf16.mxu0 0
      %1697 = vmatpush1.bf16.msra.mxu0 0
      %1698 = vmatprep.mubr.bf16.mxu0 0
      %1699 = vmatmul.mubr.bf16.gmra.mrb[0].mxu0 %v1652
      %v1700 = vpop.f32.mrb[0].mxu0
      %v1701 = vadd.f32 0.0, %v1700
      %v1702 = vpop.f32.mrb[0].mxu0
      %v1703 = vpop.f32.mrb[0].mxu0
      %v1704 = vadd.f32 0.0, %v1703
      %v1705 = vpop.f32.mrb[0].mxu0
      %1706 = vmatprep.mubr.bf16.mxu0 0
      %1707 = vmatmul.mubr.bf16.gmra.mrb[0].mxu0 %v1655
      %v1708 = vpop.f32.mrb[0].mxu0
      %v1709 = vadd.f32 0.0, %v1708
      %v1710 = vpop.f32.mrb[0].mxu0
      %v1711 = vpop.f32.mrb[0].mxu0
      %v1712 = vadd.f32 0.0, %v1711
      %v1713 = vpop.f32.mrb[0].mxu0
      %1714 = vmatprep.mubr.bf16.mxu0 0
      %1715 = vmatmul.mubr.bf16.gmra.mrb[0].mxu0 %v1658
      %v1716 = vpop.f32.mrb[0].mxu0
      %v1717 = vadd.f32 0.0, %v1716
      %v1718 = vpop.f32.mrb[0].mxu0
      %v1719 = vpop.f32.mrb[0].mxu0
      %v1720 = vadd.f32 0.0, %v1719
      %v1721 = vpop.f32.mrb[0].mxu0
      %1722 = vmatprep.mubr.bf16.mxu0 0
      %1723 = vmatmul.mubr.bf16.gmra.mrb[0].mxu0 %v1661
      %v1724 = vpop.f32.mrb[0].mxu0
      %v1725 = vadd.f32 0.0, %v1724
      %v1726 = vpop.f32.mrb[0].mxu0
      %v1727 = vpop.f32.mrb[0].mxu0
      %v1728 = vadd.f32 0.0, %v1727
      %v1729 = vpop.f32.mrb[0].mxu0
      %1730 = vdwg.mxu0
      %v1731 = vadd.f32 %v1573, %v1701
      %v1732 = vadd.f32 %v1574, %v1704
      %v1733 = vadd.f32 %v1575, %v1709
      %v1734 = vadd.f32 %v1576, %v1712
      %v1735 = vadd.f32 %v1577, %v1717
      %v1736 = vadd.f32 %v1578, %v1720
      %v1737 = vadd.f32 %v1579, %v1725
      %v1738 = vadd.f32 %v1580, %v1728
      %v1739 = vxor.u32 %v1731, 2147483648
      %v1740 = vxor.u32 %v1732, 2147483648
      %v1741 = vxor.u32 %v1733, 2147483648
      %v1742 = vxor.u32 %v1734, 2147483648
      %v1743 = vxor.u32 %v1735, 2147483648
      %v1744 = vxor.u32 %v1736, 2147483648
      %v1745 = vxor.u32 %v1737, 2147483648
      %v1746 = vxor.u32 %v1738, 2147483648
      %v1747 = vmul.f32 %v1739, 1.442695
      %v1748 = vpow.pop %v1747
      %v1749 = vmul.f32 %v1740, 1.442695
      %v1750 = vpow.pop %v1749
      %v1751 = vmul.f32 %v1741, 1.442695
      %v1752 = vpow.pop %v1751
      %v1753 = vmul.f32 %v1742, 1.442695
      %v1754 = vpow.pop %v1753
      %v1755 = vmul.f32 %v1743, 1.442695
      %v1756 = vpow.pop %v1755
      %v1757 = vmul.f32 %v1744, 1.442695
      %v1758 = vpow.pop %v1757
      %v1759 = vmul.f32 %v1745, 1.442695
      %v1760 = vpow.pop %v1759
      %v1761 = vmul.f32 %v1746, 1.442695
      %v1762 = vpow.pop %v1761
      %v1763 = vadd.f32 %v1748, 1.0
      %v1764 = vadd.f32 %v1750, 1.0
      %v1765 = vadd.f32 %v1752, 1.0
      %v1766 = vadd.f32 %v1754, 1.0
      %v1767 = vadd.f32 %v1756, 1.0
      %v1768 = vadd.f32 %v1758, 1.0
      %v1769 = vadd.f32 %v1760, 1.0
      %v1770 = vadd.f32 %v1762, 1.0
      %v1771 = vrcp.pop %v1763
      %v1772 = vmul.f32 1.0, %v1771
      %v1773 = vrcp.pop %v1764
      %v1774 = vmul.f32 1.0, %v1773
      %v1775 = vrcp.pop %v1765
      %v1776 = vmul.f32 1.0, %v1775
      %v1777 = vrcp.pop %v1766
      %v1778 = vmul.f32 1.0, %v1777
      %v1779 = vrcp.pop %v1767
      %v1780 = vmul.f32 1.0, %v1779
      %v1781 = vrcp.pop %v1768
      %v1782 = vmul.f32 1.0, %v1781
      %v1783 = vrcp.pop %v1769
      %v1784 = vmul.f32 1.0, %v1783
      %v1785 = vrcp.pop %v1770
      %v1786 = vmul.f32 1.0, %v1785
      %1788 = vset.pattern.permute.xlu0 8
      %1789 = vperm.xlu0 %1788, %v1772
      %v1790 = vpop.permute.xlu0 %1789
      %1793 = vset.pattern.permute.xlu0 8
      %1794 = vperm.xlu0 %1793, %v1774
      %v1795 = vpop.permute.xlu0 %1794
      %1798 = vset.pattern.permute.xlu0 8
      %1799 = vperm.xlu0 %1798, %v1776
      %v1800 = vpop.permute.xlu0 %1799
      %1803 = vset.pattern.permute.xlu0 8
      %1804 = vperm.xlu0 %1803, %v1778
      %v1805 = vpop.permute.xlu0 %1804
      %1808 = vset.pattern.permute.xlu0 8
      %1809 = vperm.xlu0 %1808, %v1780
      %v1810 = vpop.permute.xlu0 %1809
      %1813 = vset.pattern.permute.xlu0 8
      %1814 = vperm.xlu0 %1813, %v1782
      %v1815 = vpop.permute.xlu0 %1814
      %1818 = vset.pattern.permute.xlu0 8
      %1819 = vperm.xlu0 %1818, %v1784
      %v1820 = vpop.permute.xlu0 %1819
      %1823 = vset.pattern.permute.xlu0 8
      %1824 = vperm.xlu0 %1823, %v1786
      %v1825 = vpop.permute.xlu0 %1824
      %v1827 = vmul.f32 %v1731, %v1790
      %v1828 = vmul.f32 %v1732, %v1795
      %v1829 = vmul.f32 %v1733, %v1800
      %v1830 = vmul.f32 %v1734, %v1805
      %v1831 = vmul.f32 %v1735, %v1810
      %v1832 = vmul.f32 %v1736, %v1815
      %v1833 = vmul.f32 %v1737, %v1820
      %v1834 = vmul.f32 %v1738, %v1825
      %v1835 = vmax.f32 %v1827, 0.0
      %v1836 = vmax.f32 %v1828, 0.0
      %v1837 = vmax.f32 %v1829, 0.0
      %v1838 = vmax.f32 %v1830, 0.0
      %v1839 = vmax.f32 %v1831, 0.0
      %v1840 = vmax.f32 %v1832, 0.0
      %v1841 = vmax.f32 %v1833, 0.0
      %v1842 = vmax.f32 %v1834, 0.0
      %v1843 = vpack.c.bf16 %v1835, %v1835
      %v1844 = vpack.c.bf16 %v1836, %v1836
      %v1845 = vpack.c.bf16 %v1837, %v1837
      %v1846 = vpack.c.bf16 %v1838, %v1838
      %v1847 = vpack.c.bf16 %v1839, %v1839
      %v1848 = vpack.c.bf16 %v1840, %v1840
      %v1849 = vpack.c.bf16 %v1841, %v1841
      %v1850 = vpack.c.bf16 %v1842, %v1842
      %1851 = vst [vmem:[%s192] sm:$0xf] %v1843
      %1852 = vst [vmem:[%s192 + $0x4] sm:$0xf] %v1844
      %1853 = vst [vmem:[%s192 + $0x8] sm:$0xf] %v1845
      %1854 = vst [vmem:[%s192 + $0xc] sm:$0xf] %v1846
      %1855 = vst [vmem:[%s192 + $0x10] sm:$0xf] %v1847
      %1856 = vst [vmem:[%s192 + $0x14] sm:$0xf] %v1848
      %1857 = vst [vmem:[%s192 + $0x18] sm:$0xf] %v1849
      %1858 = vst [vmem:[%s192 + $0x1c] sm:$0xf] %v1850
      %s1859 = smul.u32 8, %s19
      %p1860 = scmp.lt.s32.totalorder %s18, 1
      %s1861 = scalar_select %p1860, %s18, 1
      %p1862 = scmp.lt.s32.totalorder %s1859, 7
      %s1863 = scalar_select %p1862, %s1859, 7
      %s1864 = smul.addr %s1861, 8
      %s1865 = sadd.s32 %s1863, %s1864
      %s1866 = smul.addr %s1865, 4
      %s1867 = scalar_lea.vmem %s3, %s1866
      // Predicated region
      $region33: #{down_lwgated.4} parent=31 // pred_check
        %p1868 = pneg %p114
      $region34: #{down_lwgated.4} parent=31 // pred_check_branch
        %1870 = sbr.rel (%p1868) target = $region36
      $region35: #{down_lwgated.4} parent=31 // pred_region
        %s1871 = smul.u32 8, %s19
      $region36: #{down_lwgated.4} parent=31 // pred_fallthru
        _
    $region32: #{down_lwgated.4} parent=5 // pred_fallthru
      _
    %p1872 = scmp.le.s32.totalorder 2, %s9
    // Predicated region
    $region37: #{down_lwgated.4} parent=5 // pred_check
      %p1873 = pneg %p1872
    $region38: #{down_lwgated.4} parent=5 // pred_check_branch
      %1875 = sbr.rel (%p1873) target = $region40
    $region39: #{down_lwgated.4} parent=5 // pred_region
      %s1876 = ssub.s32 %s9, 2
      // Predicated region
      $region41: #{down_lwgated.4} parent=39 // pred_check
        %p1877 = pneg %p120
      $region42: #{down_lwgated.4} parent=39 // pred_check_branch
        %1879 = sbr.rel (%p1877) target = $region44
      $region43: #{down_lwgated.4} parent=39 // pred_region
        %s1880 = smul.u32 8, %s21
        %p1881 = scmp.lt.s32.totalorder %s20, 1
        %s1882 = scalar_select %p1881, %s20, 1
        %p1883 = scmp.lt.s32.totalorder %s1880, 7
        %s1884 = scalar_select %p1883, %s1880, 7
        %s1885 = smul.addr %s1882, 8
        %s1886 = sadd.s32 %s1884, %s1885
        %s1887 = smul.addr %s1886, 4
        %s1888 = scalar_lea.vmem %s3, %s1887
      $region44: #{down_lwgated.4} parent=39 // pred_fallthru
        _
    $region40: #{down_lwgated.4} parent=5 // pred_fallthru
      _
  $region6: #{down_lwgated.4} parent=0 // loop_footer
    %s13 = sadd.s32 1, %s9
  $region7: #{down_lwgated.4} parent=0 // loop_footer_branch
    %8 = sbr.rel target = $region3
  $region8: #{down_lwgated.4} parent=0 // loop_exit
    _

// kernel: down_lwgated.3
$region0: #{down_lwgated.3}
  #allocation0 [shape = 'u32[]', space=smem, size = 0x4, offset = 0x4, fixed_abs, tag = 'smem constant byte address 0x4 - core index']
  #allocation1 [shape = 'u32[144,128]{1,0:T(1,128)}', space=vmem, size = 0x12000, scoped, tag = 'internal scratch']
  %s0 = inlined_call_operand.vmem [shape: bf16[2,9,2,9,8], index: 0, kind: input, shape index: {}]
  %s1 = inlined_call_operand.vmem [shape: bf16[9,4,128], index: 1, kind: input, shape index: {}]
  %s2 = inlined_call_operand.vmem [shape: f32[1,128], index: 2, kind: input, shape index: {}]
  %s3 = inlined_call_operand.vmem [shape: bf16[2,8,8,128], index: 3, kind: output, shape index: {}]
  %s4 = sld [smem:[#allocation0]]
  $region45: #{down_lwgated.3} parent=0
    _
  %s6 = ssub.s32 1, %s4
  %s7 = scalar_select 0, %s6, %s4
  loop: start=0, step=1, limit=4
  $region2: #{down_lwgated.3} parent=0 // loop_pre_header
    _
  $region3: #{down_lwgated.3} parent=0 // loop_header
    %s9 = sphi 0, %s13
    %p10 = scmp.ge.s32.totalorder %s9, 4
    %s16 = sphi 0, %s28
    %s17 = sphi 0, %s24
    %s18 = sphi 0, %s16
    %s19 = sphi 0, %s17
    %s20 = sphi 0, %s18
    %s21 = sphi 0, %s19
    %s31 = sphi 0, %s33
    %s34 = sphi 0, %s31
    %s35 = sphi 0, %s34
    %s51 = sphi 0, %s35
    %s55 = sphi 0, %s55
    %s57 = sphi 0, %s55
    %s58 = sphi 0, %s57
    %s72 = sphi 0, %s58
    %s76 = sphi 0, %s76
    %s78 = sphi 0, %s76
    %s79 = sphi 0, %s78
    %s93 = sphi 0, %s79
    %s101 = sphi 0, %s103
    %s104 = sphi 0, %s101
    %s105 = sphi 0, %s104
    %s121 = sphi 0, %s105
  $region4: #{down_lwgated.3} parent=0 // loop_header_branch
    %12 = sbr.rel (%p10) target = $region8
  $region5: #{down_lwgated.3} parent=0 // loop_body
    %s14 = ssub.s32 %s9, 1
    %s15 = ssub.s32 %s9, 2
    %s22 = sadd.s32 1, %s17
    %p23 = scmp.ge.s32.totalorder %s22, 1
    %s24 = scalar_select %p23, 0, %s22
    %s25 = sadd.s32 1, %s16
    %s26 = scalar_select %p23, %s25, %s16
    %p27 = scmp.ge.s32.totalorder %s26, 2
    %s28 = scalar_select %p27, 0, %s26
    %s29 = ssub.s32 %s16, %s28
    %p30 = scmp.eq.s32.totalorder %s29, 0
    %s32 = sadd.s32 %s31, 1
    %s33 = scalar_select %p30, %s31, %s32
    %p36 = pneg %p30
    %p37 = scmp.eq.s32.totalorder %s9, 1
    %p38 = por %p36, %p37
    %p39 = scmp.ne.s32.totalorder %s31, %s34
    %p40 = scmp.eq.s32.totalorder %s9, 0
    %p41 = por %p39, %p40
    %p42 = scmp.ne.s32.totalorder %s31, %s34
    %p43 = scmp.eq.s32.totalorder %s14, 1
    %p44 = por %p42, %p43
    %p45 = scmp.ne.s32.totalorder %s34, %s35
    %p46 = scmp.eq.s32.totalorder %s14, 0
    %p47 = por %p45, %p46
    %p48 = scmp.ne.s32.totalorder %s34, %s35
    %p49 = scmp.eq.s32.totalorder %s15, 1
    %p50 = por %p48, %p49
    %p52 = scmp.ne.s32.totalorder %s35, %s51
    %p53 = scmp.eq.s32.totalorder %s15, 0
    %p54 = por %p52, %p53
    %s56 = sadd.s32 %s55, 1
    %p59 = scmp.eq.s32.totalorder %s9, 1
    %p60 = scmp.ne.s32.totalorder %s55, %s57
    %p61 = scmp.eq.s32.totalorder %s9, 0
    %p62 = por %p60, %p61
    %p63 = scmp.ne.s32.totalorder %s55, %s57
    %p64 = scmp.eq.s32.totalorder %s14, 1
    %p65 = por %p63, %p64
    %p66 = scmp.ne.s32.totalorder %s57, %s58
    %p67 = scmp.eq.s32.totalorder %s14, 0
    %p68 = por %p66, %p67
    %p69 = scmp.ne.s32.totalorder %s57, %s58
    %p70 = scmp.eq.s32.totalorder %s15, 1
    %p71 = por %p69, %p70
    %p73 = scmp.ne.s32.totalorder %s58, %s72
    %p74 = scmp.eq.s32.totalorder %s15, 0
    %p75 = por %p73, %p74
    %s77 = sadd.s32 %s76, 1
    %p80 = scmp.eq.s32.totalorder %s9, 1
    %p81 = scmp.ne.s32.totalorder %s76, %s78
    %p82 = scmp.eq.s32.totalorder %s9, 0
    %p83 = por %p81, %p82
    %p84 = scmp.ne.s32.totalorder %s76, %s78
    %p85 = scmp.eq.s32.totalorder %s14, 1
    %p86 = por %p84, %p85
    %p87 = scmp.ne.s32.totalorder %s78, %s79
    %p88 = scmp.eq.s32.totalorder %s14, 0
    %p89 = por %p87, %p88
    %p90 = scmp.ne.s32.totalorder %s78, %s79
    %p91 = scmp.eq.s32.totalorder %s15, 1
    %p92 = por %p90, %p91
    %p94 = scmp.ne.s32.totalorder %s79, %s93
    %p95 = scmp.eq.s32.totalorder %s15, 0
    %p96 = por %p94, %p95
    %s97 = ssub.s32 %s16, %s28
    %s98 = ssub.s32 %s17, %s24
    %s99 = sor.u32 %s97, %s98
    %p100 = scmp.eq.s32.totalorder %s99, 0
    %s102 = sadd.s32 %s101, 1
    %s103 = scalar_select %p100, %s101, %s102
    %p106 = pneg %p100
    %p107 = scmp.eq.s32.totalorder %s9, 1
    %p108 = por %p106, %p107
    %p109 = scmp.ne.s32.totalorder %s101, %s104
    %p110 = scmp.eq.s32.totalorder %s9, 0
    %p111 = por %p109, %p110
    %p112 = scmp.ne.s32.totalorder %s101, %s104
    %p113 = scmp.eq.s32.totalorder %s14, 1
    %p114 = por %p112, %p113
    %p115 = scmp.ne.s32.totalorder %s104, %s105
    %p116 = scmp.eq.s32.totalorder %s14, 0
    %p117 = por %p115, %p116
    %p118 = scmp.ne.s32.totalorder %s104, %s105
    %p119 = scmp.eq.s32.totalorder %s15, 1
    %p120 = por %p118, %p119
    %p122 = scmp.ne.s32.totalorder %s105, %s121
    %p123 = scmp.eq.s32.totalorder %s15, 0
    %p124 = por %p122, %p123
    %p125 = scmp.le.s32.totalorder 1, %s9
    %p126 = scmp.lt.s32.totalorder %s9, 3
    %p127 = pnand %p125, %p126
    %p128 = pneg %p127
    // Predicated region
    $region9: #{down_lwgated.3} parent=5 // pred_check
      _
    $region10: #{down_lwgated.3} parent=5 // pred_check_branch
      %130 = sbr.rel (%p127) target = $region12
    $region11: #{down_lwgated.3} parent=5 // pred_region
      %s131 = ssub.s32 %s9, 1
      // Predicated region
      $region13: #{down_lwgated.3} parent=11 // pred_check
        %p132 = pneg %p68
      $region14: #{down_lwgated.3} parent=11 // pred_check_branch
        %134 = sbr.rel (%p132) target = $region16
      $region15: #{down_lwgated.3} parent=11 // pred_region
        _
      $region16: #{down_lwgated.3} parent=11 // pred_fallthru
        _
      // Predicated region
      $region17: #{down_lwgated.3} parent=11 // pred_check
        %p135 = pneg %p89
      $region18: #{down_lwgated.3} parent=11 // pred_check_branch
        %137 = sbr.rel (%p135) target = $region20
      $region19: #{down_lwgated.3} parent=11 // pred_region
        _
      $region20: #{down_lwgated.3} parent=11 // pred_fallthru
        _
    $region12: #{down_lwgated.3} parent=5 // pred_fallthru
      _
    %p138 = scmp.lt.s32.totalorder %s9, 2
    // Predicated region
    $region21: #{down_lwgated.3} parent=5 // pred_check
      %p139 = pneg %p138
    $region22: #{down_lwgated.3} parent=5 // pred_check_branch
      %141 = sbr.rel (%p139) target = $region24
    $region23: #{down_lwgated.3} parent=5 // pred_region
      // Predicated region
      $region25: #{down_lwgated.3} parent=23 // pred_check
        %p142 = pneg %p41
      $region26: #{down_lwgated.3} parent=23 // pred_check_branch
        %144 = sbr.rel (%p142) target = $region28
      $region27: #{down_lwgated.3} parent=23 // pred_region
        %p145 = scmp.lt.s32.totalorder %s16, 1
        %s146 = scalar_select %p145, %s16, 1
        %s147 = smul.addr %s146, 36
        %s148 = smul.addr %s147, 4
        %s149 = scalar_lea.vmem %s0, %s148
      $region28: #{down_lwgated.3} parent=23 // pred_fallthru
        _
    $region24: #{down_lwgated.3} parent=5 // pred_fallthru
      _
    %p150 = scmp.le.s32.totalorder 1, %s9
    %p151 = scmp.lt.s32.totalorder %s9, 3
    %p152 = pnand %p150, %p151
    %p153 = pneg %p152
    // Predicated region
    $region29: #{down_lwgated.3} parent=5 // pred_check
      _
    $region30: #{down_lwgated.3} parent=5 // pred_check_branch
      %155 = sbr.rel (%p152) target = $region32
    $region31: #{down_lwgated.3} parent=5 // pred_region
      %s156 = ssub.s32 %s9, 1
      %p157 = scmp.lt.s32.totalorder %s18, 1
      %s158 = scalar_select %p157, %s18, 1
      %s159 = smul.addr %s158, 36
      %s160 = smul.addr %s159, 4
      %s161 = scalar_lea.vmem %s0, %s160
      %p162 = pneg %p47
      %p163 = pneg %p44
      %p164 = pneg %p68
      %p165 = pneg %p65
      %p166 = pneg %p89
      %p167 = pneg %p86
      %p168 = pneg %p117
      %p169 = pneg %p114
      %s170 = smul.u32 8, %s19
      %p171 = scmp.lt.s32.totalorder %s18, 1
      %s172 = scalar_select %p171, %s18, 1
      %p173 = scmp.lt.s32.totalorder %s170, 7
      %s174 = scalar_select %p173, %s170, 7
      %s175 = smul.addr %s172, 8
      %s176 = sadd.s32 %s174, %s175
      %s177 = smul.addr %s176, 4
      %s178 = scalar_lea.vmem %s3, %s177
      %p179 = scmp.lt.s32.totalorder %s18, 1
      %s180 = scalar_select %p179, %s18, 1
      %s181 = smul.addr %s180, 36
      %s182 = smul.addr %s181, 4
      %s183 = scalar_lea.vmem %s0, %s182
      %s184 = smul.u32 8, %s19
      %p185 = scmp.lt.s32.totalorder %s18, 1
      %s186 = scalar_select %p185, %s18, 1
      %p187 = scmp.lt.s32.totalorder %s184, 7
      %s188 = scalar_select %p187, %s184, 7
      %s189 = smul.addr %s186, 8
      %s190 = sadd.s32 %s188, %s189
      %s191 = smul.addr %s190, 4
      %s192 = scalar_lea.vmem %s3, %s191
      %s193 = smul.u32 8, %s19
      %s195 = smul.u32 %s19, 8
      %v196 = vld [vmem:[%s2] sm:$0x1]
      %v198 = vlaneseq
      %v199 = vshrl.u32 %v198, 7
      %v200 = vsub.s32 0, %v199
      %v201 = vrot.slane %v196, %v200
      %s203 = smul.u32 %s195, 4
      %s204 = smul.addr %s203, 4
      %s205 = scalar_lea.vmem %s183, %s204
      %v206 = vld [vmem:[%s205] sm:$0xf]
      %v207 = vld [vmem:[%s205 + $0x10] sm:$0xf]
      %v208 = vld [vmem:[%s205 + $0x20] sm:$0xf]
      %v209 = vld [vmem:[%s205 + $0x30] sm:$0xf]
      %v210 = vld [vmem:[%s205 + $0x40] sm:$0xf]
      %v211 = vld [vmem:[%s205 + $0x50] sm:$0xf]
      %v212 = vld [vmem:[%s205 + $0x60] sm:$0xf]
      %v213 = vld [vmem:[%s205 + $0x70] sm:$0xf]
      %v214 = vld [vmem:[%s1] sm:$0x3]
      %v223 = vunpack.c.l.b16 %v206
      %v224 = vunpack.c.l.b16 %v207
      %v225 = vunpack.c.l.b16 %v208
      %v226 = vunpack.c.l.b16 %v209
      %v227 = vunpack.c.l.b16 %v210
      %v228 = vunpack.c.l.b16 %v211
      %v229 = vunpack.c.l.b16 %v212
      %v230 = vunpack.c.l.b16 %v213
      %v231 = vpack.c.b16 %v224, %v223
      %v232 = vpack.c.b16 %v226, %v225
      %v233 = vpack.c.b16 %v228, %v227
      %v234 = vpack.c.b16 %v230, %v229
      %vm235 = vcmask 31744
      %v237 = vsel %vm235, %v231, 0
      %v240 = vsel %vm235, %v232, 0
      %v243 = vsel %vm235, %v233, 0
      %v246 = vsel %vm235, %v234, 0
      %vm248 = vcmask 1041408
      %v250 = vsel %vm248, %v214, 0
      %252 = vmatprep.subr.bf16.mxu0 0
      %253 = vmatpush1.bf16.msra.mxu0 %v250
      %254 = vmatprep.subr.bf16.mxu0 0
      %255 = vmatpush1.bf16.msra.mxu0 0
      %256 = vmatprep.subr.bf16.mxu0 0
      %257 = vmatpush1.bf16.msra.mxu0 0
      %258 = vmatprep.subr.bf16.mxu0 0
      %259 = vmatpush1.bf16.msra.mxu0 0
      %260 = vmatprep.subr.bf16.mxu0 0
      %261 = vmatpush1.bf16.msra.mxu0 0
      %262 = vmatprep.subr.bf16.mxu0 0
      %263 = vmatpush1.bf16.msra.mxu0 0
      %264 = vmatprep.subr.bf16.mxu0 0
      %265 = vmatpush1.bf16.msra.mxu0 0
      %266 = vmatprep.subr.bf16.mxu0 0
      %267 = vmatpush1.bf16.msra.mxu0 0
      %268 = vmatprep.subr.bf16.mxu0 0
      %269 = vmatpush1.bf16.msra.mxu0 0
      %270 = vmatprep.subr.bf16.mxu0 0
      %271 = vmatpush1.bf16.msra.mxu0 0
      %272 = vmatprep.subr.bf16.mxu0 0
      %273 = vmatpush1.bf16.msra.mxu0 0
      %274 = vmatprep.subr.bf16.mxu0 0
      %275 = vmatpush1.bf16.msra.mxu0 0
      %276 = vmatprep.subr.bf16.mxu0 0
      %277 = vmatpush1.bf16.msra.mxu0 0
      %278 = vmatprep.subr.bf16.mxu0 0
      %279 = vmatpush1.bf16.msra.mxu0 0
      %280 = vmatprep.subr.bf16.mxu0 0
      %281 = vmatpush1.bf16.msra.mxu0 0
      %282 = vmatprep.subr.bf16.mxu0 0
      %283 = vmatpush1.bf16.msra.mxu0 0
      %284 = vmatprep.mubr.bf16.mxu0 0
      %285 = vmatmul.mubr.bf16.gmra.mrb[0].mxu0 %v237
      %v286 = vpop.f32.mrb[0].mxu0
      %v287 = vadd.f32 0.0, %v286
      %v288 = vpop.f32.mrb[0].mxu0
      %v289 = vpop.f32.mrb[0].mxu0
      %v290 = vadd.f32 0.0, %v289
      %v291 = vpop.f32.mrb[0].mxu0
      %292 = vmatprep.mubr.bf16.mxu0 0
      %293 = vmatmul.mubr.bf16.gmra.mrb[0].mxu0 %v240
      %v294 = vpop.f32.mrb[0].mxu0
      %v295 = vadd.f32 0.0, %v294
      %v296 = vpop.f32.mrb[0].mxu0
      %v297 = vpop.f32.mrb[0].mxu0
      %v298 = vadd.f32 0.0, %v297
      %v299 = vpop.f32.mrb[0].mxu0
      %300 = vmatprep.mubr.bf16.mxu0 0
      %301 = vmatmul.mubr.bf16.gmra.mrb[0].mxu0 %v243
      %v302 = vpop.f32.mrb[0].mxu0
      %v303 = vadd.f32 0.0, %v302
      %v304 = vpop.f32.mrb[0].mxu0
      %v305 = vpop.f32.mrb[0].mxu0
      %v306 = vadd.f32 0.0, %v305
      %v307 = vpop.f32.mrb[0].mxu0
      %308 = vmatprep.mubr.bf16.mxu0 0
      %309 = vmatmul.mubr.bf16.gmra.mrb[0].mxu0 %v246
      %v310 = vpop.f32.mrb[0].mxu0
      %v311 = vadd.f32 0.0, %v310
      %v312 = vpop.f32.mrb[0].mxu0
      %v313 = vpop.f32.mrb[0].mxu0
      %v314 = vadd.f32 0.0, %v313
      %v315 = vpop.f32.mrb[0].mxu0
      %316 = vdwg.mxu0
      %v317 = vadd.f32 %v201, %v287
      %v318 = vadd.f32 %v201, %v290
      %v319 = vadd.f32 %v201, %v295
      %v320 = vadd.f32 %v201, %v298
      %v321 = vadd.f32 %v201, %v303
      %v322 = vadd.f32 %v201, %v306
      %v323 = vadd.f32 %v201, %v311
      %v324 = vadd.f32 %v201, %v314
      %s325 = scalar_lea.vmem %s1, 2
      %v326 = vld [vmem:[%s325] sm:$0x3]
      %327 = vrot.lane.b32.xlu0 %v231, 124
      %v328 = vpop.permute.xlu0 %327
      %329 = vrot.lane.b32.xlu0 %v232, 124
      %v330 = vpop.permute.xlu0 %329
      %331 = vrot.lane.b32.xlu0 %v233, 124
      %v332 = vpop.permute.xlu0 %331
      %333 = vrot.lane.b32.xlu0 %v234, 124
      %v334 = vpop.permute.xlu0 %333
      %v336 = vsel %vm235, %v328, 0
      %v339 = vsel %vm235, %v330, 0
      %v342 = vsel %vm235, %v332, 0
      %v345 = vsel %vm235, %v334, 0
      %v348 = vsel %vm248, %v326, 0
      %350 = vmatprep.subr.bf16.mxu0 0
      %351 = vmatpush1.bf16.msra.mxu0 %v348
      %352 = vmatprep.subr.bf16.mxu0 0
      %353 = vmatpush1.bf16.msra.mxu0 0
      %354 = vmatprep.subr.bf16.mxu0 0
      %355 = vmatpush1.bf16.msra.mxu0 0
      %356 = vmatprep.subr.bf16.mxu0 0
      %357 = vmatpush1.bf16.msra.mxu0 0
      %358 = vmatprep.subr.bf16.mxu0 0
      %359 = vmatpush1.bf16.msra.mxu0 0
      %360 = vmatprep.subr.bf16.mxu0 0
      %361 = vmatpush1.bf16.msra.mxu0 0
      %362 = vmatprep.subr.bf16.mxu0 0
      %363 = vmatpush1.bf16.msra.mxu0 0
      %364 = vmatprep.subr.bf16.mxu0 0
      %365 = vmatpush1.bf16.msra.mxu0 0
      %366 = vmatprep.subr.bf16.mxu0 0
      %367 = vmatpush1.bf16.msra.mxu0 0
      %368 = vmatprep.subr.bf16.mxu0 0
      %369 = vmatpush1.bf16.msra.mxu0 0
      %370 = vmatprep.subr.bf16.mxu0 0
      %371 = vmatpush1.bf16.msra.mxu0 0
      %372 = vmatprep.subr.bf16.mxu0 0
      %373 = vmatpush1.bf16.msra.mxu0 0
      %374 = vmatprep.subr.bf16.mxu0 0
      %375 = vmatpush1.bf16.msra.mxu0 0
      %376 = vmatprep.subr.bf16.mxu0 0
      %377 = vmatpush1.bf16.msra.mxu0 0
      %378 = vmatprep.subr.bf16.mxu0 0
      %379 = vmatpush1.bf16.msra.mxu0 0
      %380 = vmatprep.subr.bf16.mxu0 0
      %381 = vmatpush1.bf16.msra.mxu0 0
      %382 = vmatprep.mubr.bf16.mxu0 0
      %383 = vmatmul.mubr.bf16.gmra.mrb[0].mxu0 %v336
      %v384 = vpop.f32.mrb[0].mxu0
      %v385 = vadd.f32 0.0, %v384
      %v386 = vpop.f32.mrb[0].mxu0
      %v387 = vpop.f32.mrb[0].mxu0
      %v388 = vadd.f32 0.0, %v387
      %v389 = vpop.f32.mrb[0].mxu0
      %390 = vmatprep.mubr.bf16.mxu0 0
      %391 = vmatmul.mubr.bf16.gmra.mrb[0].mxu0 %v339
      %v392 = vpop.f32.mrb[0].mxu0
      %v393 = vadd.f32 0.0, %v392
      %v394 = vpop.f32.mrb[0].mxu0
      %v395 = vpop.f32.mrb[0].mxu0
      %v396 = vadd.f32 0.0, %v395
      %v397 = vpop.f32.mrb[0].mxu0
      %398 = vmatprep.mubr.bf16.mxu0 0
      %399 = vmatmul.mubr.bf16.gmra.mrb[0].mxu0 %v342
      %v400 = vpop.f32.mrb[0].mxu0
      %v401 = vadd.f32 0.0, %v400
      %v402 = vpop.f32.mrb[0].mxu0
      %v403 = vpop.f32.mrb[0].mxu0
      %v404 = vadd.f32 0.0, %v403
      %v405 = vpop.f32.mrb[0].mxu0
      %406 = vmatprep.mubr.bf16.mxu0 0
      %407 = vmatmul.mubr.bf16.gmra.mrb[0].mxu0 %v345
      %v408 = vpop.f32.mrb[0].mxu0
      %v409 = vadd.f32 0.0, %v408
      %v410 = vpop.f32.mrb[0].mxu0
      %v411 = vpop.f32.mrb[0].mxu0
      %v412 = vadd.f32 0.0, %v411
      %v413 = vpop.f32.mrb[0].mxu0
      %414 = vdwg.mxu0
      %v415 = vadd.f32 %v317, %v385
      %v416 = vadd.f32 %v318, %v388
      %v417 = vadd.f32 %v319, %v393
      %v418 = vadd.f32 %v320, %v396
      %v419 = vadd.f32 %v321, %v401
      %v420 = vadd.f32 %v322, %v404
      %v421 = vadd.f32 %v323, %v409
      %v422 = vadd.f32 %v324, %v412
      %v423 = vld [vmem:[%s205] sm:$0xf]
      %v424 = vld [vmem:[%s205 + $0x4] sm:$0x1]
      %v425 = vld [vmem:[%s205 + $0x10] sm:$0xf]
      %v426 = vld [vmem:[%s205 + $0x14] sm:$0x1]
      %v427 = vld [vmem:[%s205 + $0x20] sm:$0xf]
      %v428 = vld [vmem:[%s205 + $0x24] sm:$0x1]
      %v429 = vld [vmem:[%s205 + $0x30] sm:$0xf]
      %v430 = vld [vmem:[%s205 + $0x34] sm:$0x1]
      %v431 = vld [vmem:[%s205 + $0x40] sm:$0xf]
      %v432 = vld [vmem:[%s205 + $0x44] sm:$0x1]
      %v433 = vld [vmem:[%s205 + $0x50] sm:$0xf]
      %v434 = vld [vmem:[%s205 + $0x54] sm:$0x1]
      %v435 = vld [vmem:[%s205 + $0x60] sm:$0xf]
      %v436 = vld [vmem:[%s205 + $0x64] sm:$0x1]
      %v437 = vld [vmem:[%s205 + $0x70] sm:$0xf]
      %v438 = vld [vmem:[%s205 + $0x74] sm:$0x1]
      %vm439 = vsmask.f32 3328
      %vm440 = vsmask.f32 7440
      %vm441 = vmor %vm439, %vm440
      %v443 = vshrl.u32 %v423, 16
      %v445 = vrot.slane %v443, 4
      %v446 = vshll.u32 %v423, 16
      %v448 = vrot.slane %v446, 5
      %v449 = vor.u32 %v445, %v448
      %v450 = vrot.slane %v449, 4
      %v452 = vshll.u32 %v424, 16
      %v454 = vrot.slane %v452, 5
      %v455 = vsel %vm441, %v450, %v454
      %v457 = vshrl.u32 %v425, 16
      %v459 = vrot.slane %v457, 4
      %v460 = vshll.u32 %v425, 16
      %v462 = vrot.slane %v460, 5
      %v463 = vor.u32 %v459, %v462
      %v464 = vrot.slane %v463, 4
      %v466 = vshll.u32 %v426, 16
      %v468 = vrot.slane %v466, 5
      %v469 = vsel %vm441, %v464, %v468
      %v471 = vshrl.u32 %v427, 16
      %v473 = vrot.slane %v471, 4
      %v474 = vshll.u32 %v427, 16
      %v476 = vrot.slane %v474, 5
      %v477 = vor.u32 %v473, %v476
      %v478 = vrot.slane %v477, 4
      %v480 = vshll.u32 %v428, 16
      %v482 = vrot.slane %v480, 5
      %v483 = vsel %vm441, %v478, %v482
      %v485 = vshrl.u32 %v429, 16
      %v487 = vrot.slane %v485, 4
      %v488 = vshll.u32 %v429, 16
      %v490 = vrot.slane %v488, 5
      %v491 = vor.u32 %v487, %v490
      %v492 = vrot.slane %v491, 4
      %v494 = vshll.u32 %v430, 16
      %v496 = vrot.slane %v494, 5
      %v497 = vsel %vm441, %v492, %v496
      %v499 = vshrl.u32 %v431, 16
      %v501 = vrot.slane %v499, 4
      %v502 = vshll.u32 %v431, 16
      %v504 = vrot.slane %v502, 5
      %v505 = vor.u32 %v501, %v504
      %v506 = vrot.slane %v505, 4
      %v508 = vshll.u32 %v432, 16
      %v510 = vrot.slane %v508, 5
      %v511 = vsel %vm441, %v506, %v510
      %v513 = vshrl.u32 %v433, 16
      %v515 = vrot.slane %v513, 4
      %v516 = vshll.u32 %v433, 16
      %v518 = vrot.slane %v516, 5
      %v519 = vor.u32 %v515, %v518
      %v520 = vrot.slane %v519, 4
      %v522 = vshll.u32 %v434, 16
      %v524 = vrot.slane %v522, 5
      %v525 = vsel %vm441, %v520, %v524
      %v527 = vshrl.u32 %v435, 16
      %v529 = vrot.slane %v527, 4
      %v530 = vshll.u32 %v435, 16
      %v532 = vrot.slane %v530, 5
      %v533 = vor.u32 %v529, %v532
      %v534 = vrot.slane %v533, 4
      %v536 = vshll.u32 %v436, 16
      %v538 = vrot.slane %v536, 5
      %v539 = vsel %vm441, %v534, %v538
      %v541 = vshrl.u32 %v437, 16
      %v543 = vrot.slane %v541, 4
      %v544 = vshll.u32 %v437, 16
      %v546 = vrot.slane %v544, 5
      %v547 = vor.u32 %v543, %v546
      %v548 = vrot.slane %v547, 4
      %v550 = vshll.u32 %v438, 16
      %v552 = vrot.slane %v550, 5
      %v553 = vsel %vm441, %v548, %v552
      %s554 = scalar_lea.vmem %s1, 4
      %v555 = vld [vmem:[%s554] sm:$0x3]
      %v556 = vunpack.c.l.b16 %v455
      %v557 = vunpack.c.l.b16 %v469
      %v558 = vunpack.c.l.b16 %v483
      %v559 = vunpack.c.l.b16 %v497
      %v560 = vunpack.c.l.b16 %v511
      %v561 = vunpack.c.l.b16 %v525
      %v562 = vunpack.c.l.b16 %v539
      %v563 = vunpack.c.l.b16 %v553
      %v564 = vpack.c.b16 %v557, %v556
      %v565 = vpack.c.b16 %v559, %v558
      %v566 = vpack.c.b16 %v561, %v560
      %v567 = vpack.c.b16 %v563, %v562
      %v569 = vsel %vm235, %v564, 0
      %v572 = vsel %vm235, %v565, 0
      %v575 = vsel %vm235, %v566, 0
      %v578 = vsel %vm235, %v567, 0
      %v581 = vsel %vm248, %v555, 0
      %583 = vmatprep.subr.bf16.mxu0 0
      %584 = vmatpush1.bf16.msra.mxu0 %v581
      %585 = vmatprep.subr.bf16.mxu0 0
      %586 = vmatpush1.bf16.msra.mxu0 0
      %587 = vmatprep.subr.bf16.mxu0 0
      %588 = vmatpush1.bf16.msra.mxu0 0
      %589 = vmatprep.subr.bf16.mxu0 0
      %590 = vmatpush1.bf16.msra.mxu0 0
      %591 = vmatprep.subr.bf16.mxu0 0
      %592 = vmatpush1.bf16.msra.mxu0 0
      %593 = vmatprep.subr.bf16.mxu0 0
      %594 = vmatpush1.bf16.msra.mxu0 0
      %595 = vmatprep.subr.bf16.mxu0 0
      %596 = vmatpush1.bf16.msra.mxu0 0
      %597 = vmatprep.subr.bf16.mxu0 0
      %598 = vmatpush1.bf16.msra.mxu0 0
      %599 = vmatprep.subr.bf16.mxu0 0
      %600 = vmatpush1.bf16.msra.mxu0 0
      %601 = vmatprep.subr.bf16.mxu0 0
      %602 = vmatpush1.bf16.msra.mxu0 0
      %603 = vmatprep.subr.bf16.mxu0 0
      %604 = vmatpush1.bf16.msra.mxu0 0
      %605 = vmatprep.subr.bf16.mxu0 0
      %606 = vmatpush1.bf16.msra.mxu0 0
      %607 = vmatprep.subr.bf16.mxu0 0
      %608 = vmatpush1.bf16.msra.mxu0 0
      %609 = vmatprep.subr.bf16.mxu0 0
      %610 = vmatpush1.bf16.msra.mxu0 0
      %611 = vmatprep.subr.bf16.mxu0 0
      %612 = vmatpush1.bf16.msra.mxu0 0
      %613 = vmatprep.subr.bf16.mxu0 0
      %614 = vmatpush1.bf16.msra.mxu0 0
      %615 = vmatprep.mubr.bf16.mxu0 0
      %616 = vmatmul.mubr.bf16.gmra.mrb[0].mxu0 %v569
      %v617 = vpop.f32.mrb[0].mxu0
      %v618 = vadd.f32 0.0, %v617
      %v619 = vpop.f32.mrb[0].mxu0
      %v620 = vpop.f32.mrb[0].mxu0
      %v621 = vadd.f32 0.0, %v620
      %v622 = vpop.f32.mrb[0].mxu0
      %623 = vmatprep.mubr.bf16.mxu0 0
      %624 = vmatmul.mubr.bf16.gmra.mrb[0].mxu0 %v572
      %v625 = vpop.f32.mrb[0].mxu0
      %v626 = vadd.f32 0.0, %v625
      %v627 = vpop.f32.mrb[0].mxu0
      %v628 = vpop.f32.mrb[0].mxu0
      %v629 = vadd.f32 0.0, %v628
      %v630 = vpop.f32.mrb[0].mxu0
      %631 = vmatprep.mubr.bf16.mxu0 0
      %632 = vmatmul.mubr.bf16.gmra.mrb[0].mxu0 %v575
      %v633 = vpop.f32.mrb[0].mxu0
      %v634 = vadd.f32 0.0, %v633
      %v635 = vpop.f32.mrb[0].mxu0
      %v636 = vpop.f32.mrb[0].mxu0
      %v637 = vadd.f32 0.0, %v636
      %v638 = vpop.f32.mrb[0].mxu0
      %639 = vmatprep.mubr.bf16.mxu0 0
      %640 = vmatmul.mubr.bf16.gmra.mrb[0].mxu0 %v578
      %v641 = vpop.f32.mrb[0].mxu0
      %v642 = vadd.f32 0.0, %v641
      %v643 = vpop.f32.mrb[0].mxu0
      %v644 = vpop.f32.mrb[0].mxu0
      %v645 = vadd.f32 0.0, %v644
      %v646 = vpop.f32.mrb[0].mxu0
      %647 = vdwg.mxu0
      %v648 = vadd.f32 %v415, %v618
      %v649 = vadd.f32 %v416, %v621
      %v650 = vadd.f32 %v417, %v626
      %v651 = vadd.f32 %v418, %v629
      %v652 = vadd.f32 %v419, %v634
      %v653 = vadd.f32 %v420, %v637
      %v654 = vadd.f32 %v421, %v642
      %v655 = vadd.f32 %v422, %v645
      %s656 = sadd.s32 2, %s203
      %s657 = smul.addr %s656, 4
      %s658 = scalar_lea.vmem %s183, %s657
      %v659 = vld [vmem:[%s658] sm:$0xf]
      %v660 = vld [vmem:[%s658 + $0x10] sm:$0xf]
      %v661 = vld [vmem:[%s658 + $0x20] sm:$0xf]
      %v662 = vld [vmem:[%s658 + $0x30] sm:$0xf]
      %v663 = vld [vmem:[%s658 + $0x40] sm:$0xf]
      %v664 = vld [vmem:[%s658 + $0x50] sm:$0xf]
      %v665 = vld [vmem:[%s658 + $0x60] sm:$0xf]
      %v666 = vld [vmem:[%s658 + $0x70] sm:$0xf]
      %s667 = scalar_lea.vmem %s1, 6
      %v668 = vld [vmem:[%s667] sm:$0x3]
      %v677 = vunpack.c.l.b16 %v659
      %v678 = vunpack.c.l.b16 %v660
      %v679 = vunpack.c.l.b16 %v661
      %v680 = vunpack.c.l.b16 %v662
      %v681 = vunpack.c.l.b16 %v663
      %v682 = vunpack.c.l.b16 %v664
      %v683 = vunpack.c.l.b16 %v665
      %v684 = vunpack.c.l.b16 %v666
      %v685 = vpack.c.b16 %v678, %v677
      %v686 = vpack.c.b16 %v680, %v679
      %v687 = vpack.c.b16 %v682, %v681
      %v688 = vpack.c.b16 %v684, %v683
      %v690 = vsel %vm235, %v685, 0
      %v693 = vsel %vm235, %v686, 0
      %v696 = vsel %vm235, %v687, 0
      %v699 = vsel %vm235, %v688, 0
      %v702 = vsel %vm248, %v668, 0
      %704 = vmatprep.subr.bf16.mxu0 0
      %705 = vmatpush1.bf16.msra.mxu0 %v702
      %706 = vmatprep.subr.bf16.mxu0 0
      %707 = vmatpush1.bf16.msra.mxu0 0
      %708 = vmatprep.subr.bf16.mxu0 0
      %709 = vmatpush1.bf16.msra.mxu0 0
      %710 = vmatprep.subr.bf16.mxu0 0
      %711 = vmatpush1.bf16.msra.mxu0 0
      %712 = vmatprep.subr.bf16.mxu0 0
      %713 = vmatpush1.bf16.msra.mxu0 0
      %714 = vmatprep.subr.bf16.mxu0 0
      %715 = vmatpush1.bf16.msra.mxu0 0
      %716 = vmatprep.subr.bf16.mxu0 0
      %717 = vmatpush1.bf16.msra.mxu0 0
      %718 = vmatprep.subr.bf16.mxu0 0
      %719 = vmatpush1.bf16.msra.mxu0 0
      %720 = vmatprep.subr.bf16.mxu0 0
      %721 = vmatpush1.bf16.msra.mxu0 0
      %722 = vmatprep.subr.bf16.mxu0 0
      %723 = vmatpush1.bf16.msra.mxu0 0
      %724 = vmatprep.subr.bf16.mxu0 0
      %725 = vmatpush1.bf16.msra.mxu0 0
      %726 = vmatprep.subr.bf16.mxu0 0
      %727 = vmatpush1.bf16.msra.mxu0 0
      %728 = vmatprep.subr.bf16.mxu0 0
      %729 = vmatpush1.bf16.msra.mxu0 0
      %730 = vmatprep.subr.bf16.mxu0 0
      %731 = vmatpush1.bf16.msra.mxu0 0
      %732 = vmatprep.subr.bf16.mxu0 0
      %733 = vmatpush1.bf16.msra.mxu0 0
      %734 = vmatprep.subr.bf16.mxu0 0
      %735 = vmatpush1.bf16.msra.mxu0 0
      %736 = vmatprep.mubr.bf16.mxu0 0
      %737 = vmatmul.mubr.bf16.gmra.mrb[0].mxu0 %v690
      %v738 = vpop.f32.mrb[0].mxu0
      %v739 = vadd.f32 0.0, %v738
      %v740 = vpop.f32.mrb[0].mxu0
      %v741 = vpop.f32.mrb[0].mxu0
      %v742 = vadd.f32 0.0, %v741
      %v743 = vpop.f32.mrb[0].mxu0
      %744 = vmatprep.mubr.bf16.mxu0 0
      %745 = vmatmul.mubr.bf16.gmra.mrb[0].mxu0 %v693
      %v746 = vpop.f32.mrb[0].mxu0
      %v747 = vadd.f32 0.0, %v746
      %v748 = vpop.f32.mrb[0].mxu0
      %v749 = vpop.f32.mrb[0].mxu0
      %v750 = vadd.f32 0.0, %v749
      %v751 = vpop.f32.mrb[0].mxu0
      %752 = vmatprep.mubr.bf16.mxu0 0
      %753 = vmatmul.mubr.bf16.gmra.mrb[0].mxu0 %v696
      %v754 = vpop.f32.mrb[0].mxu0
      %v755 = vadd.f32 0.0, %v754
      %v756 = vpop.f32.mrb[0].mxu0
      %v757 = vpop.f32.mrb[0].mxu0
      %v758 = vadd.f32 0.0, %v757
      %v759 = vpop.f32.mrb[0].mxu0
      %760 = vmatprep.mubr.bf16.mxu0 0
      %761 = vmatmul.mubr.bf16.gmra.mrb[0].mxu0 %v699
      %v762 = vpop.f32.mrb[0].mxu0
      %v763 = vadd.f32 0.0, %v762
      %v764 = vpop.f32.mrb[0].mxu0
      %v765 = vpop.f32.mrb[0].mxu0
      %v766 = vadd.f32 0.0, %v765
      %v767 = vpop.f32.mrb[0].mxu0
      %768 = vdwg.mxu0
      %v769 = vadd.f32 %v648, %v739
      %v770 = vadd.f32 %v649, %v742
      %v771 = vadd.f32 %v650, %v747
      %v772 = vadd.f32 %v651, %v750
      %v773 = vadd.f32 %v652, %v755
      %v774 = vadd.f32 %v653, %v758
      %v775 = vadd.f32 %v654, %v763
      %v776 = vadd.f32 %v655, %v766
      %s777 = scalar_lea.vmem %s1, 8
      %v778 = vld [vmem:[%s777] sm:$0x3]
      %779 = vrot.lane.b32.xlu0 %v685, 124
      %v780 = vpop.permute.xlu0 %779
      %781 = vrot.lane.b32.xlu0 %v686, 124
      %v782 = vpop.permute.xlu0 %781
      %783 = vrot.lane.b32.xlu0 %v687, 124
      %v784 = vpop.permute.xlu0 %783
      %785 = vrot.lane.b32.xlu0 %v688, 124
      %v786 = vpop.permute.xlu0 %785
      %v788 = vsel %vm235, %v780, 0
      %v791 = vsel %vm235, %v782, 0
      %v794 = vsel %vm235, %v784, 0
      %v797 = vsel %vm235, %v786, 0
      %v800 = vsel %vm248, %v778, 0
      %802 = vmatprep.subr.bf16.mxu0 0
      %803 = vmatpush1.bf16.msra.mxu0 %v800
      %804 = vmatprep.subr.bf16.mxu0 0
      %805 = vmatpush1.bf16.msra.mxu0 0
      %806 = vmatprep.subr.bf16.mxu0 0
      %807 = vmatpush1.bf16.msra.mxu0 0
      %808 = vmatprep.subr.bf16.mxu0 0
      %809 = vmatpush1.bf16.msra.mxu0 0
      %810 = vmatprep.subr.bf16.mxu0 0
      %811 = vmatpush1.bf16.msra.mxu0 0
      %812 = vmatprep.subr.bf16.mxu0 0
      %813 = vmatpush1.bf16.msra.mxu0 0
      %814 = vmatprep.subr.bf16.mxu0 0
      %815 = vmatpush1.bf16.msra.mxu0 0
      %816 = vmatprep.subr.bf16.mxu0 0
      %817 = vmatpush1.bf16.msra.mxu0 0
      %818 = vmatprep.subr.bf16.mxu0 0
      %819 = vmatpush1.bf16.msra.mxu0 0
      %820 = vmatprep.subr.bf16.mxu0 0
      %821 = vmatpush1.bf16.msra.mxu0 0
      %822 = vmatprep.subr.bf16.mxu0 0
      %823 = vmatpush1.bf16.msra.mxu0 0
      %824 = vmatprep.subr.bf16.mxu0 0
      %825 = vmatpush1.bf16.msra.mxu0 0
      %826 = vmatprep.subr.bf16.mxu0 0
      %827 = vmatpush1.bf16.msra.mxu0 0
      %828 = vmatprep.subr.bf16.mxu0 0
      %829 = vmatpush1.bf16.msra.mxu0 0
      %830 = vmatprep.subr.bf16.mxu0 0
      %831 = vmatpush1.bf16.msra.mxu0 0
      %832 = vmatprep.subr.bf16.mxu0 0
      %833 = vmatpush1.bf16.msra.mxu0 0
      %834 = vmatprep.mubr.bf16.mxu0 0
      %835 = vmatmul.mubr.bf16.gmra.mrb[0].mxu0 %v788
      %v836 = vpop.f32.mrb[0].mxu0
      %v837 = vadd.f32 0.0, %v836
      %v838 = vpop.f32.mrb[0].mxu0
      %v839 = vpop.f32.mrb[0].mxu0
      %v840 = vadd.f32 0.0, %v839
      %v841 = vpop.f32.mrb[0].mxu0
      %842 = vmatprep.mubr.bf16.mxu0 0
      %843 = vmatmul.mubr.bf16.gmra.mrb[0].mxu0 %v791
      %v844 = vpop.f32.mrb[0].mxu0
      %v845 = vadd.f32 0.0, %v844
      %v846 = vpop.f32.mrb[0].mxu0
      %v847 = vpop.f32.mrb[0].mxu0
      %v848 = vadd.f32 0.0, %v847
      %v849 = vpop.f32.mrb[0].mxu0
      %850 = vmatprep.mubr.bf16.mxu0 0
      %851 = vmatmul.mubr.bf16.gmra.mrb[0].mxu0 %v794
      %v852 = vpop.f32.mrb[0].mxu0
      %v853 = vadd.f32 0.0, %v852
      %v854 = vpop.f32.mrb[0].mxu0
      %v855 = vpop.f32.mrb[0].mxu0
      %v856 = vadd.f32 0.0, %v855
      %v857 = vpop.f32.mrb[0].mxu0
      %858 = vmatprep.mubr.bf16.mxu0 0
      %859 = vmatmul.mubr.bf16.gmra.mrb[0].mxu0 %v797
      %v860 = vpop.f32.mrb[0].mxu0
      %v861 = vadd.f32 0.0, %v860
      %v862 = vpop.f32.mrb[0].mxu0
      %v863 = vpop.f32.mrb[0].mxu0
      %v864 = vadd.f32 0.0, %v863
      %v865 = vpop.f32.mrb[0].mxu0
      %866 = vdwg.mxu0
      %v867 = vadd.f32 %v769, %v837
      %v868 = vadd.f32 %v770, %v840
      %v869 = vadd.f32 %v771, %v845
      %v870 = vadd.f32 %v772, %v848
      %v871 = vadd.f32 %v773, %v853
      %v872 = vadd.f32 %v774, %v856
      %v873 = vadd.f32 %v775, %v861
      %v874 = vadd.f32 %v776, %v864
      %v875 = vld [vmem:[%s658] sm:$0xf]
      %v876 = vld [vmem:[%s658 + $0x4] sm:$0x1]
      %v877 = vld [vmem:[%s658 + $0x10] sm:$0xf]
      %v878 = vld [vmem:[%s658 + $0x14] sm:$0x1]
      %v879 = vld [vmem:[%s658 + $0x20] sm:$0xf]
      %v880 = vld [vmem:[%s658 + $0x24] sm:$0x1]
      %v881 = vld [vmem:[%s658 + $0x30] sm:$0xf]
      %v882 = vld [vmem:[%s658 + $0x34] sm:$0x1]
      %v883 = vld [vmem:[%s658 + $0x40] sm:$0xf]
      %v884 = vld [vmem:[%s658 + $0x44] sm:$0x1]
      %v885 = vld [vmem:[%s658 + $0x50] sm:$0xf]
      %v886 = vld [vmem:[%s658 + $0x54] sm:$0x1]
      %v887 = vld [vmem:[%s658 + $0x60] sm:$0xf]
      %v888 = vld [vmem:[%s658 + $0x64] sm:$0x1]
      %v889 = vld [vmem:[%s658 + $0x70] sm:$0xf]
      %v890 = vld [vmem:[%s658 + $0x74] sm:$0x1]
      %v892 = vshrl.u32 %v875, 16
      %v894 = vrot.slane %v892, 4
      %v895 = vshll.u32 %v875, 16
      %v897 = vrot.slane %v895, 5
      %v898 = vor.u32 %v894, %v897
      %v899 = vrot.slane %v898, 4
      %v901 = vshll.u32 %v876, 16
      %v903 = vrot.slane %v901, 5
      %v904 = vsel %vm441, %v899, %v903
      %v906 = vshrl.u32 %v877, 16
      %v908 = vrot.slane %v906, 4
      %v909 = vshll.u32 %v877, 16
      %v911 = vrot.slane %v909, 5
      %v912 = vor.u32 %v908, %v911
      %v913 = vrot.slane %v912, 4
      %v915 = vshll.u32 %v878, 16
      %v917 = vrot.slane %v915, 5
      %v918 = vsel %vm441, %v913, %v917
      %v920 = vshrl.u32 %v879, 16
      %v922 = vrot.slane %v920, 4
      %v923 = vshll.u32 %v879, 16
      %v925 = vrot.slane %v923, 5
      %v926 = vor.u32 %v922, %v925
      %v927 = vrot.slane %v926, 4
      %v929 = vshll.u32 %v880, 16
      %v931 = vrot.slane %v929, 5
      %v932 = vsel %vm441, %v927, %v931
      %v934 = vshrl.u32 %v881, 16
      %v936 = vrot.slane %v934, 4
      %v937 = vshll.u32 %v881, 16
      %v939 = vrot.slane %v937, 5
      %v940 = vor.u32 %v936, %v939
      %v941 = vrot.slane %v940, 4
      %v943 = vshll.u32 %v882, 16
      %v945 = vrot.slane %v943, 5
      %v946 = vsel %vm441, %v941, %v945
      %v948 = vshrl.u32 %v883, 16
      %v950 = vrot.slane %v948, 4
      %v951 = vshll.u32 %v883, 16
      %v953 = vrot.slane %v951, 5
      %v954 = vor.u32 %v950, %v953
      %v955 = vrot.slane %v954, 4
      %v957 = vshll.u32 %v884, 16
      %v959 = vrot.slane %v957, 5
      %v960 = vsel %vm441, %v955, %v959
      %v962 = vshrl.u32 %v885, 16
      %v964 = vrot.slane %v962, 4
      %v965 = vshll.u32 %v885, 16
      %v967 = vrot.slane %v965, 5
      %v968 = vor.u32 %v964, %v967
      %v969 = vrot.slane %v968, 4
      %v971 = vshll.u32 %v886, 16
      %v973 = vrot.slane %v971, 5
      %v974 = vsel %vm441, %v969, %v973
      %v976 = vshrl.u32 %v887, 16
      %v978 = vrot.slane %v976, 4
      %v979 = vshll.u32 %v887, 16
      %v981 = vrot.slane %v979, 5
      %v982 = vor.u32 %v978, %v981
      %v983 = vrot.slane %v982, 4
      %v985 = vshll.u32 %v888, 16
      %v987 = vrot.slane %v985, 5
      %v988 = vsel %vm441, %v983, %v987
      %v990 = vshrl.u32 %v889, 16
      %v992 = vrot.slane %v990, 4
      %v993 = vshll.u32 %v889, 16
      %v995 = vrot.slane %v993, 5
      %v996 = vor.u32 %v992, %v995
      %v997 = vrot.slane %v996, 4
      %v999 = vshll.u32 %v890, 16
      %v1001 = vrot.slane %v999, 5
      %v1002 = vsel %vm441, %v997, %v1001
      %s1003 = scalar_lea.vmem %s1, 10
      %v1004 = vld [vmem:[%s1003] sm:$0x3]
      %v1005 = vunpack.c.l.b16 %v904
      %v1006 = vunpack.c.l.b16 %v918
      %v1007 = vunpack.c.l.b16 %v932
      %v1008 = vunpack.c.l.b16 %v946
      %v1009 = vunpack.c.l.b16 %v960
      %v1010 = vunpack.c.l.b16 %v974
      %v1011 = vunpack.c.l.b16 %v988
      %v1012 = vunpack.c.l.b16 %v1002
      %v1013 = vpack.c.b16 %v1006, %v1005
      %v1014 = vpack.c.b16 %v1008, %v1007
      %v1015 = vpack.c.b16 %v1010, %v1009
      %v1016 = vpack.c.b16 %v1012, %v1011
      %v1018 = vsel %vm235, %v1013, 0
      %v1021 = vsel %vm235, %v1014, 0
      %v1024 = vsel %vm235, %v1015, 0
      %v1027 = vsel %vm235, %v1016, 0
      %v1030 = vsel %vm248, %v1004, 0
      %1032 = vmatprep.subr.bf16.mxu0 0
      %1033 = vmatpush1.bf16.msra.mxu0 %v1030
      %1034 = vmatprep.subr.bf16.mxu0 0
      %1035 = vmatpush1.bf16.msra.mxu0 0
      %1036 = vmatprep.subr.bf16.mxu0 0
      %1037 = vmatpush1.bf16.msra.mxu0 0
      %1038 = vmatprep.subr.bf16.mxu0 0
      %1039 = vmatpush1.bf16.msra.mxu0 0
      %1040 = vmatprep.subr.bf16.mxu0 0
      %1041 = vmatpush1.bf16.msra.mxu0 0
      %1042 = vmatprep.subr.bf16.mxu0 0
      %1043 = vmatpush1.bf16.msra.mxu0 0
      %1044 = vmatprep.subr.bf16.mxu0 0
      %1045 = vmatpush1.bf16.msra.mxu0 0
      %1046 = vmatprep.subr.bf16.mxu0 0
      %1047 = vmatpush1.bf16.msra.mxu0 0
      %1048 = vmatprep.subr.bf16.mxu0 0
      %1049 = vmatpush1.bf16.msra.mxu0 0
      %1050 = vmatprep.subr.bf16.mxu0 0
      %1051 = vmatpush1.bf16.msra.mxu0 0
      %1052 = vmatprep.subr.bf16.mxu0 0
      %1053 = vmatpush1.bf16.msra.mxu0 0
      %1054 = vmatprep.subr.bf16.mxu0 0
      %1055 = vmatpush1.bf16.msra.mxu0 0
      %1056 = vmatprep.subr.bf16.mxu0 0
      %1057 = vmatpush1.bf16.msra.mxu0 0
      %1058 = vmatprep.subr.bf16.mxu0 0
      %1059 = vmatpush1.bf16.msra.mxu0 0
      %1060 = vmatprep.subr.bf16.mxu0 0
      %1061 = vmatpush1.bf16.msra.mxu0 0
      %1062 = vmatprep.subr.bf16.mxu0 0
      %1063 = vmatpush1.bf16.msra.mxu0 0
      %1064 = vmatprep.mubr.bf16.mxu0 0
      %1065 = vmatmul.mubr.bf16.gmra.mrb[0].mxu0 %v1018
      %v1066 = vpop.f32.mrb[0].mxu0
      %v1067 = vadd.f32 0.0, %v1066
      %v1068 = vpop.f32.mrb[0].mxu0
      %v1069 = vpop.f32.mrb[0].mxu0
      %v1070 = vadd.f32 0.0, %v1069
      %v1071 = vpop.f32.mrb[0].mxu0
      %1072 = vmatprep.mubr.bf16.mxu0 0
      %1073 = vmatmul.mubr.bf16.gmra.mrb[0].mxu0 %v1021
      %v1074 = vpop.f32.mrb[0].mxu0
      %v1075 = vadd.f32 0.0, %v1074
      %v1076 = vpop.f32.mrb[0].mxu0
      %v1077 = vpop.f32.mrb[0].mxu0
      %v1078 = vadd.f32 0.0, %v1077
      %v1079 = vpop.f32.mrb[0].mxu0
      %1080 = vmatprep.mubr.bf16.mxu0 0
      %1081 = vmatmul.mubr.bf16.gmra.mrb[0].mxu0 %v1024
      %v1082 = vpop.f32.mrb[0].mxu0
      %v1083 = vadd.f32 0.0, %v1082
      %v1084 = vpop.f32.mrb[0].mxu0
      %v1085 = vpop.f32.mrb[0].mxu0
      %v1086 = vadd.f32 0.0, %v1085
      %v1087 = vpop.f32.mrb[0].mxu0
      %1088 = vmatprep.mubr.bf16.mxu0 0
      %1089 = vmatmul.mubr.bf16.gmra.mrb[0].mxu0 %v1027
      %v1090 = vpop.f32.mrb[0].mxu0
      %v1091 = vadd.f32 0.0, %v1090
      %v1092 = vpop.f32.mrb[0].mxu0
      %v1093 = vpop.f32.mrb[0].mxu0
      %v1094 = vadd.f32 0.0, %v1093
      %v1095 = vpop.f32.mrb[0].mxu0
      %1096 = vdwg.mxu0
      %v1097 = vadd.f32 %v867, %v1067
      %v1098 = vadd.f32 %v868, %v1070
      %v1099 = vadd.f32 %v869, %v1075
      %v1100 = vadd.f32 %v870, %v1078
      %v1101 = vadd.f32 %v871, %v1083
      %v1102 = vadd.f32 %v872, %v1086
      %v1103 = vadd.f32 %v873, %v1091
      %v1104 = vadd.f32 %v874, %v1094
      %s1105 = sadd.s32 %s195, 1
      %s1106 = smul.u32 %s1105, 4
      %s1107 = smul.addr %s1106, 4
      %s1108 = scalar_lea.vmem %s183, %s1107
      %v1109 = vld [vmem:[%s1108] sm:$0xf]
      %v1110 = vld [vmem:[%s1108 + $0x10] sm:$0xf]
      %v1111 = vld [vmem:[%s1108 + $0x20] sm:$0xf]
      %v1112 = vld [vmem:[%s1108 + $0x30] sm:$0xf]
      %v1113 = vld [vmem:[%s1108 + $0x40] sm:$0xf]
      %v1114 = vld [vmem:[%s1108 + $0x50] sm:$0xf]
      %v1115 = vld [vmem:[%s1108 + $0x60] sm:$0xf]
      %v1116 = vld [vmem:[%s1108 + $0x70] sm:$0xf]
      %s1117 = scalar_lea.vmem %s1, 12
      %v1118 = vld [vmem:[%s1117] sm:$0x3]
      %v1127 = vunpack.c.l.b16 %v1109
      %v1128 = vunpack.c.l.b16 %v1110
      %v1129 = vunpack.c.l.b16 %v1111
      %v1130 = vunpack.c.l.b16 %v1112
      %v1131 = vunpack.c.l.b16 %v1113
      %v1132 = vunpack.c.l.b16 %v1114
      %v1133 = vunpack.c.l.b16 %v1115
      %v1134 = vunpack.c.l.b16 %v1116
      %v1135 = vpack.c.b16 %v1128, %v1127
      %v1136 = vpack.c.b16 %v1130, %v1129
      %v1137 = vpack.c.b16 %v1132, %v1131
      %v1138 = vpack.c.b16 %v1134, %v1133
      %v1140 = vsel %vm235, %v1135, 0
      %v1143 = vsel %vm235, %v1136, 0
      %v1146 = vsel %vm235, %v1137, 0
      %v1149 = vsel %vm235, %v1138, 0
      %v1152 = vsel %vm248, %v1118, 0
      %1154 = vmatprep.subr.bf16.mxu0 0
      %1155 = vmatpush1.bf16.msra.mxu0 %v1152
      %1156 = vmatprep.subr.bf16.mxu0 0
      %1157 = vmatpush1.bf16.msra.mxu0 0
      %1158 = vmatprep.subr.bf16.mxu0 0
      %1159 = vmatpush1.bf16.msra.mxu0 0
      %1160 = vmatprep.subr.bf16.mxu0 0
      %1161 = vmatpush1.bf16.msra.mxu0 0
      %1162 = vmatprep.subr.bf16.mxu0 0
      %1163 = vmatpush1.bf16.msra.mxu0 0
      %1164 = vmatprep.subr.bf16.mxu0 0
      %1165 = vmatpush1.bf16.msra.mxu0 0
      %1166 = vmatprep.subr.bf16.mxu0 0
      %1167 = vmatpush1.bf16.msra.mxu0 0
      %1168 = vmatprep.subr.bf16.mxu0 0
      %1169 = vmatpush1.bf16.msra.mxu0 0
      %1170 = vmatprep.subr.bf16.mxu0 0
      %1171 = vmatpush1.bf16.msra.mxu0 0
      %1172 = vmatprep.subr.bf16.mxu0 0
      %1173 = vmatpush1.bf16.msra.mxu0 0
      %1174 = vmatprep.subr.bf16.mxu0 0
      %1175 = vmatpush1.bf16.msra.mxu0 0
      %1176 = vmatprep.subr.bf16.mxu0 0
      %1177 = vmatpush1.bf16.msra.mxu0 0
      %1178 = vmatprep.subr.bf16.mxu0 0
      %1179 = vmatpush1.bf16.msra.mxu0 0
      %1180 = vmatprep.subr.bf16.mxu0 0
      %1181 = vmatpush1.bf16.msra.mxu0 0
      %1182 = vmatprep.subr.bf16.mxu0 0
      %1183 = vmatpush1.bf16.msra.mxu0 0
      %1184 = vmatprep.subr.bf16.mxu0 0
      %1185 = vmatpush1.bf16.msra.mxu0 0
      %1186 = vmatprep.mubr.bf16.mxu0 0
      %1187 = vmatmul.mubr.bf16.gmra.mrb[0].mxu0 %v1140
      %v1188 = vpop.f32.mrb[0].mxu0
      %v1189 = vadd.f32 0.0, %v1188
      %v1190 = vpop.f32.mrb[0].mxu0
      %v1191 = vpop.f32.mrb[0].mxu0
      %v1192 = vadd.f32 0.0, %v1191
      %v1193 = vpop.f32.mrb[0].mxu0
      %1194 = vmatprep.mubr.bf16.mxu0 0
      %1195 = vmatmul.mubr.bf16.gmra.mrb[0].mxu0 %v1143
      %v1196 = vpop.f32.mrb[0].mxu0
      %v1197 = vadd.f32 0.0, %v1196
      %v1198 = vpop.f32.mrb[0].mxu0
      %v1199 = vpop.f32.mrb[0].mxu0
      %v1200 = vadd.f32 0.0, %v1199
      %v1201 = vpop.f32.mrb[0].mxu0
      %1202 = vmatprep.mubr.bf16.mxu0 0
      %1203 = vmatmul.mubr.bf16.gmra.mrb[0].mxu0 %v1146
      %v1204 = vpop.f32.mrb[0].mxu0
      %v1205 = vadd.f32 0.0, %v1204
      %v1206 = vpop.f32.mrb[0].mxu0
      %v1207 = vpop.f32.mrb[0].mxu0
      %v1208 = vadd.f32 0.0, %v1207
      %v1209 = vpop.f32.mrb[0].mxu0
      %1210 = vmatprep.mubr.bf16.mxu0 0
      %1211 = vmatmul.mubr.bf16.gmra.mrb[0].mxu0 %v1149
      %v1212 = vpop.f32.mrb[0].mxu0
      %v1213 = vadd.f32 0.0, %v1212
      %v1214 = vpop.f32.mrb[0].mxu0
      %v1215 = vpop.f32.mrb[0].mxu0
      %v1216 = vadd.f32 0.0, %v1215
      %v1217 = vpop.f32.mrb[0].mxu0
      %1218 = vdwg.mxu0
      %v1219 = vadd.f32 %v1097, %v1189
      %v1220 = vadd.f32 %v1098, %v1192
      %v1221 = vadd.f32 %v1099, %v1197
      %v1222 = vadd.f32 %v1100, %v1200
      %v1223 = vadd.f32 %v1101, %v1205
      %v1224 = vadd.f32 %v1102, %v1208
      %v1225 = vadd.f32 %v1103, %v1213
      %v1226 = vadd.f32 %v1104, %v1216
      %s1227 = scalar_lea.vmem %s1, 14
      %v1228 = vld [vmem:[%s1227] sm:$0x3]
      %1229 = vrot.lane.b32.xlu0 %v1135, 124
      %v1230 = vpop.permute.xlu0 %1229
      %1231 = vrot.lane.b32.xlu0 %v1136, 124
      %v1232 = vpop.permute.xlu0 %1231
      %1233 = vrot.lane.b32.xlu0 %v1137, 124
      %v1234 = vpop.permute.xlu0 %1233
      %1235 = vrot.lane.b32.xlu0 %v1138, 124
      %v1236 = vpop.permute.xlu0 %1235
      %v1238 = vsel %vm235, %v1230, 0
      %v1241 = vsel %vm235, %v1232, 0
      %v1244 = vsel %vm235, %v1234, 0
      %v1247 = vsel %vm235, %v1236, 0
      %v1250 = vsel %vm248, %v1228, 0
      %1252 = vmatprep.subr.bf16.mxu0 0
      %1253 = vmatpush1.bf16.msra.mxu0 %v1250
      %1254 = vmatprep.subr.bf16.mxu0 0
      %1255 = vmatpush1.bf16.msra.mxu0 0
      %1256 = vmatprep.subr.bf16.mxu0 0
      %1257 = vmatpush1.bf16.msra.mxu0 0
      %1258 = vmatprep.subr.bf16.mxu0 0
      %1259 = vmatpush1.bf16.msra.mxu0 0
      %1260 = vmatprep.subr.bf16.mxu0 0
      %1261 = vmatpush1.bf16.msra.mxu0 0
      %1262 = vmatprep.subr.bf16.mxu0 0
      %1263 = vmatpush1.bf16.msra.mxu0 0
      %1264 = vmatprep.subr.bf16.mxu0 0
      %1265 = vmatpush1.bf16.msra.mxu0 0
      %1266 = vmatprep.subr.bf16.mxu0 0
      %1267 = vmatpush1.bf16.msra.mxu0 0
      %1268 = vmatprep.subr.bf16.mxu0 0
      %1269 = vmatpush1.bf16.msra.mxu0 0
      %1270 = vmatprep.subr.bf16.mxu0 0
      %1271 = vmatpush1.bf16.msra.mxu0 0
      %1272 = vmatprep.subr.bf16.mxu0 0
      %1273 = vmatpush1.bf16.msra.mxu0 0
      %1274 = vmatprep.subr.bf16.mxu0 0
      %1275 = vmatpush1.bf16.msra.mxu0 0
      %1276 = vmatprep.subr.bf16.mxu0 0
      %1277 = vmatpush1.bf16.msra.mxu0 0
      %1278 = vmatprep.subr.bf16.mxu0 0
      %1279 = vmatpush1.bf16.msra.mxu0 0
      %1280 = vmatprep.subr.bf16.mxu0 0
      %1281 = vmatpush1.bf16.msra.mxu0 0
      %1282 = vmatprep.subr.bf16.mxu0 0
      %1283 = vmatpush1.bf16.msra.mxu0 0
      %1284 = vmatprep.mubr.bf16.mxu0 0
      %1285 = vmatmul.mubr.bf16.gmra.mrb[0].mxu0 %v1238
      %v1286 = vpop.f32.mrb[0].mxu0
      %v1287 = vadd.f32 0.0, %v1286
      %v1288 = vpop.f32.mrb[0].mxu0
      %v1289 = vpop.f32.mrb[0].mxu0
      %v1290 = vadd.f32 0.0, %v1289
      %v1291 = vpop.f32.mrb[0].mxu0
      %1292 = vmatprep.mubr.bf16.mxu0 0
      %1293 = vmatmul.mubr.bf16.gmra.mrb[0].mxu0 %v1241
      %v1294 = vpop.f32.mrb[0].mxu0
      %v1295 = vadd.f32 0.0, %v1294
      %v1296 = vpop.f32.mrb[0].mxu0
      %v1297 = vpop.f32.mrb[0].mxu0
      %v1298 = vadd.f32 0.0, %v1297
      %v1299 = vpop.f32.mrb[0].mxu0
      %1300 = vmatprep.mubr.bf16.mxu0 0
      %1301 = vmatmul.mubr.bf16.gmra.mrb[0].mxu0 %v1244
      %v1302 = vpop.f32.mrb[0].mxu0
      %v1303 = vadd.f32 0.0, %v1302
      %v1304 = vpop.f32.mrb[0].mxu0
      %v1305 = vpop.f32.mrb[0].mxu0
      %v1306 = vadd.f32 0.0, %v1305
      %v1307 = vpop.f32.mrb[0].mxu0
      %1308 = vmatprep.mubr.bf16.mxu0 0
      %1309 = vmatmul.mubr.bf16.gmra.mrb[0].mxu0 %v1247
      %v1310 = vpop.f32.mrb[0].mxu0
      %v1311 = vadd.f32 0.0, %v1310
      %v1312 = vpop.f32.mrb[0].mxu0
      %v1313 = vpop.f32.mrb[0].mxu0
      %v1314 = vadd.f32 0.0, %v1313
      %v1315 = vpop.f32.mrb[0].mxu0
      %1316 = vdwg.mxu0
      %v1317 = vadd.f32 %v1219, %v1287
      %v1318 = vadd.f32 %v1220, %v1290
      %v1319 = vadd.f32 %v1221, %v1295
      %v1320 = vadd.f32 %v1222, %v1298
      %v1321 = vadd.f32 %v1223, %v1303
      %v1322 = vadd.f32 %v1224, %v1306
      %v1323 = vadd.f32 %v1225, %v1311
      %v1324 = vadd.f32 %v1226, %v1314
      %v1325 = vld [vmem:[%s1108] sm:$0xf]
      %v1326 = vld [vmem:[%s1108 + $0x4] sm:$0x1]
      %v1327 = vld [vmem:[%s1108 + $0x10] sm:$0xf]
      %v1328 = vld [vmem:[%s1108 + $0x14] sm:$0x1]
      %v1329 = vld [vmem:[%s1108 + $0x20] sm:$0xf]
      %v1330 = vld [vmem:[%s1108 + $0x24] sm:$0x1]
      %v1331 = vld [vmem:[%s1108 + $0x30] sm:$0xf]
      %v1332 = vld [vmem:[%s1108 + $0x34] sm:$0x1]
      %v1333 = vld [vmem:[%s1108 + $0x40] sm:$0xf]
      %v1334 = vld [vmem:[%s1108 + $0x44] sm:$0x1]
      %v1335 = vld [vmem:[%s1108 + $0x50] sm:$0xf]
      %v1336 = vld [vmem:[%s1108 + $0x54] sm:$0x1]
      %v1337 = vld [vmem:[%s1108 + $0x60] sm:$0xf]
      %v1338 = vld [vmem:[%s1108 + $0x64] sm:$0x1]
      %v1339 = vld [vmem:[%s1108 + $0x70] sm:$0xf]
      %v1340 = vld [vmem:[%s1108 + $0x74] sm:$0x1]
      %v1342 = vshrl.u32 %v1325, 16
      %v1344 = vrot.slane %v1342, 4
      %v1345 = vshll.u32 %v1325, 16
      %v1347 = vrot.slane %v1345, 5
      %v1348 = vor.u32 %v1344, %v1347
      %v1349 = vrot.slane %v1348, 4
      %v1351 = vshll.u32 %v1326, 16
      %v1353 = vrot.slane %v1351, 5
      %v1354 = vsel %vm441, %v1349, %v1353
      %v1356 = vshrl.u32 %v1327, 16
      %v1358 = vrot.slane %v1356, 4
      %v1359 = vshll.u32 %v1327, 16
      %v1361 = vrot.slane %v1359, 5
      %v1362 = vor.u32 %v1358, %v1361
      %v1363 = vrot.slane %v1362, 4
      %v1365 = vshll.u32 %v1328, 16
      %v1367 = vrot.slane %v1365, 5
      %v1368 = vsel %vm441, %v1363, %v1367
      %v1370 = vshrl.u32 %v1329, 16
      %v1372 = vrot.slane %v1370, 4
      %v1373 = vshll.u32 %v1329, 16
      %v1375 = vrot.slane %v1373, 5
      %v1376 = vor.u32 %v1372, %v1375
      %v1377 = vrot.slane %v1376, 4
      %v1379 = vshll.u32 %v1330, 16
      %v1381 = vrot.slane %v1379, 5
      %v1382 = vsel %vm441, %v1377, %v1381
      %v1384 = vshrl.u32 %v1331, 16
      %v1386 = vrot.slane %v1384, 4
      %v1387 = vshll.u32 %v1331, 16
      %v1389 = vrot.slane %v1387, 5
      %v1390 = vor.u32 %v1386, %v1389
      %v1391 = vrot.slane %v1390, 4
      %v1393 = vshll.u32 %v1332, 16
      %v1395 = vrot.slane %v1393, 5
      %v1396 = vsel %vm441, %v1391, %v1395
      %v1398 = vshrl.u32 %v1333, 16
      %v1400 = vrot.slane %v1398, 4
      %v1401 = vshll.u32 %v1333, 16
      %v1403 = vrot.slane %v1401, 5
      %v1404 = vor.u32 %v1400, %v1403
      %v1405 = vrot.slane %v1404, 4
      %v1407 = vshll.u32 %v1334, 16
      %v1409 = vrot.slane %v1407, 5
      %v1410 = vsel %vm441, %v1405, %v1409
      %v1412 = vshrl.u32 %v1335, 16
      %v1414 = vrot.slane %v1412, 4
      %v1415 = vshll.u32 %v1335, 16
      %v1417 = vrot.slane %v1415, 5
      %v1418 = vor.u32 %v1414, %v1417
      %v1419 = vrot.slane %v1418, 4
      %v1421 = vshll.u32 %v1336, 16
      %v1423 = vrot.slane %v1421, 5
      %v1424 = vsel %vm441, %v1419, %v1423
      %v1426 = vshrl.u32 %v1337, 16
      %v1428 = vrot.slane %v1426, 4
      %v1429 = vshll.u32 %v1337, 16
      %v1431 = vrot.slane %v1429, 5
      %v1432 = vor.u32 %v1428, %v1431
      %v1433 = vrot.slane %v1432, 4
      %v1435 = vshll.u32 %v1338, 16
      %v1437 = vrot.slane %v1435, 5
      %v1438 = vsel %vm441, %v1433, %v1437
      %v1440 = vshrl.u32 %v1339, 16
      %v1442 = vrot.slane %v1440, 4
      %v1443 = vshll.u32 %v1339, 16
      %v1445 = vrot.slane %v1443, 5
      %v1446 = vor.u32 %v1442, %v1445
      %v1447 = vrot.slane %v1446, 4
      %v1449 = vshll.u32 %v1340, 16
      %v1451 = vrot.slane %v1449, 5
      %v1452 = vsel %vm441, %v1447, %v1451
      %s1453 = scalar_lea.vmem %s1, 16
      %v1454 = vld [vmem:[%s1453] sm:$0x3]
      %v1455 = vunpack.c.l.b16 %v1354
      %v1456 = vunpack.c.l.b16 %v1368
      %v1457 = vunpack.c.l.b16 %v1382
      %v1458 = vunpack.c.l.b16 %v1396
      %v1459 = vunpack.c.l.b16 %v1410
      %v1460 = vunpack.c.l.b16 %v1424
      %v1461 = vunpack.c.l.b16 %v1438
      %v1462 = vunpack.c.l.b16 %v1452
      %v1463 = vpack.c.b16 %v1456, %v1455
      %v1464 = vpack.c.b16 %v1458, %v1457
      %v1465 = vpack.c.b16 %v1460, %v1459
      %v1466 = vpack.c.b16 %v1462, %v1461
      %v1468 = vsel %vm235, %v1463, 0
      %v1471 = vsel %vm235, %v1464, 0
      %v1474 = vsel %vm235, %v1465, 0
      %v1477 = vsel %vm235, %v1466, 0
      %v1480 = vsel %vm248, %v1454, 0
      %1482 = vmatprep.subr.bf16.mxu0 0
      %1483 = vmatpush1.bf16.msra.mxu0 %v1480
      %1484 = vmatprep.subr.bf16.mxu0 0
      %1485 = vmatpush1.bf16.msra.mxu0 0
      %1486 = vmatprep.subr.bf16.mxu0 0
      %1487 = vmatpush1.bf16.msra.mxu0 0
      %1488 = vmatprep.subr.bf16.mxu0 0
      %1489 = vmatpush1.bf16.msra.mxu0 0
      %1490 = vmatprep.subr.bf16.mxu0 0
      %1491 = vmatpush1.bf16.msra.mxu0 0
      %1492 = vmatprep.subr.bf16.mxu0 0
      %1493 = vmatpush1.bf16.msra.mxu0 0
      %1494 = vmatprep.subr.bf16.mxu0 0
      %1495 = vmatpush1.bf16.msra.mxu0 0
      %1496 = vmatprep.subr.bf16.mxu0 0
      %1497 = vmatpush1.bf16.msra.mxu0 0
      %1498 = vmatprep.subr.bf16.mxu0 0
      %1499 = vmatpush1.bf16.msra.mxu0 0
      %1500 = vmatprep.subr.bf16.mxu0 0
      %1501 = vmatpush1.bf16.msra.mxu0 0
      %1502 = vmatprep.subr.bf16.mxu0 0
      %1503 = vmatpush1.bf16.msra.mxu0 0
      %1504 = vmatprep.subr.bf16.mxu0 0
      %1505 = vmatpush1.bf16.msra.mxu0 0
      %1506 = vmatprep.subr.bf16.mxu0 0
      %1507 = vmatpush1.bf16.msra.mxu0 0
      %1508 = vmatprep.subr.bf16.mxu0 0
      %1509 = vmatpush1.bf16.msra.mxu0 0
      %1510 = vmatprep.subr.bf16.mxu0 0
      %1511 = vmatpush1.bf16.msra.mxu0 0
      %1512 = vmatprep.subr.bf16.mxu0 0
      %1513 = vmatpush1.bf16.msra.mxu0 0
      %1514 = vmatprep.mubr.bf16.mxu0 0
      %1515 = vmatmul.mubr.bf16.gmra.mrb[0].mxu0 %v1468
      %v1516 = vpop.f32.mrb[0].mxu0
      %v1517 = vadd.f32 0.0, %v1516
      %v1518 = vpop.f32.mrb[0].mxu0
      %v1519 = vpop.f32.mrb[0].mxu0
      %v1520 = vadd.f32 0.0, %v1519
      %v1521 = vpop.f32.mrb[0].mxu0
      %1522 = vmatprep.mubr.bf16.mxu0 0
      %1523 = vmatmul.mubr.bf16.gmra.mrb[0].mxu0 %v1471
      %v1524 = vpop.f32.mrb[0].mxu0
      %v1525 = vadd.f32 0.0, %v1524
      %v1526 = vpop.f32.mrb[0].mxu0
      %v1527 = vpop.f32.mrb[0].mxu0
      %v1528 = vadd.f32 0.0, %v1527
      %v1529 = vpop.f32.mrb[0].mxu0
      %1530 = vmatprep.mubr.bf16.mxu0 0
      %1531 = vmatmul.mubr.bf16.gmra.mrb[0].mxu0 %v1474
      %v1532 = vpop.f32.mrb[0].mxu0
      %v1533 = vadd.f32 0.0, %v1532
      %v1534 = vpop.f32.mrb[0].mxu0
      %v1535 = vpop.f32.mrb[0].mxu0
      %v1536 = vadd.f32 0.0, %v1535
      %v1537 = vpop.f32.mrb[0].mxu0
      %1538 = vmatprep.mubr.bf16.mxu0 0
      %1539 = vmatmul.mubr.bf16.gmra.mrb[0].mxu0 %v1477
      %v1540 = vpop.f32.mrb[0].mxu0
      %v1541 = vadd.f32 0.0, %v1540
      %v1542 = vpop.f32.mrb[0].mxu0
      %v1543 = vpop.f32.mrb[0].mxu0
      %v1544 = vadd.f32 0.0, %v1543
      %v1545 = vpop.f32.mrb[0].mxu0
      %1546 = vdwg.mxu0
      %v1547 = vadd.f32 %v1317, %v1517
      %v1548 = vadd.f32 %v1318, %v1520
      %v1549 = vadd.f32 %v1319, %v1525
      %v1550 = vadd.f32 %v1320, %v1528
      %v1551 = vadd.f32 %v1321, %v1533
      %v1552 = vadd.f32 %v1322, %v1536
      %v1553 = vadd.f32 %v1323, %v1541
      %v1554 = vadd.f32 %v1324, %v1544
      %v1555 = vxor.u32 %v1547, 2147483648
      %v1556 = vxor.u32 %v1548, 2147483648
      %v1557 = vxor.u32 %v1549, 2147483648
      %v1558 = vxor.u32 %v1550, 2147483648
      %v1559 = vxor.u32 %v1551, 2147483648
      %v1560 = vxor.u32 %v1552, 2147483648
      %v1561 = vxor.u32 %v1553, 2147483648
      %v1562 = vxor.u32 %v1554, 2147483648
      %v1563 = vmul.f32 %v1555, 1.442695
      %v1564 = vpow.pop %v1563
      %v1565 = vmul.f32 %v1556, 1.442695
      %v1566 = vpow.pop %v1565
      %v1567 = vmul.f32 %v1557, 1.442695
      %v1568 = vpow.pop %v1567
      %v1569 = vmul.f32 %v1558, 1.442695
      %v1570 = vpow.pop %v1569
      %v1571 = vmul.f32 %v1559, 1.442695
      %v1572 = vpow.pop %v1571
      %v1573 = vmul.f32 %v1560, 1.442695
      %v1574 = vpow.pop %v1573
      %v1575 = vmul.f32 %v1561, 1.442695
      %v1576 = vpow.pop %v1575
      %v1577 = vmul.f32 %v1562, 1.442695
      %v1578 = vpow.pop %v1577
      %v1579 = vadd.f32 %v1564, 1.0
      %v1580 = vadd.f32 %v1566, 1.0
      %v1581 = vadd.f32 %v1568, 1.0
      %v1582 = vadd.f32 %v1570, 1.0
      %v1583 = vadd.f32 %v1572, 1.0
      %v1584 = vadd.f32 %v1574, 1.0
      %v1585 = vadd.f32 %v1576, 1.0
      %v1586 = vadd.f32 %v1578, 1.0
      %v1587 = vrcp.pop %v1579
      %v1588 = vmul.f32 1.0, %v1587
      %v1589 = vrcp.pop %v1580
      %v1590 = vmul.f32 1.0, %v1589
      %v1591 = vrcp.pop %v1581
      %v1592 = vmul.f32 1.0, %v1591
      %v1593 = vrcp.pop %v1582
      %v1594 = vmul.f32 1.0, %v1593
      %v1595 = vrcp.pop %v1583
      %v1596 = vmul.f32 1.0, %v1595
      %v1597 = vrcp.pop %v1584
      %v1598 = vmul.f32 1.0, %v1597
      %v1599 = vrcp.pop %v1585
      %v1600 = vmul.f32 1.0, %v1599
      %v1601 = vrcp.pop %v1586
      %v1602 = vmul.f32 1.0, %v1601
      %1604 = vset.pattern.permute.xlu0 4
      %1605 = vperm.xlu0 %1604, %v1588
      %v1606 = vpop.permute.xlu0 %1605
      %1609 = vset.pattern.permute.xlu0 4
      %1610 = vperm.xlu0 %1609, %v1590
      %v1611 = vpop.permute.xlu0 %1610
      %1614 = vset.pattern.permute.xlu0 4
      %1615 = vperm.xlu0 %1614, %v1592
      %v1616 = vpop.permute.xlu0 %1615
      %1619 = vset.pattern.permute.xlu0 4
      %1620 = vperm.xlu0 %1619, %v1594
      %v1621 = vpop.permute.xlu0 %1620
      %1624 = vset.pattern.permute.xlu0 4
      %1625 = vperm.xlu0 %1624, %v1596
      %v1626 = vpop.permute.xlu0 %1625
      %1629 = vset.pattern.permute.xlu0 4
      %1630 = vperm.xlu0 %1629, %v1598
      %v1631 = vpop.permute.xlu0 %1630
      %1634 = vset.pattern.permute.xlu0 4
      %1635 = vperm.xlu0 %1634, %v1600
      %v1636 = vpop.permute.xlu0 %1635
      %1639 = vset.pattern.permute.xlu0 4
      %1640 = vperm.xlu0 %1639, %v1602
      %v1641 = vpop.permute.xlu0 %1640
      %v1643 = vmul.f32 %v1547, %v1606
      %v1644 = vmul.f32 %v1548, %v1611
      %v1645 = vmul.f32 %v1549, %v1616
      %v1646 = vmul.f32 %v1550, %v1621
      %v1647 = vmul.f32 %v1551, %v1626
      %v1648 = vmul.f32 %v1552, %v1631
      %v1649 = vmul.f32 %v1553, %v1636
      %v1650 = vmul.f32 %v1554, %v1641
      %v1651 = vpack.c.bf16 %v1643, %v1643
      %v1652 = vpack.c.bf16 %v1644, %v1644
      %v1653 = vpack.c.bf16 %v1645, %v1645
      %v1654 = vpack.c.bf16 %v1646, %v1646
      %v1655 = vpack.c.bf16 %v1647, %v1647
      %v1656 = vpack.c.bf16 %v1648, %v1648
      %v1657 = vpack.c.bf16 %v1649, %v1649
      %v1658 = vpack.c.bf16 %v1650, %v1650
      %1659 = vst [vmem:[%s192] sm:$0xf] %v1651
      %1660 = vst [vmem:[%s192 + $0x4] sm:$0xf] %v1652
      %1661 = vst [vmem:[%s192 + $0x8] sm:$0xf] %v1653
      %1662 = vst [vmem:[%s192 + $0xc] sm:$0xf] %v1654
      %1663 = vst [vmem:[%s192 + $0x10] sm:$0xf] %v1655
      %1664 = vst [vmem:[%s192 + $0x14] sm:$0xf] %v1656
      %1665 = vst [vmem:[%s192 + $0x18] sm:$0xf] %v1657
      %1666 = vst [vmem:[%s192 + $0x1c] sm:$0xf] %v1658
      %s1667 = smul.u32 8, %s19
      %p1668 = scmp.lt.s32.totalorder %s18, 1
      %s1669 = scalar_select %p1668, %s18, 1
      %p1670 = scmp.lt.s32.totalorder %s1667, 7
      %s1671 = scalar_select %p1670, %s1667, 7
      %s1672 = smul.addr %s1669, 8
      %s1673 = sadd.s32 %s1671, %s1672
      %s1674 = smul.addr %s1673, 4
      %s1675 = scalar_lea.vmem %s3, %s1674
      // Predicated region
      $region33: #{down_lwgated.3} parent=31 // pred_check
        %p1676 = pneg %p114
      $region34: #{down_lwgated.3} parent=31 // pred_check_branch
        %1678 = sbr.rel (%p1676) target = $region36
      $region35: #{down_lwgated.3} parent=31 // pred_region
        %s1679 = smul.u32 8, %s19
      $region36: #{down_lwgated.3} parent=31 // pred_fallthru
        _
    $region32: #{down_lwgated.3} parent=5 // pred_fallthru
      _
    %p1680 = scmp.le.s32.totalorder 2, %s9
    // Predicated region
    $region37: #{down_lwgated.3} parent=5 // pred_check
      %p1681 = pneg %p1680
    $region38: #{down_lwgated.3} parent=5 // pred_check_branch
      %1683 = sbr.rel (%p1681) target = $region40
    $region39: #{down_lwgated.3} parent=5 // pred_region
      %s1684 = ssub.s32 %s9, 2
      // Predicated region
      $region41: #{down_lwgated.3} parent=39 // pred_check
        %p1685 = pneg %p120
      $region42: #{down_lwgated.3} parent=39 // pred_check_branch
        %1687 = sbr.rel (%p1685) target = $region44
      $region43: #{down_lwgated.3} parent=39 // pred_region
        %s1688 = smul.u32 8, %s21
        %p1689 = scmp.lt.s32.totalorder %s20, 1
        %s1690 = scalar_select %p1689, %s20, 1
        %p1691 = scmp.lt.s32.totalorder %s1688, 7
        %s1692 = scalar_select %p1691, %s1688, 7
        %s1693 = smul.addr %s1690, 8
        %s1694 = sadd.s32 %s1692, %s1693
        %s1695 = smul.addr %s1694, 4
        %s1696 = scalar_lea.vmem %s3, %s1695
      $region44: #{down_lwgated.3} parent=39 // pred_fallthru
        _
    $region40: #{down_lwgated.3} parent=5 // pred_fallthru
      _
  $region6: #{down_lwgated.3} parent=0 // loop_footer
    %s13 = sadd.s32 1, %s9
  $region7: #{down_lwgated.3} parent=0 // loop_footer_branch
    %8 = sbr.rel target = $region3
  $region8: #{down_lwgated.3} parent=0 // loop_exit
    _

// kernel: down_lwgated.5
$region0: #{down_lwgated.5}
  #allocation0 [shape = 'u32[]', space=smem, size = 0x4, offset = 0x4, fixed_abs, tag = 'smem constant byte address 0x4 - core index']
  #allocation1 [shape = 'u32[144,128]{1,0:T(1,128)}', space=vmem, size = 0x12000, scoped, tag = 'internal scratch']
  %s0 = inlined_call_operand.vmem [shape: bf16[2,10,1,10,8], index: 0, kind: input, shape index: {}]
  %s1 = inlined_call_operand.vmem [shape: bf16[9,8,128], index: 1, kind: input, shape index: {}]
  %s2 = inlined_call_operand.vmem [shape: f32[1,128], index: 2, kind: input, shape index: {}]
  %s3 = inlined_call_operand.vmem [shape: f32[2,8,8,128], index: 3, kind: output, shape index: {}]
  %s4 = sld [smem:[#allocation0]]
  $region45: #{down_lwgated.5} parent=0
    _
  %s6 = ssub.s32 1, %s4
  %s7 = scalar_select 0, %s6, %s4
  loop: start=0, step=1, limit=4
  $region2: #{down_lwgated.5} parent=0 // loop_pre_header
    _
  $region3: #{down_lwgated.5} parent=0 // loop_header
    %s9 = sphi 0, %s13
    %p10 = scmp.ge.s32.totalorder %s9, 4
    %s16 = sphi 0, %s28
    %s17 = sphi 0, %s24
    %s18 = sphi 0, %s16
    %s19 = sphi 0, %s17
    %s20 = sphi 0, %s18
    %s21 = sphi 0, %s19
    %s31 = sphi 0, %s33
    %s34 = sphi 0, %s31
    %s35 = sphi 0, %s34
    %s51 = sphi 0, %s35
    %s55 = sphi 0, %s55
    %s57 = sphi 0, %s55
    %s58 = sphi 0, %s57
    %s72 = sphi 0, %s58
    %s76 = sphi 0, %s76
    %s78 = sphi 0, %s76
    %s79 = sphi 0, %s78
    %s93 = sphi 0, %s79
    %s101 = sphi 0, %s103
    %s104 = sphi 0, %s101
    %s105 = sphi 0, %s104
    %s121 = sphi 0, %s105
  $region4: #{down_lwgated.5} parent=0 // loop_header_branch
    %12 = sbr.rel (%p10) target = $region8
  $region5: #{down_lwgated.5} parent=0 // loop_body
    %s14 = ssub.s32 %s9, 1
    %s15 = ssub.s32 %s9, 2
    %s22 = sadd.s32 1, %s17
    %p23 = scmp.ge.s32.totalorder %s22, 1
    %s24 = scalar_select %p23, 0, %s22
    %s25 = sadd.s32 1, %s16
    %s26 = scalar_select %p23, %s25, %s16
    %p27 = scmp.ge.s32.totalorder %s26, 2
    %s28 = scalar_select %p27, 0, %s26
    %s29 = ssub.s32 %s16, %s28
    %p30 = scmp.eq.s32.totalorder %s29, 0
    %s32 = sadd.s32 %s31, 1
    %s33 = scalar_select %p30, %s31, %s32
    %p36 = pneg %p30
    %p37 = scmp.eq.s32.totalorder %s9, 1
    %p38 = por %p36, %p37
    %p39 = scmp.ne.s32.totalorder %s31, %s34
    %p40 = scmp.eq.s32.totalorder %s9, 0
    %p41 = por %p39, %p40
    %p42 = scmp.ne.s32.totalorder %s31, %s34
    %p43 = scmp.eq.s32.totalorder %s14, 1
    %p44 = por %p42, %p43
    %p45 = scmp.ne.s32.totalorder %s34, %s35
    %p46 = scmp.eq.s32.totalorder %s14, 0
    %p47 = por %p45, %p46
    %p48 = scmp.ne.s32.totalorder %s34, %s35
    %p49 = scmp.eq.s32.totalorder %s15, 1
    %p50 = por %p48, %p49
    %p52 = scmp.ne.s32.totalorder %s35, %s51
    %p53 = scmp.eq.s32.totalorder %s15, 0
    %p54 = por %p52, %p53
    %s56 = sadd.s32 %s55, 1
    %p59 = scmp.eq.s32.totalorder %s9, 1
    %p60 = scmp.ne.s32.totalorder %s55, %s57
    %p61 = scmp.eq.s32.totalorder %s9, 0
    %p62 = por %p60, %p61
    %p63 = scmp.ne.s32.totalorder %s55, %s57
    %p64 = scmp.eq.s32.totalorder %s14, 1
    %p65 = por %p63, %p64
    %p66 = scmp.ne.s32.totalorder %s57, %s58
    %p67 = scmp.eq.s32.totalorder %s14, 0
    %p68 = por %p66, %p67
    %p69 = scmp.ne.s32.totalorder %s57, %s58
    %p70 = scmp.eq.s32.totalorder %s15, 1
    %p71 = por %p69, %p70
    %p73 = scmp.ne.s32.totalorder %s58, %s72
    %p74 = scmp.eq.s32.totalorder %s15, 0
    %p75 = por %p73, %p74
    %s77 = sadd.s32 %s76, 1
    %p80 = scmp.eq.s32.totalorder %s9, 1
    %p81 = scmp.ne.s32.totalorder %s76, %s78
    %p82 = scmp.eq.s32.totalorder %s9, 0
    %p83 = por %p81, %p82
    %p84 = scmp.ne.s32.totalorder %s76, %s78
    %p85 = scmp.eq.s32.totalorder %s14, 1
    %p86 = por %p84, %p85
    %p87 = scmp.ne.s32.totalorder %s78, %s79
    %p88 = scmp.eq.s32.totalorder %s14, 0
    %p89 = por %p87, %p88
    %p90 = scmp.ne.s32.totalorder %s78, %s79
    %p91 = scmp.eq.s32.totalorder %s15, 1
    %p92 = por %p90, %p91
    %p94 = scmp.ne.s32.totalorder %s79, %s93
    %p95 = scmp.eq.s32.totalorder %s15, 0
    %p96 = por %p94, %p95
    %s97 = ssub.s32 %s16, %s28
    %s98 = ssub.s32 %s17, %s24
    %s99 = sor.u32 %s97, %s98
    %p100 = scmp.eq.s32.totalorder %s99, 0
    %s102 = sadd.s32 %s101, 1
    %s103 = scalar_select %p100, %s101, %s102
    %p106 = pneg %p100
    %p107 = scmp.eq.s32.totalorder %s9, 1
    %p108 = por %p106, %p107
    %p109 = scmp.ne.s32.totalorder %s101, %s104
    %p110 = scmp.eq.s32.totalorder %s9, 0
    %p111 = por %p109, %p110
    %p112 = scmp.ne.s32.totalorder %s101, %s104
    %p113 = scmp.eq.s32.totalorder %s14, 1
    %p114 = por %p112, %p113
    %p115 = scmp.ne.s32.totalorder %s104, %s105
    %p116 = scmp.eq.s32.totalorder %s14, 0
    %p117 = por %p115, %p116
    %p118 = scmp.ne.s32.totalorder %s104, %s105
    %p119 = scmp.eq.s32.totalorder %s15, 1
    %p120 = por %p118, %p119
    %p122 = scmp.ne.s32.totalorder %s105, %s121
    %p123 = scmp.eq.s32.totalorder %s15, 0
    %p124 = por %p122, %p123
    %p125 = scmp.le.s32.totalorder 1, %s9
    %p126 = scmp.lt.s32.totalorder %s9, 3
    %p127 = pnand %p125, %p126
    %p128 = pneg %p127
    // Predicated region
    $region9: #{down_lwgated.5} parent=5 // pred_check
      _
    $region10: #{down_lwgated.5} parent=5 // pred_check_branch
      %130 = sbr.rel (%p127) target = $region12
    $region11: #{down_lwgated.5} parent=5 // pred_region
      %s131 = ssub.s32 %s9, 1
      // Predicated region
      $region13: #{down_lwgated.5} parent=11 // pred_check
        %p132 = pneg %p68
      $region14: #{down_lwgated.5} parent=11 // pred_check_branch
        %134 = sbr.rel (%p132) target = $region16
      $region15: #{down_lwgated.5} parent=11 // pred_region
        _
      $region16: #{down_lwgated.5} parent=11 // pred_fallthru
        _
      // Predicated region
      $region17: #{down_lwgated.5} parent=11 // pred_check
        %p135 = pneg %p89
      $region18: #{down_lwgated.5} parent=11 // pred_check_branch
        %137 = sbr.rel (%p135) target = $region20
      $region19: #{down_lwgated.5} parent=11 // pred_region
        _
      $region20: #{down_lwgated.5} parent=11 // pred_fallthru
        _
    $region12: #{down_lwgated.5} parent=5 // pred_fallthru
      _
    %p138 = scmp.lt.s32.totalorder %s9, 2
    // Predicated region
    $region21: #{down_lwgated.5} parent=5 // pred_check
      %p139 = pneg %p138
    $region22: #{down_lwgated.5} parent=5 // pred_check_branch
      %141 = sbr.rel (%p139) target = $region24
    $region23: #{down_lwgated.5} parent=5 // pred_region
      // Predicated region
      $region25: #{down_lwgated.5} parent=23 // pred_check
        %p142 = pneg %p41
      $region26: #{down_lwgated.5} parent=23 // pred_check_branch
        %144 = sbr.rel (%p142) target = $region28
      $region27: #{down_lwgated.5} parent=23 // pred_region
        %p145 = scmp.lt.s32.totalorder %s16, 1
        %s146 = scalar_select %p145, %s16, 1
        %s147 = smul.addr %s146, 20
        %s148 = smul.addr %s147, 4
        %s149 = scalar_lea.vmem %s0, %s148
      $region28: #{down_lwgated.5} parent=23 // pred_fallthru
        _
    $region24: #{down_lwgated.5} parent=5 // pred_fallthru
      _
    %p150 = scmp.le.s32.totalorder 1, %s9
    %p151 = scmp.lt.s32.totalorder %s9, 3
    %p152 = pnand %p150, %p151
    %p153 = pneg %p152
    // Predicated region
    $region29: #{down_lwgated.5} parent=5 // pred_check
      _
    $region30: #{down_lwgated.5} parent=5 // pred_check_branch
      %155 = sbr.rel (%p152) target = $region32
    $region31: #{down_lwgated.5} parent=5 // pred_region
      %s156 = ssub.s32 %s9, 1
      %p157 = scmp.lt.s32.totalorder %s18, 1
      %s158 = scalar_select %p157, %s18, 1
      %s159 = smul.addr %s158, 20
      %s160 = smul.addr %s159, 4
      %s161 = scalar_lea.vmem %s0, %s160
      %p162 = pneg %p47
      %p163 = pneg %p44
      %p164 = pneg %p68
      %p165 = pneg %p65
      %p166 = pneg %p89
      %p167 = pneg %p86
      %p168 = pneg %p117
      %p169 = pneg %p114
      %s170 = smul.u32 8, %s19
      %p171 = scmp.lt.s32.totalorder %s18, 1
      %s172 = scalar_select %p171, %s18, 1
      %p173 = scmp.lt.s32.totalorder %s170, 7
      %s174 = scalar_select %p173, %s170, 7
      %s175 = smul.addr %s172, 8
      %s176 = sadd.s32 %s174, %s175
      %s177 = smul.addr %s176, 8
      %s178 = scalar_lea.vmem %s3, %s177
      %p179 = scmp.lt.s32.totalorder %s18, 1
      %s180 = scalar_select %p179, %s18, 1
      %s181 = smul.addr %s180, 20
      %s182 = smul.addr %s181, 4
      %s183 = scalar_lea.vmem %s0, %s182
      %s184 = smul.u32 8, %s19
      %p185 = scmp.lt.s32.totalorder %s18, 1
      %s186 = scalar_select %p185, %s18, 1
      %p187 = scmp.lt.s32.totalorder %s184, 7
      %s188 = scalar_select %p187, %s184, 7
      %s189 = smul.addr %s186, 8
      %s190 = sadd.s32 %s188, %s189
      %s191 = smul.addr %s190, 8
      %s192 = scalar_lea.vmem %s3, %s191
      %s193 = smul.u32 8, %s19
      %s195 = smul.u32 %s19, 8
      %v196 = vld [vmem:[%s2] sm:$0x1]
      %v198 = vlaneseq
      %v199 = vshrl.u32 %v198, 7
      %v200 = vsub.s32 0, %v199
      %v201 = vrot.slane %v196, %v200
      %s203 = smul.u32 %s195, 2
      %s204 = smul.addr %s203, 4
      %s205 = scalar_lea.vmem %s183, %s204
      %v206 = vld [vmem:[%s205] sm:$0xf]
      %v207 = vld [vmem:[%s205 + $0x8] sm:$0xf]
      %v208 = vld [vmem:[%s205 + $0x10] sm:$0xf]
      %v209 = vld [vmem:[%s205 + $0x18] sm:$0xf]
      %v210 = vld [vmem:[%s205 + $0x20] sm:$0xf]
      %v211 = vld [vmem:[%s205 + $0x28] sm:$0xf]
      %v212 = vld [vmem:[%s205 + $0x30] sm:$0xf]
      %v213 = vld [vmem:[%s205 + $0x38] sm:$0xf]
      %v214 = vld [vmem:[%s1] sm:$0xf]
      %v223 = vunpack.c.l.b16 %v206
      %v224 = vunpack.c.l.b16 %v207
      %v225 = vunpack.c.l.b16 %v208
      %v226 = vunpack.c.l.b16 %v209
      %v227 = vunpack.c.l.b16 %v210
      %v228 = vunpack.c.l.b16 %v211
      %v229 = vunpack.c.l.b16 %v212
      %v230 = vunpack.c.l.b16 %v213
      %v231 = vpack.c.b16 %v224, %v223
      %v232 = vpack.c.b16 %v226, %v225
      %v233 = vpack.c.b16 %v228, %v227
      %v234 = vpack.c.b16 %v230, %v229
      %vm235 = vcmask 64512
      %v237 = vsel %vm235, %v231, 0
      %v240 = vsel %vm235, %v232, 0
      %v243 = vsel %vm235, %v233, 0
      %v246 = vsel %vm235, %v234, 0
      %vm248 = vcmask 1043456
      %v250 = vsel %vm248, %v214, 0
      %252 = vmatprep.subr.bf16.mxu0 0
      %253 = vmatpush1.bf16.msra.mxu0 %v250
      %254 = vmatprep.subr.bf16.mxu0 0
      %255 = vmatpush1.bf16.msra.mxu0 0
      %256 = vmatprep.subr.bf16.mxu0 0
      %257 = vmatpush1.bf16.msra.mxu0 0
      %258 = vmatprep.subr.bf16.mxu0 0
      %259 = vmatpush1.bf16.msra.mxu0 0
      %260 = vmatprep.subr.bf16.mxu0 0
      %261 = vmatpush1.bf16.msra.mxu0 0
      %262 = vmatprep.subr.bf16.mxu0 0
      %263 = vmatpush1.bf16.msra.mxu0 0
      %264 = vmatprep.subr.bf16.mxu0 0
      %265 = vmatpush1.bf16.msra.mxu0 0
      %266 = vmatprep.subr.bf16.mxu0 0
      %267 = vmatpush1.bf16.msra.mxu0 0
      %268 = vmatprep.subr.bf16.mxu0 0
      %269 = vmatpush1.bf16.msra.mxu0 0
      %270 = vmatprep.subr.bf16.mxu0 0
      %271 = vmatpush1.bf16.msra.mxu0 0
      %272 = vmatprep.subr.bf16.mxu0 0
      %273 = vmatpush1.bf16.msra.mxu0 0
      %274 = vmatprep.subr.bf16.mxu0 0
      %275 = vmatpush1.bf16.msra.mxu0 0
      %276 = vmatprep.subr.bf16.mxu0 0
      %277 = vmatpush1.bf16.msra.mxu0 0
      %278 = vmatprep.subr.bf16.mxu0 0
      %279 = vmatpush1.bf16.msra.mxu0 0
      %280 = vmatprep.subr.bf16.mxu0 0
      %281 = vmatpush1.bf16.msra.mxu0 0
      %282 = vmatprep.subr.bf16.mxu0 0
      %283 = vmatpush1.bf16.msra.mxu0 0
      %284 = vmatprep.mubr.bf16.mxu0 0
      %285 = vmatmul.mubr.bf16.gmra.mrb[0].mxu0 %v237
      %v286 = vpop.f32.mrb[0].mxu0
      %v287 = vadd.f32 0.0, %v286
      %v288 = vpop.f32.mrb[0].mxu0
      %v289 = vpop.f32.mrb[0].mxu0
      %v290 = vadd.f32 0.0, %v289
      %v291 = vpop.f32.mrb[0].mxu0
      %292 = vmatprep.mubr.bf16.mxu0 0
      %293 = vmatmul.mubr.bf16.gmra.mrb[0].mxu0 %v240
      %v294 = vpop.f32.mrb[0].mxu0
      %v295 = vadd.f32 0.0, %v294
      %v296 = vpop.f32.mrb[0].mxu0
      %v297 = vpop.f32.mrb[0].mxu0
      %v298 = vadd.f32 0.0, %v297
      %v299 = vpop.f32.mrb[0].mxu0
      %300 = vmatprep.mubr.bf16.mxu0 0
      %301 = vmatmul.mubr.bf16.gmra.mrb[0].mxu0 %v243
      %v302 = vpop.f32.mrb[0].mxu0
      %v303 = vadd.f32 0.0, %v302
      %v304 = vpop.f32.mrb[0].mxu0
      %v305 = vpop.f32.mrb[0].mxu0
      %v306 = vadd.f32 0.0, %v305
      %v307 = vpop.f32.mrb[0].mxu0
      %308 = vmatprep.mubr.bf16.mxu0 0
      %309 = vmatmul.mubr.bf16.gmra.mrb[0].mxu0 %v246
      %v310 = vpop.f32.mrb[0].mxu0
      %v311 = vadd.f32 0.0, %v310
      %v312 = vpop.f32.mrb[0].mxu0
      %v313 = vpop.f32.mrb[0].mxu0
      %v314 = vadd.f32 0.0, %v313
      %v315 = vpop.f32.mrb[0].mxu0
      %316 = vdwg.mxu0
      %v317 = vadd.f32 %v201, %v287
      %v318 = vadd.f32 %v201, %v290
      %v319 = vadd.f32 %v201, %v295
      %v320 = vadd.f32 %v201, %v298
      %v321 = vadd.f32 %v201, %v303
      %v322 = vadd.f32 %v201, %v306
      %v323 = vadd.f32 %v201, %v311
      %v324 = vadd.f32 %v201, %v314
      %v325 = vld [vmem:[%s205] sm:$0xf]
      %v326 = vld [vmem:[%s205 + $0x4] sm:$0x1]
      %v327 = vld [vmem:[%s205 + $0x8] sm:$0xf]
      %v328 = vld [vmem:[%s205 + $0xc] sm:$0x1]
      %v329 = vld [vmem:[%s205 + $0x10] sm:$0xf]
      %v330 = vld [vmem:[%s205 + $0x14] sm:$0x1]
      %v331 = vld [vmem:[%s205 + $0x18] sm:$0xf]
      %v332 = vld [vmem:[%s205 + $0x1c] sm:$0x1]
      %v333 = vld [vmem:[%s205 + $0x20] sm:$0xf]
      %v334 = vld [vmem:[%s205 + $0x24] sm:$0x1]
      %v335 = vld [vmem:[%s205 + $0x28] sm:$0xf]
      %v336 = vld [vmem:[%s205 + $0x2c] sm:$0x1]
      %v337 = vld [vmem:[%s205 + $0x30] sm:$0xf]
      %v338 = vld [vmem:[%s205 + $0x34] sm:$0x1]
      %v339 = vld [vmem:[%s205 + $0x38] sm:$0xf]
      %v340 = vld [vmem:[%s205 + $0x3c] sm:$0x1]
      %vm341 = vsmask.f32 3328
      %vm342 = vsmask.f32 7440
      %vm343 = vmor %vm341, %vm342
      %v345 = vshrl.u32 %v325, 16
      %v347 = vrot.slane %v345, 4
      %v348 = vshll.u32 %v325, 16
      %v350 = vrot.slane %v348, 5
      %v351 = vor.u32 %v347, %v350
      %v352 = vrot.slane %v351, 4
      %v354 = vshll.u32 %v326, 16
      %v356 = vrot.slane %v354, 5
      %v357 = vsel %vm343, %v352, %v356
      %v359 = vshrl.u32 %v327, 16
      %v361 = vrot.slane %v359, 4
      %v362 = vshll.u32 %v327, 16
      %v364 = vrot.slane %v362, 5
      %v365 = vor.u32 %v361, %v364
      %v366 = vrot.slane %v365, 4
      %v368 = vshll.u32 %v328, 16
      %v370 = vrot.slane %v368, 5
      %v371 = vsel %vm343, %v366, %v370
      %v373 = vshrl.u32 %v329, 16
      %v375 = vrot.slane %v373, 4
      %v376 = vshll.u32 %v329, 16
      %v378 = vrot.slane %v376, 5
      %v379 = vor.u32 %v375, %v378
      %v380 = vrot.slane %v379, 4
      %v382 = vshll.u32 %v330, 16
      %v384 = vrot.slane %v382, 5
      %v385 = vsel %vm343, %v380, %v384
      %v387 = vshrl.u32 %v331, 16
      %v389 = vrot.slane %v387, 4
      %v390 = vshll.u32 %v331, 16
      %v392 = vrot.slane %v390, 5
      %v393 = vor.u32 %v389, %v392
      %v394 = vrot.slane %v393, 4
      %v396 = vshll.u32 %v332, 16
      %v398 = vrot.slane %v396, 5
      %v399 = vsel %vm343, %v394, %v398
      %v401 = vshrl.u32 %v333, 16
      %v403 = vrot.slane %v401, 4
      %v404 = vshll.u32 %v333, 16
      %v406 = vrot.slane %v404, 5
      %v407 = vor.u32 %v403, %v406
      %v408 = vrot.slane %v407, 4
      %v410 = vshll.u32 %v334, 16
      %v412 = vrot.slane %v410, 5
      %v413 = vsel %vm343, %v408, %v412
      %v415 = vshrl.u32 %v335, 16
      %v417 = vrot.slane %v415, 4
      %v418 = vshll.u32 %v335, 16
      %v420 = vrot.slane %v418, 5
      %v421 = vor.u32 %v417, %v420
      %v422 = vrot.slane %v421, 4
      %v424 = vshll.u32 %v336, 16
      %v426 = vrot.slane %v424, 5
      %v427 = vsel %vm343, %v422, %v426
      %v429 = vshrl.u32 %v337, 16
      %v431 = vrot.slane %v429, 4
      %v432 = vshll.u32 %v337, 16
      %v434 = vrot.slane %v432, 5
      %v435 = vor.u32 %v431, %v434
      %v436 = vrot.slane %v435, 4
      %v438 = vshll.u32 %v338, 16
      %v440 = vrot.slane %v438, 5
      %v441 = vsel %vm343, %v436, %v440
      %v443 = vshrl.u32 %v339, 16
      %v445 = vrot.slane %v443, 4
      %v446 = vshll.u32 %v339, 16
      %v448 = vrot.slane %v446, 5
      %v449 = vor.u32 %v445, %v448
      %v450 = vrot.slane %v449, 4
      %v452 = vshll.u32 %v340, 16
      %v454 = vrot.slane %v452, 5
      %v455 = vsel %vm343, %v450, %v454
      %s456 = scalar_lea.vmem %s1, 4
      %v457 = vld [vmem:[%s456] sm:$0xf]
      %v458 = vunpack.c.l.b16 %v357
      %v459 = vunpack.c.l.b16 %v371
      %v460 = vunpack.c.l.b16 %v385
      %v461 = vunpack.c.l.b16 %v399
      %v462 = vunpack.c.l.b16 %v413
      %v463 = vunpack.c.l.b16 %v427
      %v464 = vunpack.c.l.b16 %v441
      %v465 = vunpack.c.l.b16 %v455
      %v466 = vpack.c.b16 %v459, %v458
      %v467 = vpack.c.b16 %v461, %v460
      %v468 = vpack.c.b16 %v463, %v462
      %v469 = vpack.c.b16 %v465, %v464
      %v471 = vsel %vm235, %v466, 0
      %v474 = vsel %vm235, %v467, 0
      %v477 = vsel %vm235, %v468, 0
      %v480 = vsel %vm235, %v469, 0
      %v483 = vsel %vm248, %v457, 0
      %485 = vmatprep.subr.bf16.mxu0 0
      %486 = vmatpush1.bf16.msra.mxu0 %v483
      %487 = vmatprep.subr.bf16.mxu0 0
      %488 = vmatpush1.bf16.msra.mxu0 0
      %489 = vmatprep.subr.bf16.mxu0 0
      %490 = vmatpush1.bf16.msra.mxu0 0
      %491 = vmatprep.subr.bf16.mxu0 0
      %492 = vmatpush1.bf16.msra.mxu0 0
      %493 = vmatprep.subr.bf16.mxu0 0
      %494 = vmatpush1.bf16.msra.mxu0 0
      %495 = vmatprep.subr.bf16.mxu0 0
      %496 = vmatpush1.bf16.msra.mxu0 0
      %497 = vmatprep.subr.bf16.mxu0 0
      %498 = vmatpush1.bf16.msra.mxu0 0
      %499 = vmatprep.subr.bf16.mxu0 0
      %500 = vmatpush1.bf16.msra.mxu0 0
      %501 = vmatprep.subr.bf16.mxu0 0
      %502 = vmatpush1.bf16.msra.mxu0 0
      %503 = vmatprep.subr.bf16.mxu0 0
      %504 = vmatpush1.bf16.msra.mxu0 0
      %505 = vmatprep.subr.bf16.mxu0 0
      %506 = vmatpush1.bf16.msra.mxu0 0
      %507 = vmatprep.subr.bf16.mxu0 0
      %508 = vmatpush1.bf16.msra.mxu0 0
      %509 = vmatprep.subr.bf16.mxu0 0
      %510 = vmatpush1.bf16.msra.mxu0 0
      %511 = vmatprep.subr.bf16.mxu0 0
      %512 = vmatpush1.bf16.msra.mxu0 0
      %513 = vmatprep.subr.bf16.mxu0 0
      %514 = vmatpush1.bf16.msra.mxu0 0
      %515 = vmatprep.subr.bf16.mxu0 0
      %516 = vmatpush1.bf16.msra.mxu0 0
      %517 = vmatprep.mubr.bf16.mxu0 0
      %518 = vmatmul.mubr.bf16.gmra.mrb[0].mxu0 %v471
      %v519 = vpop.f32.mrb[0].mxu0
      %v520 = vadd.f32 0.0, %v519
      %v521 = vpop.f32.mrb[0].mxu0
      %v522 = vpop.f32.mrb[0].mxu0
      %v523 = vadd.f32 0.0, %v522
      %v524 = vpop.f32.mrb[0].mxu0
      %525 = vmatprep.mubr.bf16.mxu0 0
      %526 = vmatmul.mubr.bf16.gmra.mrb[0].mxu0 %v474
      %v527 = vpop.f32.mrb[0].mxu0
      %v528 = vadd.f32 0.0, %v527
      %v529 = vpop.f32.mrb[0].mxu0
      %v530 = vpop.f32.mrb[0].mxu0
      %v531 = vadd.f32 0.0, %v530
      %v532 = vpop.f32.mrb[0].mxu0
      %533 = vmatprep.mubr.bf16.mxu0 0
      %534 = vmatmul.mubr.bf16.gmra.mrb[0].mxu0 %v477
      %v535 = vpop.f32.mrb[0].mxu0
      %v536 = vadd.f32 0.0, %v535
      %v537 = vpop.f32.mrb[0].mxu0
      %v538 = vpop.f32.mrb[0].mxu0
      %v539 = vadd.f32 0.0, %v538
      %v540 = vpop.f32.mrb[0].mxu0
      %541 = vmatprep.mubr.bf16.mxu0 0
      %542 = vmatmul.mubr.bf16.gmra.mrb[0].mxu0 %v480
      %v543 = vpop.f32.mrb[0].mxu0
      %v544 = vadd.f32 0.0, %v543
      %v545 = vpop.f32.mrb[0].mxu0
      %v546 = vpop.f32.mrb[0].mxu0
      %v547 = vadd.f32 0.0, %v546
      %v548 = vpop.f32.mrb[0].mxu0
      %549 = vdwg.mxu0
      %v550 = vadd.f32 %v317, %v520
      %v551 = vadd.f32 %v318, %v523
      %v552 = vadd.f32 %v319, %v528
      %v553 = vadd.f32 %v320, %v531
      %v554 = vadd.f32 %v321, %v536
      %v555 = vadd.f32 %v322, %v539
      %v556 = vadd.f32 %v323, %v544
      %v557 = vadd.f32 %v324, %v547
      %v558 = vld [vmem:[%s205] sm:$0xe]
      %v559 = vld [vmem:[%s205 + $0x8] sm:$0xe]
      %v560 = vld [vmem:[%s205 + $0x10] sm:$0xe]
      %v561 = vld [vmem:[%s205 + $0x18] sm:$0xe]
      %v562 = vld [vmem:[%s205 + $0x20] sm:$0xe]
      %v563 = vld [vmem:[%s205 + $0x28] sm:$0xe]
      %v564 = vld [vmem:[%s205 + $0x30] sm:$0xe]
      %v565 = vld [vmem:[%s205 + $0x38] sm:$0xe]
      %vm582 = vcmask 1042432
      %vm583 = vcmask 1046532
      %vm584 = vmor %vm582, %vm583
      %v585 = vrot.slane %v558, 5
      %v586 = vrot.slane %v585, 4
      %v587 = vrot.slane %v326, 5
      %v588 = vsel %vm584, %v586, %v587
      %v589 = vrot.slane %v559, 5
      %v590 = vrot.slane %v589, 4
      %v591 = vrot.slane %v328, 5
      %v592 = vsel %vm584, %v590, %v591
      %v593 = vrot.slane %v560, 5
      %v594 = vrot.slane %v593, 4
      %v595 = vrot.slane %v330, 5
      %v596 = vsel %vm584, %v594, %v595
      %v597 = vrot.slane %v561, 5
      %v598 = vrot.slane %v597, 4
      %v599 = vrot.slane %v332, 5
      %v600 = vsel %vm584, %v598, %v599
      %v601 = vrot.slane %v562, 5
      %v602 = vrot.slane %v601, 4
      %v603 = vrot.slane %v334, 5
      %v604 = vsel %vm584, %v602, %v603
      %v605 = vrot.slane %v563, 5
      %v606 = vrot.slane %v605, 4
      %v607 = vrot.slane %v336, 5
      %v608 = vsel %vm584, %v606, %v607
      %v609 = vrot.slane %v564, 5
      %v610 = vrot.slane %v609, 4
      %v611 = vrot.slane %v338, 5
      %v612 = vsel %vm584, %v610, %v611
      %v613 = vrot.slane %v565, 5
      %v614 = vrot.slane %v613, 4
      %v615 = vrot.slane %v340, 5
      %v616 = vsel %vm584, %v614, %v615
      %s617 = scalar_lea.vmem %s1, 8
      %v618 = vld [vmem:[%s617] sm:$0xf]
      %v619 = vunpack.c.l.b16 %v588
      %v620 = vunpack.c.l.b16 %v592
      %v621 = vunpack.c.l.b16 %v596
      %v622 = vunpack.c.l.b16 %v600
      %v623 = vunpack.c.l.b16 %v604
      %v624 = vunpack.c.l.b16 %v608
      %v625 = vunpack.c.l.b16 %v612
      %v626 = vunpack.c.l.b16 %v616
      %v627 = vpack.c.b16 %v620, %v619
      %v628 = vpack.c.b16 %v622, %v621
      %v629 = vpack.c.b16 %v624, %v623
      %v630 = vpack.c.b16 %v626, %v625
      %v632 = vsel %vm235, %v627, 0
      %v635 = vsel %vm235, %v628, 0
      %v638 = vsel %vm235, %v629, 0
      %v641 = vsel %vm235, %v630, 0
      %v644 = vsel %vm248, %v618, 0
      %646 = vmatprep.subr.bf16.mxu0 0
      %647 = vmatpush1.bf16.msra.mxu0 %v644
      %648 = vmatprep.subr.bf16.mxu0 0
      %649 = vmatpush1.bf16.msra.mxu0 0
      %650 = vmatprep.subr.bf16.mxu0 0
      %651 = vmatpush1.bf16.msra.mxu0 0
      %652 = vmatprep.subr.bf16.mxu0 0
      %653 = vmatpush1.bf16.msra.mxu0 0
      %654 = vmatprep.subr.bf16.mxu0 0
      %655 = vmatpush1.bf16.msra.mxu0 0
      %656 = vmatprep.subr.bf16.mxu0 0
      %657 = vmatpush1.bf16.msra.mxu0 0
      %658 = vmatprep.subr.bf16.mxu0 0
      %659 = vmatpush1.bf16.msra.mxu0 0
      %660 = vmatprep.subr.bf16.mxu0 0
      %661 = vmatpush1.bf16.msra.mxu0 0
      %662 = vmatprep.subr.bf16.mxu0 0
      %663 = vmatpush1.bf16.msra.mxu0 0
      %664 = vmatprep.subr.bf16.mxu0 0
      %665 = vmatpush1.bf16.msra.mxu0 0
      %666 = vmatprep.subr.bf16.mxu0 0
      %667 = vmatpush1.bf16.msra.mxu0 0
      %668 = vmatprep.subr.bf16.mxu0 0
      %669 = vmatpush1.bf16.msra.mxu0 0
      %670 = vmatprep.subr.bf16.mxu0 0
      %671 = vmatpush1.bf16.msra.mxu0 0
      %672 = vmatprep.subr.bf16.mxu0 0
      %673 = vmatpush1.bf16.msra.mxu0 0
      %674 = vmatprep.subr.bf16.mxu0 0
      %675 = vmatpush1.bf16.msra.mxu0 0
      %676 = vmatprep.subr.bf16.mxu0 0
      %677 = vmatpush1.bf16.msra.mxu0 0
      %678 = vmatprep.mubr.bf16.mxu0 0
      %679 = vmatmul.mubr.bf16.gmra.mrb[0].mxu0 %v632
      %v680 = vpop.f32.mrb[0].mxu0
      %v681 = vadd.f32 0.0, %v680
      %v682 = vpop.f32.mrb[0].mxu0
      %v683 = vpop.f32.mrb[0].mxu0
      %v684 = vadd.f32 0.0, %v683
      %v685 = vpop.f32.mrb[0].mxu0
      %686 = vmatprep.mubr.bf16.mxu0 0
      %687 = vmatmul.mubr.bf16.gmra.mrb[0].mxu0 %v635
      %v688 = vpop.f32.mrb[0].mxu0
      %v689 = vadd.f32 0.0, %v688
      %v690 = vpop.f32.mrb[0].mxu0
      %v691 = vpop.f32.mrb[0].mxu0
      %v692 = vadd.f32 0.0, %v691
      %v693 = vpop.f32.mrb[0].mxu0
      %694 = vmatprep.mubr.bf16.mxu0 0
      %695 = vmatmul.mubr.bf16.gmra.mrb[0].mxu0 %v638
      %v696 = vpop.f32.mrb[0].mxu0
      %v697 = vadd.f32 0.0, %v696
      %v698 = vpop.f32.mrb[0].mxu0
      %v699 = vpop.f32.mrb[0].mxu0
      %v700 = vadd.f32 0.0, %v699
      %v701 = vpop.f32.mrb[0].mxu0
      %702 = vmatprep.mubr.bf16.mxu0 0
      %703 = vmatmul.mubr.bf16.gmra.mrb[0].mxu0 %v641
      %v704 = vpop.f32.mrb[0].mxu0
      %v705 = vadd.f32 0.0, %v704
      %v706 = vpop.f32.mrb[0].mxu0
      %v707 = vpop.f32.mrb[0].mxu0
      %v708 = vadd.f32 0.0, %v707
      %v709 = vpop.f32.mrb[0].mxu0
      %710 = vdwg.mxu0
      %v711 = vadd.f32 %v550, %v681
      %v712 = vadd.f32 %v551, %v684
      %v713 = vadd.f32 %v552, %v689
      %v714 = vadd.f32 %v553, %v692
      %v715 = vadd.f32 %v554, %v697
      %v716 = vadd.f32 %v555, %v700
      %v717 = vadd.f32 %v556, %v705
      %v718 = vadd.f32 %v557, %v708
      %s719 = sadd.s32 %s195, 1
      %s720 = smul.u32 %s719, 2
      %s721 = smul.addr %s720, 4
      %s722 = scalar_lea.vmem %s183, %s721
      %v723 = vld [vmem:[%s722] sm:$0xf]
      %v724 = vld [vmem:[%s722 + $0x8] sm:$0xf]
      %v725 = vld [vmem:[%s722 + $0x10] sm:$0xf]
      %v726 = vld [vmem:[%s722 + $0x18] sm:$0xf]
      %v727 = vld [vmem:[%s722 + $0x20] sm:$0xf]
      %v728 = vld [vmem:[%s722 + $0x28] sm:$0xf]
      %v729 = vld [vmem:[%s722 + $0x30] sm:$0xf]
      %v730 = vld [vmem:[%s722 + $0x38] sm:$0xf]
      %s731 = scalar_lea.vmem %s1, 12
      %v732 = vld [vmem:[%s731] sm:$0xf]
      %v741 = vunpack.c.l.b16 %v723
      %v742 = vunpack.c.l.b16 %v724
      %v743 = vunpack.c.l.b16 %v725
      %v744 = vunpack.c.l.b16 %v726
      %v745 = vunpack.c.l.b16 %v727
      %v746 = vunpack.c.l.b16 %v728
      %v747 = vunpack.c.l.b16 %v729
      %v748 = vunpack.c.l.b16 %v730
      %v749 = vpack.c.b16 %v742, %v741
      %v750 = vpack.c.b16 %v744, %v743
      %v751 = vpack.c.b16 %v746, %v745
      %v752 = vpack.c.b16 %v748, %v747
      %v754 = vsel %vm235, %v749, 0
      %v757 = vsel %vm235, %v750, 0
      %v760 = vsel %vm235, %v751, 0
      %v763 = vsel %vm235, %v752, 0
      %v766 = vsel %vm248, %v732, 0
      %768 = vmatprep.subr.bf16.mxu0 0
      %769 = vmatpush1.bf16.msra.mxu0 %v766
      %770 = vmatprep.subr.bf16.mxu0 0
      %771 = vmatpush1.bf16.msra.mxu0 0
      %772 = vmatprep.subr.bf16.mxu0 0
      %773 = vmatpush1.bf16.msra.mxu0 0
      %774 = vmatprep.subr.bf16.mxu0 0
      %775 = vmatpush1.bf16.msra.mxu0 0
      %776 = vmatprep.subr.bf16.mxu0 0
      %777 = vmatpush1.bf16.msra.mxu0 0
      %778 = vmatprep.subr.bf16.mxu0 0
      %779 = vmatpush1.bf16.msra.mxu0 0
      %780 = vmatprep.subr.bf16.mxu0 0
      %781 = vmatpush1.bf16.msra.mxu0 0
      %782 = vmatprep.subr.bf16.mxu0 0
      %783 = vmatpush1.bf16.msra.mxu0 0
      %784 = vmatprep.subr.bf16.mxu0 0
      %785 = vmatpush1.bf16.msra.mxu0 0
      %786 = vmatprep.subr.bf16.mxu0 0
      %787 = vmatpush1.bf16.msra.mxu0 0
      %788 = vmatprep.subr.bf16.mxu0 0
      %789 = vmatpush1.bf16.msra.mxu0 0
      %790 = vmatprep.subr.bf16.mxu0 0
      %791 = vmatpush1.bf16.msra.mxu0 0
      %792 = vmatprep.subr.bf16.mxu0 0
      %793 = vmatpush1.bf16.msra.mxu0 0
      %794 = vmatprep.subr.bf16.mxu0 0
      %795 = vmatpush1.bf16.msra.mxu0 0
      %796 = vmatprep.subr.bf16.mxu0 0
      %797 = vmatpush1.bf16.msra.mxu0 0
      %798 = vmatprep.subr.bf16.mxu0 0
      %799 = vmatpush1.bf16.msra.mxu0 0
      %800 = vmatprep.mubr.bf16.mxu0 0
      %801 = vmatmul.mubr.bf16.gmra.mrb[0].mxu0 %v754
      %v802 = vpop.f32.mrb[0].mxu0
      %v803 = vadd.f32 0.0, %v802
      %v804 = vpop.f32.mrb[0].mxu0
      %v805 = vpop.f32.mrb[0].mxu0
      %v806 = vadd.f32 0.0, %v805
      %v807 = vpop.f32.mrb[0].mxu0
      %808 = vmatprep.mubr.bf16.mxu0 0
      %809 = vmatmul.mubr.bf16.gmra.mrb[0].mxu0 %v757
      %v810 = vpop.f32.mrb[0].mxu0
      %v811 = vadd.f32 0.0, %v810
      %v812 = vpop.f32.mrb[0].mxu0
      %v813 = vpop.f32.mrb[0].mxu0
      %v814 = vadd.f32 0.0, %v813
      %v815 = vpop.f32.mrb[0].mxu0
      %816 = vmatprep.mubr.bf16.mxu0 0
      %817 = vmatmul.mubr.bf16.gmra.mrb[0].mxu0 %v760
      %v818 = vpop.f32.mrb[0].mxu0
      %v819 = vadd.f32 0.0, %v818
      %v820 = vpop.f32.mrb[0].mxu0
      %v821 = vpop.f32.mrb[0].mxu0
      %v822 = vadd.f32 0.0, %v821
      %v823 = vpop.f32.mrb[0].mxu0
      %824 = vmatprep.mubr.bf16.mxu0 0
      %825 = vmatmul.mubr.bf16.gmra.mrb[0].mxu0 %v763
      %v826 = vpop.f32.mrb[0].mxu0
      %v827 = vadd.f32 0.0, %v826
      %v828 = vpop.f32.mrb[0].mxu0
      %v829 = vpop.f32.mrb[0].mxu0
      %v830 = vadd.f32 0.0, %v829
      %v831 = vpop.f32.mrb[0].mxu0
      %832 = vdwg.mxu0
      %v833 = vadd.f32 %v711, %v803
      %v834 = vadd.f32 %v712, %v806
      %v835 = vadd.f32 %v713, %v811
      %v836 = vadd.f32 %v714, %v814
      %v837 = vadd.f32 %v715, %v819
      %v838 = vadd.f32 %v716, %v822
      %v839 = vadd.f32 %v717, %v827
      %v840 = vadd.f32 %v718, %v830
      %v841 = vld [vmem:[%s722] sm:$0xf]
      %v842 = vld [vmem:[%s722 + $0x4] sm:$0x1]
      %v843 = vld [vmem:[%s722 + $0x8] sm:$0xf]
      %v844 = vld [vmem:[%s722 + $0xc] sm:$0x1]
      %v845 = vld [vmem:[%s722 + $0x10] sm:$0xf]
      %v846 = vld [vmem:[%s722 + $0x14] sm:$0x1]
      %v847 = vld [vmem:[%s722 + $0x18] sm:$0xf]
      %v848 = vld [vmem:[%s722 + $0x1c] sm:$0x1]
      %v849 = vld [vmem:[%s722 + $0x20] sm:$0xf]
      %v850 = vld [vmem:[%s722 + $0x24] sm:$0x1]
      %v851 = vld [vmem:[%s722 + $0x28] sm:$0xf]
      %v852 = vld [vmem:[%s722 + $0x2c] sm:$0x1]
      %v853 = vld [vmem:[%s722 + $0x30] sm:$0xf]
      %v854 = vld [vmem:[%s722 + $0x34] sm:$0x1]
      %v855 = vld [vmem:[%s722 + $0x38] sm:$0xf]
      %v856 = vld [vmem:[%s722 + $0x3c] sm:$0x1]
      %v858 = vshrl.u32 %v841, 16
      %v860 = vrot.slane %v858, 4
      %v861 = vshll.u32 %v841, 16
      %v863 = vrot.slane %v861, 5
      %v864 = vor.u32 %v860, %v863
      %v865 = vrot.slane %v864, 4
      %v867 = vshll.u32 %v842, 16
      %v869 = vrot.slane %v867, 5
      %v870 = vsel %vm343, %v865, %v869
      %v872 = vshrl.u32 %v843, 16
      %v874 = vrot.slane %v872, 4
      %v875 = vshll.u32 %v843, 16
      %v877 = vrot.slane %v875, 5
      %v878 = vor.u32 %v874, %v877
      %v879 = vrot.slane %v878, 4
      %v881 = vshll.u32 %v844, 16
      %v883 = vrot.slane %v881, 5
      %v884 = vsel %vm343, %v879, %v883
      %v886 = vshrl.u32 %v845, 16
      %v888 = vrot.slane %v886, 4
      %v889 = vshll.u32 %v845, 16
      %v891 = vrot.slane %v889, 5
      %v892 = vor.u32 %v888, %v891
      %v893 = vrot.slane %v892, 4
      %v895 = vshll.u32 %v846, 16
      %v897 = vrot.slane %v895, 5
      %v898 = vsel %vm343, %v893, %v897
      %v900 = vshrl.u32 %v847, 16
      %v902 = vrot.slane %v900, 4
      %v903 = vshll.u32 %v847, 16
      %v905 = vrot.slane %v903, 5
      %v906 = vor.u32 %v902, %v905
      %v907 = vrot.slane %v906, 4
      %v909 = vshll.u32 %v848, 16
      %v911 = vrot.slane %v909, 5
      %v912 = vsel %vm343, %v907, %v911
      %v914 = vshrl.u32 %v849, 16
      %v916 = vrot.slane %v914, 4
      %v917 = vshll.u32 %v849, 16
      %v919 = vrot.slane %v917, 5
      %v920 = vor.u32 %v916, %v919
      %v921 = vrot.slane %v920, 4
      %v923 = vshll.u32 %v850, 16
      %v925 = vrot.slane %v923, 5
      %v926 = vsel %vm343, %v921, %v925
      %v928 = vshrl.u32 %v851, 16
      %v930 = vrot.slane %v928, 4
      %v931 = vshll.u32 %v851, 16
      %v933 = vrot.slane %v931, 5
      %v934 = vor.u32 %v930, %v933
      %v935 = vrot.slane %v934, 4
      %v937 = vshll.u32 %v852, 16
      %v939 = vrot.slane %v937, 5
      %v940 = vsel %vm343, %v935, %v939
      %v942 = vshrl.u32 %v853, 16
      %v944 = vrot.slane %v942, 4
      %v945 = vshll.u32 %v853, 16
      %v947 = vrot.slane %v945, 5
      %v948 = vor.u32 %v944, %v947
      %v949 = vrot.slane %v948, 4
      %v951 = vshll.u32 %v854, 16
      %v953 = vrot.slane %v951, 5
      %v954 = vsel %vm343, %v949, %v953
      %v956 = vshrl.u32 %v855, 16
      %v958 = vrot.slane %v956, 4
      %v959 = vshll.u32 %v855, 16
      %v961 = vrot.slane %v959, 5
      %v962 = vor.u32 %v958, %v961
      %v963 = vrot.slane %v962, 4
      %v965 = vshll.u32 %v856, 16
      %v967 = vrot.slane %v965, 5
      %v968 = vsel %vm343, %v963, %v967
      %s969 = scalar_lea.vmem %s1, 16
      %v970 = vld [vmem:[%s969] sm:$0xf]
      %v971 = vunpack.c.l.b16 %v870
      %v972 = vunpack.c.l.b16 %v884
      %v973 = vunpack.c.l.b16 %v898
      %v974 = vunpack.c.l.b16 %v912
      %v975 = vunpack.c.l.b16 %v926
      %v976 = vunpack.c.l.b16 %v940
      %v977 = vunpack.c.l.b16 %v954
      %v978 = vunpack.c.l.b16 %v968
      %v979 = vpack.c.b16 %v972, %v971
      %v980 = vpack.c.b16 %v974, %v973
      %v981 = vpack.c.b16 %v976, %v975
      %v982 = vpack.c.b16 %v978, %v977
      %v984 = vsel %vm235, %v979, 0
      %v987 = vsel %vm235, %v980, 0
      %v990 = vsel %vm235, %v981, 0
      %v993 = vsel %vm235, %v982, 0
      %v996 = vsel %vm248, %v970, 0
      %998 = vmatprep.subr.bf16.mxu0 0
      %999 = vmatpush1.bf16.msra.mxu0 %v996
      %1000 = vmatprep.subr.bf16.mxu0 0
      %1001 = vmatpush1.bf16.msra.mxu0 0
      %1002 = vmatprep.subr.bf16.mxu0 0
      %1003 = vmatpush1.bf16.msra.mxu0 0
      %1004 = vmatprep.subr.bf16.mxu0 0
      %1005 = vmatpush1.bf16.msra.mxu0 0
      %1006 = vmatprep.subr.bf16.mxu0 0
      %1007 = vmatpush1.bf16.msra.mxu0 0
      %1008 = vmatprep.subr.bf16.mxu0 0
      %1009 = vmatpush1.bf16.msra.mxu0 0
      %1010 = vmatprep.subr.bf16.mxu0 0
      %1011 = vmatpush1.bf16.msra.mxu0 0
      %1012 = vmatprep.subr.bf16.mxu0 0
      %1013 = vmatpush1.bf16.msra.mxu0 0
      %1014 = vmatprep.subr.bf16.mxu0 0
      %1015 = vmatpush1.bf16.msra.mxu0 0
      %1016 = vmatprep.subr.bf16.mxu0 0
      %1017 = vmatpush1.bf16.msra.mxu0 0
      %1018 = vmatprep.subr.bf16.mxu0 0
      %1019 = vmatpush1.bf16.msra.mxu0 0
      %1020 = vmatprep.subr.bf16.mxu0 0
      %1021 = vmatpush1.bf16.msra.mxu0 0
      %1022 = vmatprep.subr.bf16.mxu0 0
      %1023 = vmatpush1.bf16.msra.mxu0 0
      %1024 = vmatprep.subr.bf16.mxu0 0
      %1025 = vmatpush1.bf16.msra.mxu0 0
      %1026 = vmatprep.subr.bf16.mxu0 0
      %1027 = vmatpush1.bf16.msra.mxu0 0
      %1028 = vmatprep.subr.bf16.mxu0 0
      %1029 = vmatpush1.bf16.msra.mxu0 0
      %1030 = vmatprep.mubr.bf16.mxu0 0
      %1031 = vmatmul.mubr.bf16.gmra.mrb[0].mxu0 %v984
      %v1032 = vpop.f32.mrb[0].mxu0
      %v1033 = vadd.f32 0.0, %v1032
      %v1034 = vpop.f32.mrb[0].mxu0
      %v1035 = vpop.f32.mrb[0].mxu0
      %v1036 = vadd.f32 0.0, %v1035
      %v1037 = vpop.f32.mrb[0].mxu0
      %1038 = vmatprep.mubr.bf16.mxu0 0
      %1039 = vmatmul.mubr.bf16.gmra.mrb[0].mxu0 %v987
      %v1040 = vpop.f32.mrb[0].mxu0
      %v1041 = vadd.f32 0.0, %v1040
      %v1042 = vpop.f32.mrb[0].mxu0
      %v1043 = vpop.f32.mrb[0].mxu0
      %v1044 = vadd.f32 0.0, %v1043
      %v1045 = vpop.f32.mrb[0].mxu0
      %1046 = vmatprep.mubr.bf16.mxu0 0
      %1047 = vmatmul.mubr.bf16.gmra.mrb[0].mxu0 %v990
      %v1048 = vpop.f32.mrb[0].mxu0
      %v1049 = vadd.f32 0.0, %v1048
      %v1050 = vpop.f32.mrb[0].mxu0
      %v1051 = vpop.f32.mrb[0].mxu0
      %v1052 = vadd.f32 0.0, %v1051
      %v1053 = vpop.f32.mrb[0].mxu0
      %1054 = vmatprep.mubr.bf16.mxu0 0
      %1055 = vmatmul.mubr.bf16.gmra.mrb[0].mxu0 %v993
      %v1056 = vpop.f32.mrb[0].mxu0
      %v1057 = vadd.f32 0.0, %v1056
      %v1058 = vpop.f32.mrb[0].mxu0
      %v1059 = vpop.f32.mrb[0].mxu0
      %v1060 = vadd.f32 0.0, %v1059
      %v1061 = vpop.f32.mrb[0].mxu0
      %1062 = vdwg.mxu0
      %v1063 = vadd.f32 %v833, %v1033
      %v1064 = vadd.f32 %v834, %v1036
      %v1065 = vadd.f32 %v835, %v1041
      %v1066 = vadd.f32 %v836, %v1044
      %v1067 = vadd.f32 %v837, %v1049
      %v1068 = vadd.f32 %v838, %v1052
      %v1069 = vadd.f32 %v839, %v1057
      %v1070 = vadd.f32 %v840, %v1060
      %v1071 = vld [vmem:[%s722] sm:$0xe]
      %v1072 = vld [vmem:[%s722 + $0x8] sm:$0xe]
      %v1073 = vld [vmem:[%s722 + $0x10] sm:$0xe]
      %v1074 = vld [vmem:[%s722 + $0x18] sm:$0xe]
      %v1075 = vld [vmem:[%s722 + $0x20] sm:$0xe]
      %v1076 = vld [vmem:[%s722 + $0x28] sm:$0xe]
      %v1077 = vld [vmem:[%s722 + $0x30] sm:$0xe]
      %v1078 = vld [vmem:[%s722 + $0x38] sm:$0xe]
      %v1095 = vrot.slane %v1071, 5
      %v1096 = vrot.slane %v1095, 4
      %v1097 = vrot.slane %v842, 5
      %v1098 = vsel %vm584, %v1096, %v1097
      %v1099 = vrot.slane %v1072, 5
      %v1100 = vrot.slane %v1099, 4
      %v1101 = vrot.slane %v844, 5
      %v1102 = vsel %vm584, %v1100, %v1101
      %v1103 = vrot.slane %v1073, 5
      %v1104 = vrot.slane %v1103, 4
      %v1105 = vrot.slane %v846, 5
      %v1106 = vsel %vm584, %v1104, %v1105
      %v1107 = vrot.slane %v1074, 5
      %v1108 = vrot.slane %v1107, 4
      %v1109 = vrot.slane %v848, 5
      %v1110 = vsel %vm584, %v1108, %v1109
      %v1111 = vrot.slane %v1075, 5
      %v1112 = vrot.slane %v1111, 4
      %v1113 = vrot.slane %v850, 5
      %v1114 = vsel %vm584, %v1112, %v1113
      %v1115 = vrot.slane %v1076, 5
      %v1116 = vrot.slane %v1115, 4
      %v1117 = vrot.slane %v852, 5
      %v1118 = vsel %vm584, %v1116, %v1117
      %v1119 = vrot.slane %v1077, 5
      %v1120 = vrot.slane %v1119, 4
      %v1121 = vrot.slane %v854, 5
      %v1122 = vsel %vm584, %v1120, %v1121
      %v1123 = vrot.slane %v1078, 5
      %v1124 = vrot.slane %v1123, 4
      %v1125 = vrot.slane %v856, 5
      %v1126 = vsel %vm584, %v1124, %v1125
      %s1127 = scalar_lea.vmem %s1, 20
      %v1128 = vld [vmem:[%s1127] sm:$0xf]
      %v1129 = vunpack.c.l.b16 %v1098
      %v1130 = vunpack.c.l.b16 %v1102
      %v1131 = vunpack.c.l.b16 %v1106
      %v1132 = vunpack.c.l.b16 %v1110
      %v1133 = vunpack.c.l.b16 %v1114
      %v1134 = vunpack.c.l.b16 %v1118
      %v1135 = vunpack.c.l.b16 %v1122
      %v1136 = vunpack.c.l.b16 %v1126
      %v1137 = vpack.c.b16 %v1130, %v1129
      %v1138 = vpack.c.b16 %v1132, %v1131
      %v1139 = vpack.c.b16 %v1134, %v1133
      %v1140 = vpack.c.b16 %v1136, %v1135
      %v1142 = vsel %vm235, %v1137, 0
      %v1145 = vsel %vm235, %v1138, 0
      %v1148 = vsel %vm235, %v1139, 0
      %v1151 = vsel %vm235, %v1140, 0
      %v1154 = vsel %vm248, %v1128, 0
      %1156 = vmatprep.subr.bf16.mxu0 0
      %1157 = vmatpush1.bf16.msra.mxu0 %v1154
      %1158 = vmatprep.subr.bf16.mxu0 0
      %1159 = vmatpush1.bf16.msra.mxu0 0
      %1160 = vmatprep.subr.bf16.mxu0 0
      %1161 = vmatpush1.bf16.msra.mxu0 0
      %1162 = vmatprep.subr.bf16.mxu0 0
      %1163 = vmatpush1.bf16.msra.mxu0 0
      %1164 = vmatprep.subr.bf16.mxu0 0
      %1165 = vmatpush1.bf16.msra.mxu0 0
      %1166 = vmatprep.subr.bf16.mxu0 0
      %1167 = vmatpush1.bf16.msra.mxu0 0
      %1168 = vmatprep.subr.bf16.mxu0 0
      %1169 = vmatpush1.bf16.msra.mxu0 0
      %1170 = vmatprep.subr.bf16.mxu0 0
      %1171 = vmatpush1.bf16.msra.mxu0 0
      %1172 = vmatprep.subr.bf16.mxu0 0
      %1173 = vmatpush1.bf16.msra.mxu0 0
      %1174 = vmatprep.subr.bf16.mxu0 0
      %1175 = vmatpush1.bf16.msra.mxu0 0
      %1176 = vmatprep.subr.bf16.mxu0 0
      %1177 = vmatpush1.bf16.msra.mxu0 0
      %1178 = vmatprep.subr.bf16.mxu0 0
      %1179 = vmatpush1.bf16.msra.mxu0 0
      %1180 = vmatprep.subr.bf16.mxu0 0
      %1181 = vmatpush1.bf16.msra.mxu0 0
      %1182 = vmatprep.subr.bf16.mxu0 0
      %1183 = vmatpush1.bf16.msra.mxu0 0
      %1184 = vmatprep.subr.bf16.mxu0 0
      %1185 = vmatpush1.bf16.msra.mxu0 0
      %1186 = vmatprep.subr.bf16.mxu0 0
      %1187 = vmatpush1.bf16.msra.mxu0 0
      %1188 = vmatprep.mubr.bf16.mxu0 0
      %1189 = vmatmul.mubr.bf16.gmra.mrb[0].mxu0 %v1142
      %v1190 = vpop.f32.mrb[0].mxu0
      %v1191 = vadd.f32 0.0, %v1190
      %v1192 = vpop.f32.mrb[0].mxu0
      %v1193 = vpop.f32.mrb[0].mxu0
      %v1194 = vadd.f32 0.0, %v1193
      %v1195 = vpop.f32.mrb[0].mxu0
      %1196 = vmatprep.mubr.bf16.mxu0 0
      %1197 = vmatmul.mubr.bf16.gmra.mrb[0].mxu0 %v1145
      %v1198 = vpop.f32.mrb[0].mxu0
      %v1199 = vadd.f32 0.0, %v1198
      %v1200 = vpop.f32.mrb[0].mxu0
      %v1201 = vpop.f32.mrb[0].mxu0
      %v1202 = vadd.f32 0.0, %v1201
      %v1203 = vpop.f32.mrb[0].mxu0
      %1204 = vmatprep.mubr.bf16.mxu0 0
      %1205 = vmatmul.mubr.bf16.gmra.mrb[0].mxu0 %v1148
      %v1206 = vpop.f32.mrb[0].mxu0
      %v1207 = vadd.f32 0.0, %v1206
      %v1208 = vpop.f32.mrb[0].mxu0
      %v1209 = vpop.f32.mrb[0].mxu0
      %v1210 = vadd.f32 0.0, %v1209
      %v1211 = vpop.f32.mrb[0].mxu0
      %1212 = vmatprep.mubr.bf16.mxu0 0
      %1213 = vmatmul.mubr.bf16.gmra.mrb[0].mxu0 %v1151
      %v1214 = vpop.f32.mrb[0].mxu0
      %v1215 = vadd.f32 0.0, %v1214
      %v1216 = vpop.f32.mrb[0].mxu0
      %v1217 = vpop.f32.mrb[0].mxu0
      %v1218 = vadd.f32 0.0, %v1217
      %v1219 = vpop.f32.mrb[0].mxu0
      %1220 = vdwg.mxu0
      %v1221 = vadd.f32 %v1063, %v1191
      %v1222 = vadd.f32 %v1064, %v1194
      %v1223 = vadd.f32 %v1065, %v1199
      %v1224 = vadd.f32 %v1066, %v1202
      %v1225 = vadd.f32 %v1067, %v1207
      %v1226 = vadd.f32 %v1068, %v1210
      %v1227 = vadd.f32 %v1069, %v1215
      %v1228 = vadd.f32 %v1070, %v1218
      %s1229 = sadd.s32 %s195, 2
      %s1230 = smul.u32 %s1229, 2
      %s1231 = smul.addr %s1230, 4
      %s1232 = scalar_lea.vmem %s183, %s1231
      %v1233 = vld [vmem:[%s1232] sm:$0xf]
      %v1234 = vld [vmem:[%s1232 + $0x8] sm:$0xf]
      %v1235 = vld [vmem:[%s1232 + $0x10] sm:$0xf]
      %v1236 = vld [vmem:[%s1232 + $0x18] sm:$0xf]
      %v1237 = vld [vmem:[%s1232 + $0x20] sm:$0xf]
      %v1238 = vld [vmem:[%s1232 + $0x28] sm:$0xf]
      %v1239 = vld [vmem:[%s1232 + $0x30] sm:$0xf]
      %v1240 = vld [vmem:[%s1232 + $0x38] sm:$0xf]
      %s1241 = scalar_lea.vmem %s1, 24
      %v1242 = vld [vmem:[%s1241] sm:$0xf]
      %v1251 = vunpack.c.l.b16 %v1233
      %v1252 = vunpack.c.l.b16 %v1234
      %v1253 = vunpack.c.l.b16 %v1235
      %v1254 = vunpack.c.l.b16 %v1236
      %v1255 = vunpack.c.l.b16 %v1237
      %v1256 = vunpack.c.l.b16 %v1238
      %v1257 = vunpack.c.l.b16 %v1239
      %v1258 = vunpack.c.l.b16 %v1240
      %v1259 = vpack.c.b16 %v1252, %v1251
      %v1260 = vpack.c.b16 %v1254, %v1253
      %v1261 = vpack.c.b16 %v1256, %v1255
      %v1262 = vpack.c.b16 %v1258, %v1257
      %v1264 = vsel %vm235, %v1259, 0
      %v1267 = vsel %vm235, %v1260, 0
      %v1270 = vsel %vm235, %v1261, 0
      %v1273 = vsel %vm235, %v1262, 0
      %v1276 = vsel %vm248, %v1242, 0
      %1278 = vmatprep.subr.bf16.mxu0 0
      %1279 = vmatpush1.bf16.msra.mxu0 %v1276
      %1280 = vmatprep.subr.bf16.mxu0 0
      %1281 = vmatpush1.bf16.msra.mxu0 0
      %1282 = vmatprep.subr.bf16.mxu0 0
      %1283 = vmatpush1.bf16.msra.mxu0 0
      %1284 = vmatprep.subr.bf16.mxu0 0
      %1285 = vmatpush1.bf16.msra.mxu0 0
      %1286 = vmatprep.subr.bf16.mxu0 0
      %1287 = vmatpush1.bf16.msra.mxu0 0
      %1288 = vmatprep.subr.bf16.mxu0 0
      %1289 = vmatpush1.bf16.msra.mxu0 0
      %1290 = vmatprep.subr.bf16.mxu0 0
      %1291 = vmatpush1.bf16.msra.mxu0 0
      %1292 = vmatprep.subr.bf16.mxu0 0
      %1293 = vmatpush1.bf16.msra.mxu0 0
      %1294 = vmatprep.subr.bf16.mxu0 0
      %1295 = vmatpush1.bf16.msra.mxu0 0
      %1296 = vmatprep.subr.bf16.mxu0 0
      %1297 = vmatpush1.bf16.msra.mxu0 0
      %1298 = vmatprep.subr.bf16.mxu0 0
      %1299 = vmatpush1.bf16.msra.mxu0 0
      %1300 = vmatprep.subr.bf16.mxu0 0
      %1301 = vmatpush1.bf16.msra.mxu0 0
      %1302 = vmatprep.subr.bf16.mxu0 0
      %1303 = vmatpush1.bf16.msra.mxu0 0
      %1304 = vmatprep.subr.bf16.mxu0 0
      %1305 = vmatpush1.bf16.msra.mxu0 0
      %1306 = vmatprep.subr.bf16.mxu0 0
      %1307 = vmatpush1.bf16.msra.mxu0 0
      %1308 = vmatprep.subr.bf16.mxu0 0
      %1309 = vmatpush1.bf16.msra.mxu0 0
      %1310 = vmatprep.mubr.bf16.mxu0 0
      %1311 = vmatmul.mubr.bf16.gmra.mrb[0].mxu0 %v1264
      %v1312 = vpop.f32.mrb[0].mxu0
      %v1313 = vadd.f32 0.0, %v1312
      %v1314 = vpop.f32.mrb[0].mxu0
      %v1315 = vpop.f32.mrb[0].mxu0
      %v1316 = vadd.f32 0.0, %v1315
      %v1317 = vpop.f32.mrb[0].mxu0
      %1318 = vmatprep.mubr.bf16.mxu0 0
      %1319 = vmatmul.mubr.bf16.gmra.mrb[0].mxu0 %v1267
      %v1320 = vpop.f32.mrb[0].mxu0
      %v1321 = vadd.f32 0.0, %v1320
      %v1322 = vpop.f32.mrb[0].mxu0
      %v1323 = vpop.f32.mrb[0].mxu0
      %v1324 = vadd.f32 0.0, %v1323
      %v1325 = vpop.f32.mrb[0].mxu0
      %1326 = vmatprep.mubr.bf16.mxu0 0
      %1327 = vmatmul.mubr.bf16.gmra.mrb[0].mxu0 %v1270
      %v1328 = vpop.f32.mrb[0].mxu0
      %v1329 = vadd.f32 0.0, %v1328
      %v1330 = vpop.f32.mrb[0].mxu0
      %v1331 = vpop.f32.mrb[0].mxu0
      %v1332 = vadd.f32 0.0, %v1331
      %v1333 = vpop.f32.mrb[0].mxu0
      %1334 = vmatprep.mubr.bf16.mxu0 0
      %1335 = vmatmul.mubr.bf16.gmra.mrb[0].mxu0 %v1273
      %v1336 = vpop.f32.mrb[0].mxu0
      %v1337 = vadd.f32 0.0, %v1336
      %v1338 = vpop.f32.mrb[0].mxu0
      %v1339 = vpop.f32.mrb[0].mxu0
      %v1340 = vadd.f32 0.0, %v1339
      %v1341 = vpop.f32.mrb[0].mxu0
      %1342 = vdwg.mxu0
      %v1343 = vadd.f32 %v1221, %v1313
      %v1344 = vadd.f32 %v1222, %v1316
      %v1345 = vadd.f32 %v1223, %v1321
      %v1346 = vadd.f32 %v1224, %v1324
      %v1347 = vadd.f32 %v1225, %v1329
      %v1348 = vadd.f32 %v1226, %v1332
      %v1349 = vadd.f32 %v1227, %v1337
      %v1350 = vadd.f32 %v1228, %v1340
      %v1351 = vld [vmem:[%s1232] sm:$0xf]
      %v1352 = vld [vmem:[%s1232 + $0x4] sm:$0x1]
      %v1353 = vld [vmem:[%s1232 + $0x8] sm:$0xf]
      %v1354 = vld [vmem:[%s1232 + $0xc] sm:$0x1]
      %v1355 = vld [vmem:[%s1232 + $0x10] sm:$0xf]
      %v1356 = vld [vmem:[%s1232 + $0x14] sm:$0x1]
      %v1357 = vld [vmem:[%s1232 + $0x18] sm:$0xf]
      %v1358 = vld [vmem:[%s1232 + $0x1c] sm:$0x1]
      %v1359 = vld [vmem:[%s1232 + $0x20] sm:$0xf]
      %v1360 = vld [vmem:[%s1232 + $0x24] sm:$0x1]
      %v1361 = vld [vmem:[%s1232 + $0x28] sm:$0xf]
      %v1362 = vld [vmem:[%s1232 + $0x2c] sm:$0x1]
      %v1363 = vld [vmem:[%s1232 + $0x30] sm:$0xf]
      %v1364 = vld [vmem:[%s1232 + $0x34] sm:$0x1]
      %v1365 = vld [vmem:[%s1232 + $0x38] sm:$0xf]
      %v1366 = vld [vmem:[%s1232 + $0x3c] sm:$0x1]
      %v1368 = vshrl.u32 %v1351, 16
      %v1370 = vrot.slane %v1368, 4
      %v1371 = vshll.u32 %v1351, 16
      %v1373 = vrot.slane %v1371, 5
      %v1374 = vor.u32 %v1370, %v1373
      %v1375 = vrot.slane %v1374, 4
      %v1377 = vshll.u32 %v1352, 16
      %v1379 = vrot.slane %v1377, 5
      %v1380 = vsel %vm343, %v1375, %v1379
      %v1382 = vshrl.u32 %v1353, 16
      %v1384 = vrot.slane %v1382, 4
      %v1385 = vshll.u32 %v1353, 16
      %v1387 = vrot.slane %v1385, 5
      %v1388 = vor.u32 %v1384, %v1387
      %v1389 = vrot.slane %v1388, 4
      %v1391 = vshll.u32 %v1354, 16
      %v1393 = vrot.slane %v1391, 5
      %v1394 = vsel %vm343, %v1389, %v1393
      %v1396 = vshrl.u32 %v1355, 16
      %v1398 = vrot.slane %v1396, 4
      %v1399 = vshll.u32 %v1355, 16
      %v1401 = vrot.slane %v1399, 5
      %v1402 = vor.u32 %v1398, %v1401
      %v1403 = vrot.slane %v1402, 4
      %v1405 = vshll.u32 %v1356, 16
      %v1407 = vrot.slane %v1405, 5
      %v1408 = vsel %vm343, %v1403, %v1407
      %v1410 = vshrl.u32 %v1357, 16
      %v1412 = vrot.slane %v1410, 4
      %v1413 = vshll.u32 %v1357, 16
      %v1415 = vrot.slane %v1413, 5
      %v1416 = vor.u32 %v1412, %v1415
      %v1417 = vrot.slane %v1416, 4
      %v1419 = vshll.u32 %v1358, 16
      %v1421 = vrot.slane %v1419, 5
      %v1422 = vsel %vm343, %v1417, %v1421
      %v1424 = vshrl.u32 %v1359, 16
      %v1426 = vrot.slane %v1424, 4
      %v1427 = vshll.u32 %v1359, 16
      %v1429 = vrot.slane %v1427, 5
      %v1430 = vor.u32 %v1426, %v1429
      %v1431 = vrot.slane %v1430, 4
      %v1433 = vshll.u32 %v1360, 16
      %v1435 = vrot.slane %v1433, 5
      %v1436 = vsel %vm343, %v1431, %v1435
      %v1438 = vshrl.u32 %v1361, 16
      %v1440 = vrot.slane %v1438, 4
      %v1441 = vshll.u32 %v1361, 16
      %v1443 = vrot.slane %v1441, 5
      %v1444 = vor.u32 %v1440, %v1443
      %v1445 = vrot.slane %v1444, 4
      %v1447 = vshll.u32 %v1362, 16
      %v1449 = vrot.slane %v1447, 5
      %v1450 = vsel %vm343, %v1445, %v1449
      %v1452 = vshrl.u32 %v1363, 16
      %v1454 = vrot.slane %v1452, 4
      %v1455 = vshll.u32 %v1363, 16
      %v1457 = vrot.slane %v1455, 5
      %v1458 = vor.u32 %v1454, %v1457
      %v1459 = vrot.slane %v1458, 4
      %v1461 = vshll.u32 %v1364, 16
      %v1463 = vrot.slane %v1461, 5
      %v1464 = vsel %vm343, %v1459, %v1463
      %v1466 = vshrl.u32 %v1365, 16
      %v1468 = vrot.slane %v1466, 4
      %v1469 = vshll.u32 %v1365, 16
      %v1471 = vrot.slane %v1469, 5
      %v1472 = vor.u32 %v1468, %v1471
      %v1473 = vrot.slane %v1472, 4
      %v1475 = vshll.u32 %v1366, 16
      %v1477 = vrot.slane %v1475, 5
      %v1478 = vsel %vm343, %v1473, %v1477
      %s1479 = scalar_lea.vmem %s1, 28
      %v1480 = vld [vmem:[%s1479] sm:$0xf]
      %v1481 = vunpack.c.l.b16 %v1380
      %v1482 = vunpack.c.l.b16 %v1394
      %v1483 = vunpack.c.l.b16 %v1408
      %v1484 = vunpack.c.l.b16 %v1422
      %v1485 = vunpack.c.l.b16 %v1436
      %v1486 = vunpack.c.l.b16 %v1450
      %v1487 = vunpack.c.l.b16 %v1464
      %v1488 = vunpack.c.l.b16 %v1478
      %v1489 = vpack.c.b16 %v1482, %v1481
      %v1490 = vpack.c.b16 %v1484, %v1483
      %v1491 = vpack.c.b16 %v1486, %v1485
      %v1492 = vpack.c.b16 %v1488, %v1487
      %v1494 = vsel %vm235, %v1489, 0
      %v1497 = vsel %vm235, %v1490, 0
      %v1500 = vsel %vm235, %v1491, 0
      %v1503 = vsel %vm235, %v1492, 0
      %v1506 = vsel %vm248, %v1480, 0
      %1508 = vmatprep.subr.bf16.mxu0 0
      %1509 = vmatpush1.bf16.msra.mxu0 %v1506
      %1510 = vmatprep.subr.bf16.mxu0 0
      %1511 = vmatpush1.bf16.msra.mxu0 0
      %1512 = vmatprep.subr.bf16.mxu0 0
      %1513 = vmatpush1.bf16.msra.mxu0 0
      %1514 = vmatprep.subr.bf16.mxu0 0
      %1515 = vmatpush1.bf16.msra.mxu0 0
      %1516 = vmatprep.subr.bf16.mxu0 0
      %1517 = vmatpush1.bf16.msra.mxu0 0
      %1518 = vmatprep.subr.bf16.mxu0 0
      %1519 = vmatpush1.bf16.msra.mxu0 0
      %1520 = vmatprep.subr.bf16.mxu0 0
      %1521 = vmatpush1.bf16.msra.mxu0 0
      %1522 = vmatprep.subr.bf16.mxu0 0
      %1523 = vmatpush1.bf16.msra.mxu0 0
      %1524 = vmatprep.subr.bf16.mxu0 0
      %1525 = vmatpush1.bf16.msra.mxu0 0
      %1526 = vmatprep.subr.bf16.mxu0 0
      %1527 = vmatpush1.bf16.msra.mxu0 0
      %1528 = vmatprep.subr.bf16.mxu0 0
      %1529 = vmatpush1.bf16.msra.mxu0 0
      %1530 = vmatprep.subr.bf16.mxu0 0
      %1531 = vmatpush1.bf16.msra.mxu0 0
      %1532 = vmatprep.subr.bf16.mxu0 0
      %1533 = vmatpush1.bf16.msra.mxu0 0
      %1534 = vmatprep.subr.bf16.mxu0 0
      %1535 = vmatpush1.bf16.msra.mxu0 0
      %1536 = vmatprep.subr.bf16.mxu0 0
      %1537 = vmatpush1.bf16.msra.mxu0 0
      %1538 = vmatprep.subr.bf16.mxu0 0
      %1539 = vmatpush1.bf16.msra.mxu0 0
      %1540 = vmatprep.mubr.bf16.mxu0 0
      %1541 = vmatmul.mubr.bf16.gmra.mrb[0].mxu0 %v1494
      %v1542 = vpop.f32.mrb[0].mxu0
      %v1543 = vadd.f32 0.0, %v1542
      %v1544 = vpop.f32.mrb[0].mxu0
      %v1545 = vpop.f32.mrb[0].mxu0
      %v1546 = vadd.f32 0.0, %v1545
      %v1547 = vpop.f32.mrb[0].mxu0
      %1548 = vmatprep.mubr.bf16.mxu0 0
      %1549 = vmatmul.mubr.bf16.gmra.mrb[0].mxu0 %v1497
      %v1550 = vpop.f32.mrb[0].mxu0
      %v1551 = vadd.f32 0.0, %v1550
      %v1552 = vpop.f32.mrb[0].mxu0
      %v1553 = vpop.f32.mrb[0].mxu0
      %v1554 = vadd.f32 0.0, %v1553
      %v1555 = vpop.f32.mrb[0].mxu0
      %1556 = vmatprep.mubr.bf16.mxu0 0
      %1557 = vmatmul.mubr.bf16.gmra.mrb[0].mxu0 %v1500
      %v1558 = vpop.f32.mrb[0].mxu0
      %v1559 = vadd.f32 0.0, %v1558
      %v1560 = vpop.f32.mrb[0].mxu0
      %v1561 = vpop.f32.mrb[0].mxu0
      %v1562 = vadd.f32 0.0, %v1561
      %v1563 = vpop.f32.mrb[0].mxu0
      %1564 = vmatprep.mubr.bf16.mxu0 0
      %1565 = vmatmul.mubr.bf16.gmra.mrb[0].mxu0 %v1503
      %v1566 = vpop.f32.mrb[0].mxu0
      %v1567 = vadd.f32 0.0, %v1566
      %v1568 = vpop.f32.mrb[0].mxu0
      %v1569 = vpop.f32.mrb[0].mxu0
      %v1570 = vadd.f32 0.0, %v1569
      %v1571 = vpop.f32.mrb[0].mxu0
      %1572 = vdwg.mxu0
      %v1573 = vadd.f32 %v1343, %v1543
      %v1574 = vadd.f32 %v1344, %v1546
      %v1575 = vadd.f32 %v1345, %v1551
      %v1576 = vadd.f32 %v1346, %v1554
      %v1577 = vadd.f32 %v1347, %v1559
      %v1578 = vadd.f32 %v1348, %v1562
      %v1579 = vadd.f32 %v1349, %v1567
      %v1580 = vadd.f32 %v1350, %v1570
      %v1581 = vld [vmem:[%s1232] sm:$0xe]
      %v1582 = vld [vmem:[%s1232 + $0x8] sm:$0xe]
      %v1583 = vld [vmem:[%s1232 + $0x10] sm:$0xe]
      %v1584 = vld [vmem:[%s1232 + $0x18] sm:$0xe]
      %v1585 = vld [vmem:[%s1232 + $0x20] sm:$0xe]
      %v1586 = vld [vmem:[%s1232 + $0x28] sm:$0xe]
      %v1587 = vld [vmem:[%s1232 + $0x30] sm:$0xe]
      %v1588 = vld [vmem:[%s1232 + $0x38] sm:$0xe]
      %v1605 = vrot.slane %v1581, 5
      %v1606 = vrot.slane %v1605, 4
      %v1607 = vrot.slane %v1352, 5
      %v1608 = vsel %vm584, %v1606, %v1607
      %v1609 = vrot.slane %v1582, 5
      %v1610 = vrot.slane %v1609, 4
      %v1611 = vrot.slane %v1354, 5
      %v1612 = vsel %vm584, %v1610, %v1611
      %v1613 = vrot.slane %v1583, 5
      %v1614 = vrot.slane %v1613, 4
      %v1615 = vrot.slane %v1356, 5
      %v1616 = vsel %vm584, %v1614, %v1615
      %v1617 = vrot.slane %v1584, 5
      %v1618 = vrot.slane %v1617, 4
      %v1619 = vrot.slane %v1358, 5
      %v1620 = vsel %vm584, %v1618, %v1619
      %v1621 = vrot.slane %v1585, 5
      %v1622 = vrot.slane %v1621, 4
      %v1623 = vrot.slane %v1360, 5
      %v1624 = vsel %vm584, %v1622, %v1623
      %v1625 = vrot.slane %v1586, 5
      %v1626 = vrot.slane %v1625, 4
      %v1627 = vrot.slane %v1362, 5
      %v1628 = vsel %vm584, %v1626, %v1627
      %v1629 = vrot.slane %v1587, 5
      %v1630 = vrot.slane %v1629, 4
      %v1631 = vrot.slane %v1364, 5
      %v1632 = vsel %vm584, %v1630, %v1631
      %v1633 = vrot.slane %v1588, 5
      %v1634 = vrot.slane %v1633, 4
      %v1635 = vrot.slane %v1366, 5
      %v1636 = vsel %vm584, %v1634, %v1635
      %s1637 = scalar_lea.vmem %s1, 32
      %v1638 = vld [vmem:[%s1637] sm:$0xf]
      %v1639 = vunpack.c.l.b16 %v1608
      %v1640 = vunpack.c.l.b16 %v1612
      %v1641 = vunpack.c.l.b16 %v1616
      %v1642 = vunpack.c.l.b16 %v1620
      %v1643 = vunpack.c.l.b16 %v1624
      %v1644 = vunpack.c.l.b16 %v1628
      %v1645 = vunpack.c.l.b16 %v1632
      %v1646 = vunpack.c.l.b16 %v1636
      %v1647 = vpack.c.b16 %v1640, %v1639
      %v1648 = vpack.c.b16 %v1642, %v1641
      %v1649 = vpack.c.b16 %v1644, %v1643
      %v1650 = vpack.c.b16 %v1646, %v1645
      %v1652 = vsel %vm235, %v1647, 0
      %v1655 = vsel %vm235, %v1648, 0
      %v1658 = vsel %vm235, %v1649, 0
      %v1661 = vsel %vm235, %v1650, 0
      %v1664 = vsel %vm248, %v1638, 0
      %1666 = vmatprep.subr.bf16.mxu0 0
      %1667 = vmatpush1.bf16.msra.mxu0 %v1664
      %1668 = vmatprep.subr.bf16.mxu0 0
      %1669 = vmatpush1.bf16.msra.mxu0 0
      %1670 = vmatprep.subr.bf16.mxu0 0
      %1671 = vmatpush1.bf16.msra.mxu0 0
      %1672 = vmatprep.subr.bf16.mxu0 0
      %1673 = vmatpush1.bf16.msra.mxu0 0
      %1674 = vmatprep.subr.bf16.mxu0 0
      %1675 = vmatpush1.bf16.msra.mxu0 0
      %1676 = vmatprep.subr.bf16.mxu0 0
      %1677 = vmatpush1.bf16.msra.mxu0 0
      %1678 = vmatprep.subr.bf16.mxu0 0
      %1679 = vmatpush1.bf16.msra.mxu0 0
      %1680 = vmatprep.subr.bf16.mxu0 0
      %1681 = vmatpush1.bf16.msra.mxu0 0
      %1682 = vmatprep.subr.bf16.mxu0 0
      %1683 = vmatpush1.bf16.msra.mxu0 0
      %1684 = vmatprep.subr.bf16.mxu0 0
      %1685 = vmatpush1.bf16.msra.mxu0 0
      %1686 = vmatprep.subr.bf16.mxu0 0
      %1687 = vmatpush1.bf16.msra.mxu0 0
      %1688 = vmatprep.subr.bf16.mxu0 0
      %1689 = vmatpush1.bf16.msra.mxu0 0
      %1690 = vmatprep.subr.bf16.mxu0 0
      %1691 = vmatpush1.bf16.msra.mxu0 0
      %1692 = vmatprep.subr.bf16.mxu0 0
      %1693 = vmatpush1.bf16.msra.mxu0 0
      %1694 = vmatprep.subr.bf16.mxu0 0
      %1695 = vmatpush1.bf16.msra.mxu0 0
      %1696 = vmatprep.subr.bf16.mxu0 0
      %1697 = vmatpush1.bf16.msra.mxu0 0
      %1698 = vmatprep.mubr.bf16.mxu0 0
      %1699 = vmatmul.mubr.bf16.gmra.mrb[0].mxu0 %v1652
      %v1700 = vpop.f32.mrb[0].mxu0
      %v1701 = vadd.f32 0.0, %v1700
      %v1702 = vpop.f32.mrb[0].mxu0
      %v1703 = vpop.f32.mrb[0].mxu0
      %v1704 = vadd.f32 0.0, %v1703
      %v1705 = vpop.f32.mrb[0].mxu0
      %1706 = vmatprep.mubr.bf16.mxu0 0
      %1707 = vmatmul.mubr.bf16.gmra.mrb[0].mxu0 %v1655
      %v1708 = vpop.f32.mrb[0].mxu0
      %v1709 = vadd.f32 0.0, %v1708
      %v1710 = vpop.f32.mrb[0].mxu0
      %v1711 = vpop.f32.mrb[0].mxu0
      %v1712 = vadd.f32 0.0, %v1711
      %v1713 = vpop.f32.mrb[0].mxu0
      %1714 = vmatprep.mubr.bf16.mxu0 0
      %1715 = vmatmul.mubr.bf16.gmra.mrb[0].mxu0 %v1658
      %v1716 = vpop.f32.mrb[0].mxu0
      %v1717 = vadd.f32 0.0, %v1716
      %v1718 = vpop.f32.mrb[0].mxu0
      %v1719 = vpop.f32.mrb[0].mxu0
      %v1720 = vadd.f32 0.0, %v1719
      %v1721 = vpop.f32.mrb[0].mxu0
      %1722 = vmatprep.mubr.bf16.mxu0 0
      %1723 = vmatmul.mubr.bf16.gmra.mrb[0].mxu0 %v1661
      %v1724 = vpop.f32.mrb[0].mxu0
      %v1725 = vadd.f32 0.0, %v1724
      %v1726 = vpop.f32.mrb[0].mxu0
      %v1727 = vpop.f32.mrb[0].mxu0
      %v1728 = vadd.f32 0.0, %v1727
      %v1729 = vpop.f32.mrb[0].mxu0
      %1730 = vdwg.mxu0
      %v1731 = vadd.f32 %v1573, %v1701
      %v1732 = vadd.f32 %v1574, %v1704
      %v1733 = vadd.f32 %v1575, %v1709
      %v1734 = vadd.f32 %v1576, %v1712
      %v1735 = vadd.f32 %v1577, %v1717
      %v1736 = vadd.f32 %v1578, %v1720
      %v1737 = vadd.f32 %v1579, %v1725
      %v1738 = vadd.f32 %v1580, %v1728
      %v1739 = vxor.u32 %v1731, 2147483648
      %v1740 = vxor.u32 %v1732, 2147483648
      %v1741 = vxor.u32 %v1733, 2147483648
      %v1742 = vxor.u32 %v1734, 2147483648
      %v1743 = vxor.u32 %v1735, 2147483648
      %v1744 = vxor.u32 %v1736, 2147483648
      %v1745 = vxor.u32 %v1737, 2147483648
      %v1746 = vxor.u32 %v1738, 2147483648
      %v1747 = vmul.f32 %v1739, 1.442695
      %v1748 = vpow.pop %v1747
      %v1749 = vmul.f32 %v1740, 1.442695
      %v1750 = vpow.pop %v1749
      %v1751 = vmul.f32 %v1741, 1.442695
      %v1752 = vpow.pop %v1751
      %v1753 = vmul.f32 %v1742, 1.442695
      %v1754 = vpow.pop %v1753
      %v1755 = vmul.f32 %v1743, 1.442695
      %v1756 = vpow.pop %v1755
      %v1757 = vmul.f32 %v1744, 1.442695
      %v1758 = vpow.pop %v1757
      %v1759 = vmul.f32 %v1745, 1.442695
      %v1760 = vpow.pop %v1759
      %v1761 = vmul.f32 %v1746, 1.442695
      %v1762 = vpow.pop %v1761
      %v1763 = vadd.f32 %v1748, 1.0
      %v1764 = vadd.f32 %v1750, 1.0
      %v1765 = vadd.f32 %v1752, 1.0
      %v1766 = vadd.f32 %v1754, 1.0
      %v1767 = vadd.f32 %v1756, 1.0
      %v1768 = vadd.f32 %v1758, 1.0
      %v1769 = vadd.f32 %v1760, 1.0
      %v1770 = vadd.f32 %v1762, 1.0
      %v1771 = vrcp.pop %v1763
      %v1772 = vmul.f32 1.0, %v1771
      %v1773 = vrcp.pop %v1764
      %v1774 = vmul.f32 1.0, %v1773
      %v1775 = vrcp.pop %v1765
      %v1776 = vmul.f32 1.0, %v1775
      %v1777 = vrcp.pop %v1766
      %v1778 = vmul.f32 1.0, %v1777
      %v1779 = vrcp.pop %v1767
      %v1780 = vmul.f32 1.0, %v1779
      %v1781 = vrcp.pop %v1768
      %v1782 = vmul.f32 1.0, %v1781
      %v1783 = vrcp.pop %v1769
      %v1784 = vmul.f32 1.0, %v1783
      %v1785 = vrcp.pop %v1770
      %v1786 = vmul.f32 1.0, %v1785
      %1788 = vset.pattern.permute.xlu0 8
      %1789 = vperm.xlu0 %1788, %v1772
      %v1790 = vpop.permute.xlu0 %1789
      %1793 = vset.pattern.permute.xlu0 8
      %1794 = vperm.xlu0 %1793, %v1774
      %v1795 = vpop.permute.xlu0 %1794
      %1798 = vset.pattern.permute.xlu0 8
      %1799 = vperm.xlu0 %1798, %v1776
      %v1800 = vpop.permute.xlu0 %1799
      %1803 = vset.pattern.permute.xlu0 8
      %1804 = vperm.xlu0 %1803, %v1778
      %v1805 = vpop.permute.xlu0 %1804
      %1808 = vset.pattern.permute.xlu0 8
      %1809 = vperm.xlu0 %1808, %v1780
      %v1810 = vpop.permute.xlu0 %1809
      %1813 = vset.pattern.permute.xlu0 8
      %1814 = vperm.xlu0 %1813, %v1782
      %v1815 = vpop.permute.xlu0 %1814
      %1818 = vset.pattern.permute.xlu0 8
      %1819 = vperm.xlu0 %1818, %v1784
      %v1820 = vpop.permute.xlu0 %1819
      %1823 = vset.pattern.permute.xlu0 8
      %1824 = vperm.xlu0 %1823, %v1786
      %v1825 = vpop.permute.xlu0 %1824
      %v1827 = vmul.f32 %v1731, %v1790
      %v1828 = vmul.f32 %v1732, %v1795
      %v1829 = vmul.f32 %v1733, %v1800
      %v1830 = vmul.f32 %v1734, %v1805
      %v1831 = vmul.f32 %v1735, %v1810
      %v1832 = vmul.f32 %v1736, %v1815
      %v1833 = vmul.f32 %v1737, %v1820
      %v1834 = vmul.f32 %v1738, %v1825
      %v1835 = vmax.f32 %v1827, 0.0
      %v1836 = vmax.f32 %v1828, 0.0
      %v1837 = vmax.f32 %v1829, 0.0
      %v1838 = vmax.f32 %v1830, 0.0
      %v1839 = vmax.f32 %v1831, 0.0
      %v1840 = vmax.f32 %v1832, 0.0
      %v1841 = vmax.f32 %v1833, 0.0
      %v1842 = vmax.f32 %v1834, 0.0
      %1843 = vst [vmem:[%s192] sm:$0xff] %v1835
      %1844 = vst [vmem:[%s192 + $0x8] sm:$0xff] %v1836
      %1845 = vst [vmem:[%s192 + $0x10] sm:$0xff] %v1837
      %1846 = vst [vmem:[%s192 + $0x18] sm:$0xff] %v1838
      %1847 = vst [vmem:[%s192 + $0x20] sm:$0xff] %v1839
      %1848 = vst [vmem:[%s192 + $0x28] sm:$0xff] %v1840
      %1849 = vst [vmem:[%s192 + $0x30] sm:$0xff] %v1841
      %1850 = vst [vmem:[%s192 + $0x38] sm:$0xff] %v1842
      %s1851 = smul.u32 8, %s19
      %p1852 = scmp.lt.s32.totalorder %s18, 1
      %s1853 = scalar_select %p1852, %s18, 1
      %p1854 = scmp.lt.s32.totalorder %s1851, 7
      %s1855 = scalar_select %p1854, %s1851, 7
      %s1856 = smul.addr %s1853, 8
      %s1857 = sadd.s32 %s1855, %s1856
      %s1858 = smul.addr %s1857, 8
      %s1859 = scalar_lea.vmem %s3, %s1858
      // Predicated region
      $region33: #{down_lwgated.5} parent=31 // pred_check
        %p1860 = pneg %p114
      $region34: #{down_lwgated.5} parent=31 // pred_check_branch
        %1862 = sbr.rel (%p1860) target = $region36
      $region35: #{down_lwgated.5} parent=31 // pred_region
        %s1863 = smul.u32 8, %s19
      $region36: #{down_lwgated.5} parent=31 // pred_fallthru
        _
    $region32: #{down_lwgated.5} parent=5 // pred_fallthru
      _
    %p1864 = scmp.le.s32.totalorder 2, %s9
    // Predicated region
    $region37: #{down_lwgated.5} parent=5 // pred_check
      %p1865 = pneg %p1864
    $region38: #{down_lwgated.5} parent=5 // pred_check_branch
      %1867 = sbr.rel (%p1865) target = $region40
    $region39: #{down_lwgated.5} parent=5 // pred_region
      %s1868 = ssub.s32 %s9, 2
      // Predicated region
      $region41: #{down_lwgated.5} parent=39 // pred_check
        %p1869 = pneg %p120
      $region42: #{down_lwgated.5} parent=39 // pred_check_branch
        %1871 = sbr.rel (%p1869) target = $region44
      $region43: #{down_lwgated.5} parent=39 // pred_region
        %s1872 = smul.u32 8, %s21
        %p1873 = scmp.lt.s32.totalorder %s20, 1
        %s1874 = scalar_select %p1873, %s20, 1
        %p1875 = scmp.lt.s32.totalorder %s1872, 7
        %s1876 = scalar_select %p1875, %s1872, 7
        %s1877 = smul.addr %s1874, 8
        %s1878 = sadd.s32 %s1876, %s1877
        %s1879 = smul.addr %s1878, 8
        %s1880 = scalar_lea.vmem %s3, %s1879
      $region44: #{down_lwgated.5} parent=39 // pred_fallthru
        _
    $region40: #{down_lwgated.5} parent=5 // pred_fallthru
      _
  $region6: #{down_lwgated.5} parent=0 // loop_footer
    %s13 = sadd.s32 1, %s9
  $region7: #{down_lwgated.5} parent=0 // loop_footer_branch
    %8 = sbr.rel target = $region3
  $region8: #{down_lwgated.5} parent=0 // loop_exit
    _

</llo_original>
